<compile_context>
chip_gen: v5e
topology: v5e:2x2
jax: 0.10.0
libtpu: 0.0.40
codegen_flags: <defaults>
</compile_context>

<pallas_src>
import functools

import jax
import jax.numpy as jnp
from jax.experimental import pallas as pl
from jax.experimental.pallas import tpu as pltpu


def _decoder_kernel(route_ref, x_ref, wcat_ref, bcat_ref, o_ref, *, W, D, n_routes):
    # route_ref: (TILE_B, 1) int32   x_ref: (TILE_B, F)
    # wcat_ref:  (F, n_routes*W*D)   bcat_ref: (1, n_routes*W*D)
    # o_ref:     (TILE_B, W*D)
    OUT = W * D

    # One big lane-dense matmul against the concatenated weights of all 5
    # decoders.  F is tiny, so the 5x extra FLOPs are free (MXU far from
    # saturated) and every data-dependent weight DMA disappears.
    y_all = jnp.dot(x_ref[...], wcat_ref[...], preferred_element_type=jnp.float32)
    y_all = y_all + bcat_ref[...]                      # (TILE_B, 5*OUT)

    # Per-sample route selection: five static, 128-aligned 256-wide lane
    # slices blended with one-hot masks (pure VPU work).
    route = route_ref[...]                             # (TILE_B, 1) int32
    acc = y_all[:, 0:OUT] * (route == 0).astype(jnp.float32)
    for r in range(1, n_routes):
        mask = (route == r).astype(jnp.float32)        # (TILE_B, 1)
        acc = acc + y_all[:, r * OUT:(r + 1) * OUT] * mask

    # do_norm: each group of D lanes (one "w" row of complex pairs) is scaled
    # by rsqrt(sum of squares).  Static lane slices + XLU reduce + EUP rsqrt;
    # the stored block stays lane-dense (W*D wide).
    # NOTE: like the PyTorch do_norm, an all-zero row yields NaN (no epsilon).
    for w in range(W):
        seg = acc[:, w * D:(w + 1) * D]                              # (TILE_B, D)
        ss = jnp.sum(seg * seg, axis=-1, keepdims=True)              # (TILE_B, 1)
        o_ref[:, w * D:(w + 1) * D] = seg * jax.lax.rsqrt(ss)


def _route_indices(x):
    """Replicates the per-sample if/elif routing (int(v) == 0 <=> trunc(v) == 0)."""
    t1 = jnp.trunc(x[:, -1]) == 0
    t2 = jnp.trunc(x[:, -2]) == 0
    t3 = jnp.trunc(x[:, -3]) == 0
    route = jnp.where(
        t1,
        jnp.where(t2, 0, jnp.where(t3, 3, 4)),
        jnp.where(t2, 1, 2),
    )
    return route.astype(jnp.int32)


def _round_up(n, m):
    return ((n + m - 1) // m) * m


def decoder_forward(x, weights, biases, W, D, *, tile_b=128):
    B, F = x.shape
    R, _, OUT = weights.shape
    assert OUT == W * D and biases.shape == (R, OUT)

    # Per-sample routing (same truncation semantics as the PyTorch code).
    route = _route_indices(x).reshape(B, 1)

    # Pad the batch to a multiple of the tile (edge-replicate so padded rows
    # stay numerically well-behaved); padded rows are dropped afterwards.
    tile_b = max(8, min(tile_b, _round_up(B, 8)))
    b_pad = _round_up(B, tile_b)
    if b_pad != B:
        pad = b_pad - B
        x_p = jnp.concatenate([x, jnp.broadcast_to(x[-1:], (pad, F))], axis=0)
        route_p = jnp.concatenate(
            [route, jnp.broadcast_to(route[-1:], (pad, 1))], axis=0)
    else:
        x_p, route_p = x, route

    # Concatenate all 5 decoders' parameters along the output axis so they
    # stay VMEM-resident for the whole grid: wcat[f, r*OUT + o] == weights[r, f, o].
    wcat = jnp.transpose(weights, (1, 0, 2)).reshape(F, R * OUT)
    bcat = biases.reshape(1, R * OUT)

    kernel = functools.partial(_decoder_kernel, W=W, D=D, n_routes=R)
    out = pl.pallas_call(
        kernel,
        out_shape=jax.ShapeDtypeStruct((b_pad, OUT), jnp.float32),
        grid=(b_pad // tile_b,),
        in_specs=[
            pl.BlockSpec((tile_b, 1), lambda i: (i, 0)),    # route (per-tile)
            pl.BlockSpec((tile_b, F), lambda i: (i, 0)),    # x tile
            pl.BlockSpec((F, R * OUT), lambda i: (0, 0)),   # resident weights
            pl.BlockSpec((1, R * OUT), lambda i: (0, 0)),   # resident biases
        ],
        out_specs=pl.BlockSpec((tile_b, OUT), lambda i: (i, 0)),  # lane-dense
        compiler_params=pltpu.CompilerParams(
            dimension_semantics=("parallel",),
            vmem_limit_bytes=32 * 1024 * 1024,
        ),
    )(route_p, x_p, wcat, bcat)

    return out[:B].reshape(B, W, D)


def decoder_reference(x, weights, biases, W, D):
    """Pure-JAX reference of the PyTorch forward (if_confuse=False path)."""
    route = _route_indices(x)
    w_sel = weights[route]                 # (B, F, W*D)
    b_sel = biases[route]                  # (B, W*D)
    y = jnp.einsum("bf,bfo->bo", x, w_sel) + b_sel
    yr = y.reshape(x.shape[0], W, D)
    norm = jnp.sqrt(jnp.sum(yr * yr, axis=-1, keepdims=True))
    return yr / norm


# TODO(synk): the `if_confuse` branch (stateful self.cnt-based masking with
# torch.einsum) is disabled by default (if_confuse=False) and stateful, so it
# is not implemented in the kernel.  The five sub-decoder modules are not
# defined in the provided source and are synthesized as Linear(F, W*D) layers.

if __name__ == "__main__":
    B, F, W, D = 200, 32, 8, 32        # small shapes; D even (complex pairs)
    OUT = W * D

    key = jax.random.PRNGKey(0)
    k1, k2, k3 = jax.random.split(key, 3)

    x = jax.random.normal(k1, (B, F), dtype=jnp.float32)
    # Tail features are [x[-3], x[-2], x[-1]]; cycle every sample through one
    # of the five decoder routes.
    tails = jnp.array(
        [
            [9.0, 0.3, 0.2],   # route 0: int(x[-1])==0, int(x[-2])==0
            [9.0, 0.3, 1.5],   # route 1: int(x[-1])!=0, int(x[-2])==0
            [9.0, 2.0, 1.5],   # route 2: int(x[-1])!=0, int(x[-2])!=0
            [0.1, 2.0, 0.5],   # route 3: int(x[-1])==0, int(x[-2])!=0, int(x[-3])==0
            [3.0, 2.0, 0.5],   # route 4: int(x[-1])==0, int(x[-2])!=0, int(x[-3])!=0
        ],
        dtype=jnp.float32,
    )
    x = x.at[:, -3:].set(tails[jnp.arange(B) % 5])

    # Deterministic synthetic parameters for the 5 decoder submodules.
    weights = 0.1 * jax.random.normal(k2, (5, F, OUT), dtype=jnp.float32)
    biases = 0.01 * jax.random.normal(k3, (5, OUT), dtype=jnp.float32)

    out = decoder_forward(x, weights, biases, W, D)
    out = jax.block_until_ready(out)

    ref = decoder_reference(x, weights, biases, W, D)
    assert out.shape == (B, W, D)
    assert jnp.allclose(out, ref, atol=1e-5, rtol=1e-5), "mismatch vs reference"

    print("KERNEL_OK")
</pallas_src>

<mosaic_0001>
module attributes {stable_mosaic.version = 11 : i64} {
  func.func @_decoder_kernel(%arg0: i32, %arg1: memref<128x1xi32, #tpu.memory_space<vmem>>, %arg2: memref<128x32xf32, #tpu.memory_space<vmem>>, %arg3: memref<32x1280xf32, #tpu.memory_space<vmem>>, %arg4: memref<1x1280xf32, #tpu.memory_space<vmem>>, %arg5: memref<128x256xf32, #tpu.memory_space<vmem>>) attributes {dimension_semantics = [#tpu.dimension_semantics<parallel>], iteration_bounds = array<i64: 2>, scalar_prefetch = 0 : i64, scratch_operands = 0 : i64, tpu.core_type = #tpu.core_type<tc>, window_params = [{transform_indices = @transform_0, window_bounds = array<i64: 128, 1>}, {transform_indices = @transform_1, window_bounds = array<i64: 128, 32>}, {pipeline_mode = #tpu.pipeline_mode<synchronous>, transform_indices = @transform_2, window_bounds = array<i64: 32, 1280>}, {pipeline_mode = #tpu.pipeline_mode<synchronous>, transform_indices = @transform_3, window_bounds = array<i64: 1, 1280>}, {transform_indices = @transform_4, window_bounds = array<i64: 128, 256>}]} {
    %c0 = arith.constant 0 : index
    %c0_0 = arith.constant 0 : index
    %0 = vector.load %arg2[%c0, %c0_0] : memref<128x32xf32, #tpu.memory_space<vmem>>, vector<128x32xf32>
    %c0_1 = arith.constant 0 : index
    %c0_2 = arith.constant 0 : index
    %1 = vector.load %arg3[%c0_1, %c0_2] : memref<32x1280xf32, #tpu.memory_space<vmem>>, vector<32x1280xf32>
    %cst = arith.constant dense<0.000000e+00> : vector<128x1280xf32>
    %2 = tpu.matmul %0, %1, %cst {dimension_numbers = #tpu.dot_dimension_numbers<[1], [0], [0], [1], [0, 0, 1, 1], [], []>} : vector<128x32xf32>, vector<32x1280xf32>, vector<128x1280xf32> -> vector<128x1280xf32>
    %c0_3 = arith.constant 0 : index
    %c0_4 = arith.constant 0 : index
    %3 = vector.load %arg4[%c0_3, %c0_4] : memref<1x1280xf32, #tpu.memory_space<vmem>>, vector<1x1280xf32>
    %4 = vector.broadcast %3 : vector<1x1280xf32> to vector<128x1280xf32>
    %5 = arith.addf %2, %4 : vector<128x1280xf32>
    %c0_5 = arith.constant 0 : index
    %c0_6 = arith.constant 0 : index
    %6 = vector.load %arg1[%c0_5, %c0_6] : memref<128x1xi32, #tpu.memory_space<vmem>>, vector<128x1xi32>
    %7 = vector.extract_strided_slice %5 {offsets = [0, 0], sizes = [128, 256], strides = [1, 1]} : vector<128x1280xf32> to vector<128x256xf32>
    %c0_i32 = arith.constant 0 : i32
    %8 = vector.broadcast %c0_i32 : i32 to vector<128x1xi32>
    %9 = arith.cmpi eq, %6, %8 : vector<128x1xi32>
    %10 = arith.extui %9 : vector<128x1xi1> to vector<128x1xi32>
    %11 = arith.sitofp %10 : vector<128x1xi32> to vector<128x1xf32>
    %12 = vector.broadcast %11 : vector<128x1xf32> to vector<128x256xf32>
    %13 = arith.mulf %7, %12 : vector<128x256xf32>
    %c1_i32 = arith.constant 1 : i32
    %14 = vector.broadcast %c1_i32 : i32 to vector<128x1xi32>
    %15 = arith.cmpi eq, %6, %14 : vector<128x1xi32>
    %16 = arith.extui %15 : vector<128x1xi1> to vector<128x1xi32>
    %17 = arith.sitofp %16 : vector<128x1xi32> to vector<128x1xf32>
    %18 = vector.extract_strided_slice %5 {offsets = [0, 256], sizes = [128, 256], strides = [1, 1]} : vector<128x1280xf32> to vector<128x256xf32>
    %19 = vector.broadcast %17 : vector<128x1xf32> to vector<128x256xf32>
    %20 = arith.mulf %18, %19 : vector<128x256xf32>
    %21 = arith.addf %13, %20 : vector<128x256xf32>
    %c2_i32 = arith.constant 2 : i32
    %22 = vector.broadcast %c2_i32 : i32 to vector<128x1xi32>
    %23 = arith.cmpi eq, %6, %22 : vector<128x1xi32>
    %24 = arith.extui %23 : vector<128x1xi1> to vector<128x1xi32>
    %25 = arith.sitofp %24 : vector<128x1xi32> to vector<128x1xf32>
    %26 = vector.extract_strided_slice %5 {offsets = [0, 512], sizes = [128, 256], strides = [1, 1]} : vector<128x1280xf32> to vector<128x256xf32>
    %27 = vector.broadcast %25 : vector<128x1xf32> to vector<128x256xf32>
    %28 = arith.mulf %26, %27 : vector<128x256xf32>
    %29 = arith.addf %21, %28 : vector<128x256xf32>
    %c3_i32 = arith.constant 3 : i32
    %30 = vector.broadcast %c3_i32 : i32 to vector<128x1xi32>
    %31 = arith.cmpi eq, %6, %30 : vector<128x1xi32>
    %32 = arith.extui %31 : vector<128x1xi1> to vector<128x1xi32>
    %33 = arith.sitofp %32 : vector<128x1xi32> to vector<128x1xf32>
    %34 = vector.extract_strided_slice %5 {offsets = [0, 768], sizes = [128, 256], strides = [1, 1]} : vector<128x1280xf32> to vector<128x256xf32>
    %35 = vector.broadcast %33 : vector<128x1xf32> to vector<128x256xf32>
    %36 = arith.mulf %34, %35 : vector<128x256xf32>
    %37 = arith.addf %29, %36 : vector<128x256xf32>
    %c4_i32 = arith.constant 4 : i32
    %38 = vector.broadcast %c4_i32 : i32 to vector<128x1xi32>
    %39 = arith.cmpi eq, %6, %38 : vector<128x1xi32>
    %40 = arith.extui %39 : vector<128x1xi1> to vector<128x1xi32>
    %41 = arith.sitofp %40 : vector<128x1xi32> to vector<128x1xf32>
    %42 = vector.extract_strided_slice %5 {offsets = [0, 1024], sizes = [128, 256], strides = [1, 1]} : vector<128x1280xf32> to vector<128x256xf32>
    %43 = vector.broadcast %41 : vector<128x1xf32> to vector<128x256xf32>
    %44 = arith.mulf %42, %43 : vector<128x256xf32>
    %45 = arith.addf %37, %44 : vector<128x256xf32>
    %46 = vector.extract_strided_slice %45 {offsets = [0, 0], sizes = [128, 32], strides = [1, 1]} : vector<128x256xf32> to vector<128x32xf32>
    %47 = arith.mulf %46, %46 : vector<128x32xf32>
    %cst_7 = arith.constant dense<0.000000e+00> : vector<128xf32>
    %48 = vector.multi_reduction <add>, %47, %cst_7 [1] : vector<128x32xf32> to vector<128xf32>
    %49 = vector.shape_cast %48 : vector<128xf32> to vector<128x1xf32>
    %50 = math.rsqrt %49 : vector<128x1xf32>
    %51 = vector.broadcast %50 : vector<128x1xf32> to vector<128x32xf32>
    %52 = arith.mulf %46, %51 : vector<128x32xf32>
    %c0_8 = arith.constant 0 : index
    %c0_9 = arith.constant 0 : index
    %53 = vector.load %arg5[%c0_8, %c0_9] : memref<128x256xf32, #tpu.memory_space<vmem>>, vector<128x32xf32>
    tpu.vector_store %arg5[%c0_8, %c0_9], %52 {strides = array<i32>} : memref<128x256xf32, #tpu.memory_space<vmem>>, vector<128x32xf32>,
    %54 = vector.extract_strided_slice %45 {offsets = [0, 32], sizes = [128, 32], strides = [1, 1]} : vector<128x256xf32> to vector<128x32xf32>
    %55 = arith.mulf %54, %54 : vector<128x32xf32>
    %cst_10 = arith.constant dense<0.000000e+00> : vector<128xf32>
    %56 = vector.multi_reduction <add>, %55, %cst_10 [1] : vector<128x32xf32> to vector<128xf32>
    %57 = vector.shape_cast %56 : vector<128xf32> to vector<128x1xf32>
    %58 = math.rsqrt %57 : vector<128x1xf32>
    %59 = vector.broadcast %58 : vector<128x1xf32> to vector<128x32xf32>
    %60 = arith.mulf %54, %59 : vector<128x32xf32>
    %c0_11 = arith.constant 0 : index
    %c32 = arith.constant 32 : index
    %61 = vector.load %arg5[%c0_11, %c32] : memref<128x256xf32, #tpu.memory_space<vmem>>, vector<128x32xf32>
    tpu.vector_store %arg5[%c0_11, %c32], %60 {strides = array<i32>} : memref<128x256xf32, #tpu.memory_space<vmem>>, vector<128x32xf32>,
    %62 = vector.extract_strided_slice %45 {offsets = [0, 64], sizes = [128, 32], strides = [1, 1]} : vector<128x256xf32> to vector<128x32xf32>
    %63 = arith.mulf %62, %62 : vector<128x32xf32>
    %cst_12 = arith.constant dense<0.000000e+00> : vector<128xf32>
    %64 = vector.multi_reduction <add>, %63, %cst_12 [1] : vector<128x32xf32> to vector<128xf32>
    %65 = vector.shape_cast %64 : vector<128xf32> to vector<128x1xf32>
    %66 = math.rsqrt %65 : vector<128x1xf32>
    %67 = vector.broadcast %66 : vector<128x1xf32> to vector<128x32xf32>
    %68 = arith.mulf %62, %67 : vector<128x32xf32>
    %c0_13 = arith.constant 0 : index
    %c64 = arith.constant 64 : index
    %69 = vector.load %arg5[%c0_13, %c64] : memref<128x256xf32, #tpu.memory_space<vmem>>, vector<128x32xf32>
    tpu.vector_store %arg5[%c0_13, %c64], %68 {strides = array<i32>} : memref<128x256xf32, #tpu.memory_space<vmem>>, vector<128x32xf32>,
    %70 = vector.extract_strided_slice %45 {offsets = [0, 96], sizes = [128, 32], strides = [1, 1]} : vector<128x256xf32> to vector<128x32xf32>
    %71 = arith.mulf %70, %70 : vector<128x32xf32>
    %cst_14 = arith.constant dense<0.000000e+00> : vector<128xf32>
    %72 = vector.multi_reduction <add>, %71, %cst_14 [1] : vector<128x32xf32> to vector<128xf32>
    %73 = vector.shape_cast %72 : vector<128xf32> to vector<128x1xf32>
    %74 = math.rsqrt %73 : vector<128x1xf32>
    %75 = vector.broadcast %74 : vector<128x1xf32> to vector<128x32xf32>
    %76 = arith.mulf %70, %75 : vector<128x32xf32>
    %c0_15 = arith.constant 0 : index
    %c96 = arith.constant 96 : index
    %77 = vector.load %arg5[%c0_15, %c96] : memref<128x256xf32, #tpu.memory_space<vmem>>, vector<128x32xf32>
    tpu.vector_store %arg5[%c0_15, %c96], %76 {strides = array<i32>} : memref<128x256xf32, #tpu.memory_space<vmem>>, vector<128x32xf32>,
    %78 = vector.extract_strided_slice %45 {offsets = [0, 128], sizes = [128, 32], strides = [1, 1]} : vector<128x256xf32> to vector<128x32xf32>
    %79 = arith.mulf %78, %78 : vector<128x32xf32>
    %cst_16 = arith.constant dense<0.000000e+00> : vector<128xf32>
    %80 = vector.multi_reduction <add>, %79, %cst_16 [1] : vector<128x32xf32> to vector<128xf32>
    %81 = vector.shape_cast %80 : vector<128xf32> to vector<128x1xf32>
    %82 = math.rsqrt %81 : vector<128x1xf32>
    %83 = vector.broadcast %82 : vector<128x1xf32> to vector<128x32xf32>
    %84 = arith.mulf %78, %83 : vector<128x32xf32>
    %c0_17 = arith.constant 0 : index
    %c128 = arith.constant 128 : index
    %85 = vector.load %arg5[%c0_17, %c128] : memref<128x256xf32, #tpu.memory_space<vmem>>, vector<128x32xf32>
    tpu.vector_store %arg5[%c0_17, %c128], %84 {strides = array<i32>} : memref<128x256xf32, #tpu.memory_space<vmem>>, vector<128x32xf32>,
    %86 = vector.extract_strided_slice %45 {offsets = [0, 160], sizes = [128, 32], strides = [1, 1]} : vector<128x256xf32> to vector<128x32xf32>
    %87 = arith.mulf %86, %86 : vector<128x32xf32>
    %cst_18 = arith.constant dense<0.000000e+00> : vector<128xf32>
    %88 = vector.multi_reduction <add>, %87, %cst_18 [1] : vector<128x32xf32> to vector<128xf32>
    %89 = vector.shape_cast %88 : vector<128xf32> to vector<128x1xf32>
    %90 = math.rsqrt %89 : vector<128x1xf32>
    %91 = vector.broadcast %90 : vector<128x1xf32> to vector<128x32xf32>
    %92 = arith.mulf %86, %91 : vector<128x32xf32>
    %c0_19 = arith.constant 0 : index
    %c160 = arith.constant 160 : index
    %93 = vector.load %arg5[%c0_19, %c160] : memref<128x256xf32, #tpu.memory_space<vmem>>, vector<128x32xf32>
    tpu.vector_store %arg5[%c0_19, %c160], %92 {strides = array<i32>} : memref<128x256xf32, #tpu.memory_space<vmem>>, vector<128x32xf32>,
    %94 = vector.extract_strided_slice %45 {offsets = [0, 192], sizes = [128, 32], strides = [1, 1]} : vector<128x256xf32> to vector<128x32xf32>
    %95 = arith.mulf %94, %94 : vector<128x32xf32>
    %cst_20 = arith.constant dense<0.000000e+00> : vector<128xf32>
    %96 = vector.multi_reduction <add>, %95, %cst_20 [1] : vector<128x32xf32> to vector<128xf32>
    %97 = vector.shape_cast %96 : vector<128xf32> to vector<128x1xf32>
    %98 = math.rsqrt %97 : vector<128x1xf32>
    %99 = vector.broadcast %98 : vector<128x1xf32> to vector<128x32xf32>
    %100 = arith.mulf %94, %99 : vector<128x32xf32>
    %c0_21 = arith.constant 0 : index
    %c192 = arith.constant 192 : index
    %101 = vector.load %arg5[%c0_21, %c192] : memref<128x256xf32, #tpu.memory_space<vmem>>, vector<128x32xf32>
    tpu.vector_store %arg5[%c0_21, %c192], %100 {strides = array<i32>} : memref<128x256xf32, #tpu.memory_space<vmem>>, vector<128x32xf32>,
    %102 = vector.extract_strided_slice %45 {offsets = [0, 224], sizes = [128, 32], strides = [1, 1]} : vector<128x256xf32> to vector<128x32xf32>
    %103 = arith.mulf %102, %102 : vector<128x32xf32>
    %cst_22 = arith.constant dense<0.000000e+00> : vector<128xf32>
    %104 = vector.multi_reduction <add>, %103, %cst_22 [1] : vector<128x32xf32> to vector<128xf32>
    %105 = vector.shape_cast %104 : vector<128xf32> to vector<128x1xf32>
    %106 = math.rsqrt %105 : vector<128x1xf32>
    %107 = vector.broadcast %106 : vector<128x1xf32> to vector<128x32xf32>
    %108 = arith.mulf %102, %107 : vector<128x32xf32>
    %c0_23 = arith.constant 0 : index
    %c224 = arith.constant 224 : index
    %109 = vector.load %arg5[%c0_23, %c224] : memref<128x256xf32, #tpu.memory_space<vmem>>, vector<128x32xf32>
    tpu.vector_store %arg5[%c0_23, %c224], %108 {strides = array<i32>} : memref<128x256xf32, #tpu.memory_space<vmem>>, vector<128x32xf32>,
    return
  }
  func.func @transform_0(%arg0: i32) -> (i32, i32) {
    %c0_i32 = arith.constant 0 : i32
    %c0_i32_0 = arith.constant 0 : i32
    return %arg0, %c0_i32 : i32, i32
  }
  func.func @transform_1(%arg0: i32) -> (i32, i32) {
    %c0_i32 = arith.constant 0 : i32
    %c0_i32_0 = arith.constant 0 : i32
    return %arg0, %c0_i32 : i32, i32
  }
  func.func @transform_2(%arg0: i32) -> (i32, i32) {
    %c0_i32 = arith.constant 0 : i32
    %c0_i32_0 = arith.constant 0 : i32
    %c0_i32_1 = arith.constant 0 : i32
    return %c0_i32, %c0_i32_0 : i32, i32
  }
  func.func @transform_3(%arg0: i32) -> (i32, i32) {
    %c0_i32 = arith.constant 0 : i32
    %c0_i32_0 = arith.constant 0 : i32
    %c0_i32_1 = arith.constant 0 : i32
    return %c0_i32, %c0_i32_0 : i32, i32
  }
  func.func @transform_4(%arg0: i32) -> (i32, i32) {
    %c0_i32 = arith.constant 0 : i32
    %c0_i32_0 = arith.constant 0 : i32
    return %arg0, %c0_i32 : i32, i32
  }
}

</mosaic_0001>

<llo_original>
// kernel: tpu_custom_call.1
$region0: #{tpu_custom_call.1}
  #allocation0 [shape = 'u32[]', space=smem, size = 0x4, offset = 0x4, fixed_abs, tag = 'smem constant byte address 0x4 - core index']
  #allocation1 [shape = 'u32[72,128]{1,0:T(1,128)}', space=vmem, size = 0x9000, scoped, tag = 'internal scratch']
  %s0 = inlined_call_operand.vmem [shape: s32[256,1], index: 0, kind: input, shape index: {}]
  %s1 = inlined_call_operand.vmem [shape: f32[256,32], index: 1, kind: input, shape index: {}]
  %s2 = inlined_call_operand.vmem [shape: f32[32,1280], index: 2, kind: input, shape index: {}]
  %s3 = inlined_call_operand.vmem [shape: f32[1,1280], index: 3, kind: input, shape index: {}]
  %s4 = inlined_call_operand.hbm [shape: f32[256,256], index: 4, kind: output, shape index: {}]
  %s5 = sld [smem:[#allocation0]]
  $region49: #{tpu_custom_call.1} parent=0
    _
  %s7 = ssub.s32 1, %s5
  %s8 = scalar_select 0, %s7, %s5
  $region1: #{tpu_custom_call.1} parent=0
    #allocation2 [shape = 'u8[262144]{0}', space=vmem, size = 0x40000, scoped, tag = 'output window, operand 0']
    #allocation3 [shape = 's32[2]{0}', space=sflag, size = 0x8, scoped, tag = 'scoped memory for tpu_custom_call.1']
    %9 = vsyncpa [#allocation3], 0
    %s10 = scalar_lea.sflag [#allocation3], 1
    %11 = vsyncpa %s10, 0
    loop: start=0, step=1, limit=4
    $region2: #{tpu_custom_call.1} parent=1 // loop_pre_header
      _
    $region3: #{tpu_custom_call.1} parent=1 // loop_header
      %s13 = sphi 0, %s17
      %p14 = scmp.ge.s32.totalorder %s13, 4
      %s23 = sphi 0, %s25
      %s26 = sphi 0, %s23
      %s27 = sphi 0, %s26
      %s43 = sphi 0, %s27
      %s49 = sphi 0, %s51
      %s52 = sphi 0, %s49
      %s53 = sphi 0, %s52
      %s69 = sphi 0, %s53
      %s73 = sphi 0, %s73
      %s75 = sphi 0, %s73
      %s76 = sphi 0, %s75
      %s90 = sphi 0, %s76
      %s94 = sphi 0, %s94
      %s96 = sphi 0, %s94
      %s97 = sphi 0, %s96
      %s111 = sphi 0, %s97
      %s117 = sphi 0, %s119
      %s120 = sphi 0, %s117
      %s121 = sphi 0, %s120
      %s137 = sphi 0, %s121
    $region4: #{tpu_custom_call.1} parent=1 // loop_header_branch
      %16 = sbr.rel (%p14) target = $region8
    $region5: #{tpu_custom_call.1} parent=1 // loop_body
      %s18 = ssub.s32 %s13, 1
      %s19 = ssub.s32 %s13, 2
      %s20 = sadd.s32 %s13, 1
      %s21 = ssub.s32 %s13, %s20
      %p22 = scmp.eq.s32.totalorder %s21, 0
      %s24 = sadd.s32 %s23, 1
      %s25 = scalar_select %p22, %s23, %s24
      %p28 = pneg %p22
      %p29 = scmp.eq.s32.totalorder %s13, 1
      %p30 = por %p28, %p29
      %p31 = scmp.ne.s32.totalorder %s23, %s26
      %p32 = scmp.eq.s32.totalorder %s13, 0
      %p33 = por %p31, %p32
      %p34 = scmp.ne.s32.totalorder %s23, %s26
      %p35 = scmp.eq.s32.totalorder %s18, 1
      %p36 = por %p34, %p35
      %p37 = scmp.ne.s32.totalorder %s26, %s27
      %p38 = scmp.eq.s32.totalorder %s18, 0
      %p39 = por %p37, %p38
      %p40 = scmp.ne.s32.totalorder %s26, %s27
      %p41 = scmp.eq.s32.totalorder %s19, 1
      %p42 = por %p40, %p41
      %p44 = scmp.ne.s32.totalorder %s27, %s43
      %p45 = scmp.eq.s32.totalorder %s19, 0
      %p46 = por %p44, %p45
      %s47 = ssub.s32 %s13, %s20
      %p48 = scmp.eq.s32.totalorder %s47, 0
      %s50 = sadd.s32 %s49, 1
      %s51 = scalar_select %p48, %s49, %s50
      %p54 = pneg %p48
      %p55 = scmp.eq.s32.totalorder %s13, 1
      %p56 = por %p54, %p55
      %p57 = scmp.ne.s32.totalorder %s49, %s52
      %p58 = scmp.eq.s32.totalorder %s13, 0
      %p59 = por %p57, %p58
      %p60 = scmp.ne.s32.totalorder %s49, %s52
      %p61 = scmp.eq.s32.totalorder %s18, 1
      %p62 = por %p60, %p61
      %p63 = scmp.ne.s32.totalorder %s52, %s53
      %p64 = scmp.eq.s32.totalorder %s18, 0
      %p65 = por %p63, %p64
      %p66 = scmp.ne.s32.totalorder %s52, %s53
      %p67 = scmp.eq.s32.totalorder %s19, 1
      %p68 = por %p66, %p67
      %p70 = scmp.ne.s32.totalorder %s53, %s69
      %p71 = scmp.eq.s32.totalorder %s19, 0
      %p72 = por %p70, %p71
      %s74 = sadd.s32 %s73, 1
      %p77 = scmp.eq.s32.totalorder %s13, 1
      %p78 = scmp.ne.s32.totalorder %s73, %s75
      %p79 = scmp.eq.s32.totalorder %s13, 0
      %p80 = por %p78, %p79
      %p81 = scmp.ne.s32.totalorder %s73, %s75
      %p82 = scmp.eq.s32.totalorder %s18, 1
      %p83 = por %p81, %p82
      %p84 = scmp.ne.s32.totalorder %s75, %s76
      %p85 = scmp.eq.s32.totalorder %s18, 0
      %p86 = por %p84, %p85
      %p87 = scmp.ne.s32.totalorder %s75, %s76
      %p88 = scmp.eq.s32.totalorder %s19, 1
      %p89 = por %p87, %p88
      %p91 = scmp.ne.s32.totalorder %s76, %s90
      %p92 = scmp.eq.s32.totalorder %s19, 0
      %p93 = por %p91, %p92
      %s95 = sadd.s32 %s94, 1
      %p98 = scmp.eq.s32.totalorder %s13, 1
      %p99 = scmp.ne.s32.totalorder %s94, %s96
      %p100 = scmp.eq.s32.totalorder %s13, 0
      %p101 = por %p99, %p100
      %p102 = scmp.ne.s32.totalorder %s94, %s96
      %p103 = scmp.eq.s32.totalorder %s18, 1
      %p104 = por %p102, %p103
      %p105 = scmp.ne.s32.totalorder %s96, %s97
      %p106 = scmp.eq.s32.totalorder %s18, 0
      %p107 = por %p105, %p106
      %p108 = scmp.ne.s32.totalorder %s96, %s97
      %p109 = scmp.eq.s32.totalorder %s19, 1
      %p110 = por %p108, %p109
      %p112 = scmp.ne.s32.totalorder %s97, %s111
      %p113 = scmp.eq.s32.totalorder %s19, 0
      %p114 = por %p112, %p113
      %s115 = ssub.s32 %s13, %s20
      %p116 = scmp.eq.s32.totalorder %s115, 0
      %s118 = sadd.s32 %s117, 1
      %s119 = scalar_select %p116, %s117, %s118
      %p122 = pneg %p116
      %p123 = scmp.eq.s32.totalorder %s13, 1
      %p124 = por %p122, %p123
      %p125 = scmp.ne.s32.totalorder %s117, %s120
      %p126 = scmp.eq.s32.totalorder %s13, 0
      %p127 = por %p125, %p126
      %p128 = scmp.ne.s32.totalorder %s117, %s120
      %p129 = scmp.eq.s32.totalorder %s18, 1
      %p130 = por %p128, %p129
      %p131 = scmp.ne.s32.totalorder %s120, %s121
      %p132 = scmp.eq.s32.totalorder %s18, 0
      %p133 = por %p131, %p132
      %p134 = scmp.ne.s32.totalorder %s120, %s121
      %p135 = scmp.eq.s32.totalorder %s19, 1
      %p136 = por %p134, %p135
      %p138 = scmp.ne.s32.totalorder %s121, %s137
      %p139 = scmp.eq.s32.totalorder %s19, 0
      %p140 = por %p138, %p139
      %p141 = scmp.le.s32.totalorder 1, %s13
      %p142 = scmp.lt.s32.totalorder %s13, 3
      %p143 = pnand %p141, %p142
      %p144 = pneg %p143
      // Predicated region
      $region9: #{tpu_custom_call.1} parent=5 // pred_check
        _
      $region10: #{tpu_custom_call.1} parent=5 // pred_check_branch
        %146 = sbr.rel (%p143) target = $region12
      $region11: #{tpu_custom_call.1} parent=5 // pred_region
        %s147 = ssub.s32 %s13, 1
        // Predicated region
        $region13: #{tpu_custom_call.1} parent=11 // pred_check
          %p148 = pneg %p86
        $region14: #{tpu_custom_call.1} parent=11 // pred_check_branch
          %150 = sbr.rel (%p148) target = $region16
        $region15: #{tpu_custom_call.1} parent=11 // pred_region
          _
        $region16: #{tpu_custom_call.1} parent=11 // pred_fallthru
          _
        // Predicated region
        $region17: #{tpu_custom_call.1} parent=11 // pred_check
          %p151 = pneg %p107
        $region18: #{tpu_custom_call.1} parent=11 // pred_check_branch
          %153 = sbr.rel (%p151) target = $region20
        $region19: #{tpu_custom_call.1} parent=11 // pred_region
          _
        $region20: #{tpu_custom_call.1} parent=11 // pred_fallthru
          _
      $region12: #{tpu_custom_call.1} parent=5 // pred_fallthru
        _
      %p154 = scmp.lt.s32.totalorder %s13, 2
      // Predicated region
      $region21: #{tpu_custom_call.1} parent=5 // pred_check
        %p155 = pneg %p154
      $region22: #{tpu_custom_call.1} parent=5 // pred_check_branch
        %157 = sbr.rel (%p155) target = $region24
      $region23: #{tpu_custom_call.1} parent=5 // pred_region
        // Predicated region
        $region25: #{tpu_custom_call.1} parent=23 // pred_check
          %p158 = pneg %p33
        $region26: #{tpu_custom_call.1} parent=23 // pred_check_branch
          %160 = sbr.rel (%p158) target = $region28
        $region27: #{tpu_custom_call.1} parent=23 // pred_region
          %s161 = smul.u32 16, %s13
          %p162 = scmp.lt.s32.totalorder %s161, 31
          %s163 = scalar_select %p162, %s161, 31
          %s164 = smul.addr %s163, 8
          %s165 = scalar_lea.vmem %s0, %s164
          %s166 = smul.u32 16, %s13
        $region28: #{tpu_custom_call.1} parent=23 // pred_fallthru
          _
        // Predicated region
        $region29: #{tpu_custom_call.1} parent=23 // pred_check
          %p167 = pneg %p59
        $region30: #{tpu_custom_call.1} parent=23 // pred_check_branch
          %169 = sbr.rel (%p167) target = $region32
        $region31: #{tpu_custom_call.1} parent=23 // pred_region
          %s170 = smul.u32 16, %s13
          %p171 = scmp.lt.s32.totalorder %s170, 31
          %s172 = scalar_select %p171, %s170, 31
          %s173 = smul.addr %s172, 8
          %s174 = scalar_lea.vmem %s1, %s173
          %s175 = smul.u32 16, %s13
        $region32: #{tpu_custom_call.1} parent=23 // pred_fallthru
          _
      $region24: #{tpu_custom_call.1} parent=5 // pred_fallthru
        _
      %p176 = scmp.le.s32.totalorder 1, %s13
      %p177 = scmp.lt.s32.totalorder %s13, 3
      %p178 = pnand %p176, %p177
      %p179 = pneg %p178
      // Predicated region
      $region33: #{tpu_custom_call.1} parent=5 // pred_check
        _
      $region34: #{tpu_custom_call.1} parent=5 // pred_check_branch
        %181 = sbr.rel (%p178) target = $region36
      $region35: #{tpu_custom_call.1} parent=5 // pred_region
        %s182 = ssub.s32 %s13, 1
        %s183 = smul.u32 16, %s18
        %p184 = scmp.lt.s32.totalorder %s183, 31
        %s185 = scalar_select %p184, %s183, 31
        %s186 = smul.addr %s185, 8
        %s187 = scalar_lea.vmem %s0, %s186
        %p188 = pneg %p39
        %p189 = pneg %p36
        %s190 = smul.u32 16, %s18
        %p191 = scmp.lt.s32.totalorder %s190, 31
        %s192 = scalar_select %p191, %s190, 31
        %s193 = smul.addr %s192, 8
        %s194 = scalar_lea.vmem %s1, %s193
        %p195 = pneg %p65
        %p196 = pneg %p62
        %p197 = pneg %p86
        %p198 = pneg %p83
        %p199 = pneg %p107
        %p200 = pneg %p104
        %p201 = pneg %p133
        %p202 = pneg %p130
        %s203 = sand.u32 %s120, 1
        %s204 = scalar_lea.sflag [#allocation3], %s203
        %s205 = sand.u32 %s120, 1
        %s206 = smul.addr %s205, 256
        %s207 = scalar_lea.vmem [#allocation2], %s206
        %s208 = smul.u32 16, %s18
        %p209 = scmp.lt.s32.totalorder %s208, 31
        %s210 = scalar_select %p209, %s208, 31
        %s211 = smul.addr %s210, 8
        %s212 = scalar_lea.vmem %s0, %s211
        %s213 = smul.u32 16, %s18
        %s214 = smul.u32 16, %s18
        %p215 = scmp.lt.s32.totalorder %s214, 31
        %s216 = scalar_select %p215, %s214, 31
        %s217 = smul.addr %s216, 8
        %s218 = scalar_lea.vmem %s1, %s217
        %s219 = smul.u32 16, %s18
        %s220 = smul.u32 16, %s18
        %v221 = vld [vmem:[%s218] sm:$0xff]
        %v222 = vld [vmem:[%s218 + $0x8] sm:$0xff]
        %v223 = vld [vmem:[%s218 + $0x10] sm:$0xff]
        %v224 = vld [vmem:[%s218 + $0x18] sm:$0xff]
        %v225 = vld [vmem:[%s218 + $0x20] sm:$0xff]
        %v226 = vld [vmem:[%s218 + $0x28] sm:$0xff]
        %v227 = vld [vmem:[%s218 + $0x30] sm:$0xff]
        %v228 = vld [vmem:[%s218 + $0x38] sm:$0xff]
        %v229 = vld [vmem:[%s218 + $0x40] sm:$0xff]
        %v230 = vld [vmem:[%s218 + $0x48] sm:$0xff]
        %v231 = vld [vmem:[%s218 + $0x50] sm:$0xff]
        %v232 = vld [vmem:[%s218 + $0x58] sm:$0xff]
        %v233 = vld [vmem:[%s218 + $0x60] sm:$0xff]
        %v234 = vld [vmem:[%s218 + $0x68] sm:$0xff]
        %v235 = vld [vmem:[%s218 + $0x70] sm:$0xff]
        %v236 = vld [vmem:[%s218 + $0x78] sm:$0xff]
        %v237 = vld [vmem:[%s2] sm:$0xff]
        %v238 = vld [vmem:[%s2 + $0x8] sm:$0xff]
        %v239 = vld [vmem:[%s2 + $0x10] sm:$0xff]
        %v240 = vld [vmem:[%s2 + $0x18] sm:$0xff]
        %v241 = vld [vmem:[%s2 + $0x20] sm:$0xff]
        %v242 = vld [vmem:[%s2 + $0x28] sm:$0xff]
        %v243 = vld [vmem:[%s2 + $0x30] sm:$0xff]
        %v244 = vld [vmem:[%s2 + $0x38] sm:$0xff]
        %v245 = vld [vmem:[%s2 + $0x40] sm:$0xff]
        %v246 = vld [vmem:[%s2 + $0x48] sm:$0xff]
        %v247 = vld [vmem:[%s2 + $0x50] sm:$0xff]
        %v248 = vld [vmem:[%s2 + $0x58] sm:$0xff]
        %v249 = vld [vmem:[%s2 + $0x60] sm:$0xff]
        %v250 = vld [vmem:[%s2 + $0x68] sm:$0xff]
        %v251 = vld [vmem:[%s2 + $0x70] sm:$0xff]
        %v252 = vld [vmem:[%s2 + $0x78] sm:$0xff]
        %v253 = vld [vmem:[%s2 + $0x80] sm:$0xff]
        %v254 = vld [vmem:[%s2 + $0x88] sm:$0xff]
        %v255 = vld [vmem:[%s2 + $0x90] sm:$0xff]
        %v256 = vld [vmem:[%s2 + $0x98] sm:$0xff]
        %v257 = vld [vmem:[%s2 + $0xa0] sm:$0xff]
        %v258 = vld [vmem:[%s2 + $0xa8] sm:$0xff]
        %v259 = vld [vmem:[%s2 + $0xb0] sm:$0xff]
        %v260 = vld [vmem:[%s2 + $0xb8] sm:$0xff]
        %v261 = vld [vmem:[%s2 + $0xc0] sm:$0xff]
        %v262 = vld [vmem:[%s2 + $0xc8] sm:$0xff]
        %v263 = vld [vmem:[%s2 + $0xd0] sm:$0xff]
        %v264 = vld [vmem:[%s2 + $0xd8] sm:$0xff]
        %v265 = vld [vmem:[%s2 + $0xe0] sm:$0xff]
        %v266 = vld [vmem:[%s2 + $0xe8] sm:$0xff]
        %v267 = vld [vmem:[%s2 + $0xf0] sm:$0xff]
        %v268 = vld [vmem:[%s2 + $0xf8] sm:$0xff]
        %v269 = vld [vmem:[%s2 + $0x100] sm:$0xff]
        %v270 = vld [vmem:[%s2 + $0x108] sm:$0xff]
        %v271 = vld [vmem:[%s2 + $0x110] sm:$0xff]
        %v272 = vld [vmem:[%s2 + $0x118] sm:$0xff]
        %v273 = vld [vmem:[%s2 + $0x120] sm:$0xff]
        %v274 = vld [vmem:[%s2 + $0x128] sm:$0xff]
        %v275 = vld [vmem:[%s2 + $0x130] sm:$0xff]
        %v276 = vld [vmem:[%s2 + $0x138] sm:$0xff]
        %v277 = vld [vmem:[%s3] sm:$0xff]
        %v278 = vld [vmem:[%s3 + $0x8] sm:$0x3]
        %v281 = vperm.slane %v277, 0
        %v282 = vperm.slane %v277, 1
        %v283 = vperm.slane %v277, 2
        %v284 = vperm.slane %v277, 3
        %v285 = vperm.slane %v277, 4
        %v286 = vperm.slane %v277, 5
        %v287 = vperm.slane %v277, 6
        %v288 = vperm.slane %v277, 7
        %v289 = vperm.slane %v278, 0
        %v290 = vperm.slane %v278, 1
        %vm301 = vcmask 261120
        %v303 = vsel %vm301, %v221, 0
        %v306 = vsel %vm301, %v222, 0
        %v309 = vsel %vm301, %v223, 0
        %v312 = vsel %vm301, %v224, 0
        %v315 = vsel %vm301, %v225, 0
        %v318 = vsel %vm301, %v226, 0
        %v321 = vsel %vm301, %v227, 0
        %v324 = vsel %vm301, %v228, 0
        %v327 = vsel %vm301, %v229, 0
        %v330 = vsel %vm301, %v230, 0
        %v333 = vsel %vm301, %v231, 0
        %v336 = vsel %vm301, %v232, 0
        %v339 = vsel %vm301, %v233, 0
        %v342 = vsel %vm301, %v234, 0
        %v345 = vsel %vm301, %v235, 0
        %v348 = vsel %vm301, %v236, 0
        %350 = vmatpush.msra.mxu0 0.0
        %351 = vmatpush.msra.mxu0 0.0
        %352 = vmatpush.msra.mxu0 0.0
        %353 = vmatpush.msra.mxu0 0.0
        %354 = vmatpush.msra.mxu0 0.0
        %355 = vmatpush.msra.mxu0 0.0
        %356 = vmatpush.msra.mxu0 0.0
        %357 = vmatpush.msra.mxu0 0.0
        %358 = vmatpush.msra.mxu0 0.0
        %359 = vmatpush.msra.mxu0 0.0
        %360 = vmatpush.msra.mxu0 0.0
        %361 = vmatpush.msra.mxu0 0.0
        %362 = vmatpush.msra.mxu0 %v267
        %363 = vmatpush.msra.mxu0 %v257
        %364 = vmatpush.msra.mxu0 %v247
        %365 = vmatpush.msra.mxu0 %v237
        %366 = vmatmul.f32.gmra.mxu0 %v303
        %v367 = vpop.f32.mrf.mxu0
        %v368 = vadd.f32 %v281, %v367
        %369 = vmatmul.f32.gmra.mxu0 %v306
        %v370 = vpop.f32.mrf.mxu0
        %v371 = vadd.f32 %v281, %v370
        %372 = vmatmul.f32.gmra.mxu0 %v309
        %v373 = vpop.f32.mrf.mxu0
        %v374 = vadd.f32 %v281, %v373
        %375 = vmatmul.f32.gmra.mxu0 %v312
        %v376 = vpop.f32.mrf.mxu0
        %v377 = vadd.f32 %v281, %v376
        %378 = vmatmul.f32.gmra.mxu0 %v315
        %v379 = vpop.f32.mrf.mxu0
        %v380 = vadd.f32 %v281, %v379
        %381 = vmatmul.f32.gmra.mxu0 %v318
        %v382 = vpop.f32.mrf.mxu0
        %v383 = vadd.f32 %v281, %v382
        %384 = vmatmul.f32.gmra.mxu0 %v321
        %v385 = vpop.f32.mrf.mxu0
        %v386 = vadd.f32 %v281, %v385
        %387 = vmatmul.f32.gmra.mxu0 %v324
        %v388 = vpop.f32.mrf.mxu0
        %v389 = vadd.f32 %v281, %v388
        %390 = vmatmul.f32.gmra.mxu0 %v327
        %v391 = vpop.f32.mrf.mxu0
        %v392 = vadd.f32 %v281, %v391
        %393 = vmatmul.f32.gmra.mxu0 %v330
        %v394 = vpop.f32.mrf.mxu0
        %v395 = vadd.f32 %v281, %v394
        %396 = vmatmul.f32.gmra.mxu0 %v333
        %v397 = vpop.f32.mrf.mxu0
        %v398 = vadd.f32 %v281, %v397
        %399 = vmatmul.f32.gmra.mxu0 %v336
        %v400 = vpop.f32.mrf.mxu0
        %v401 = vadd.f32 %v281, %v400
        %402 = vmatmul.f32.gmra.mxu0 %v339
        %v403 = vpop.f32.mrf.mxu0
        %v404 = vadd.f32 %v281, %v403
        %405 = vmatmul.f32.gmra.mxu0 %v342
        %v406 = vpop.f32.mrf.mxu0
        %v407 = vadd.f32 %v281, %v406
        %408 = vmatmul.f32.gmra.mxu0 %v345
        %v409 = vpop.f32.mrf.mxu0
        %v410 = vadd.f32 %v281, %v409
        %411 = vmatmul.f32.gmra.mxu0 %v348
        %v412 = vpop.f32.mrf.mxu0
        %v413 = vadd.f32 %v281, %v412
        %414 = vdwg.mxu0
        %415 = vmatpush.msra.mxu0 0.0
        %416 = vmatpush.msra.mxu0 0.0
        %417 = vmatpush.msra.mxu0 0.0
        %418 = vmatpush.msra.mxu0 0.0
        %419 = vmatpush.msra.mxu0 0.0
        %420 = vmatpush.msra.mxu0 0.0
        %421 = vmatpush.msra.mxu0 0.0
        %422 = vmatpush.msra.mxu0 0.0
        %423 = vmatpush.msra.mxu0 0.0
        %424 = vmatpush.msra.mxu0 0.0
        %425 = vmatpush.msra.mxu0 0.0
        %426 = vmatpush.msra.mxu0 0.0
        %427 = vmatpush.msra.mxu0 %v268
        %428 = vmatpush.msra.mxu0 %v258
        %429 = vmatpush.msra.mxu0 %v248
        %430 = vmatpush.msra.mxu0 %v238
        %431 = vmatmul.f32.gmra.mxu0 %v303
        %v432 = vpop.f32.mrf.mxu0
        %v433 = vadd.f32 %v282, %v432
        %434 = vmatmul.f32.gmra.mxu0 %v306
        %v435 = vpop.f32.mrf.mxu0
        %v436 = vadd.f32 %v282, %v435
        %437 = vmatmul.f32.gmra.mxu0 %v309
        %v438 = vpop.f32.mrf.mxu0
        %v439 = vadd.f32 %v282, %v438
        %440 = vmatmul.f32.gmra.mxu0 %v312
        %v441 = vpop.f32.mrf.mxu0
        %v442 = vadd.f32 %v282, %v441
        %443 = vmatmul.f32.gmra.mxu0 %v315
        %v444 = vpop.f32.mrf.mxu0
        %v445 = vadd.f32 %v282, %v444
        %446 = vmatmul.f32.gmra.mxu0 %v318
        %v447 = vpop.f32.mrf.mxu0
        %v448 = vadd.f32 %v282, %v447
        %449 = vmatmul.f32.gmra.mxu0 %v321
        %v450 = vpop.f32.mrf.mxu0
        %v451 = vadd.f32 %v282, %v450
        %452 = vmatmul.f32.gmra.mxu0 %v324
        %v453 = vpop.f32.mrf.mxu0
        %v454 = vadd.f32 %v282, %v453
        %455 = vmatmul.f32.gmra.mxu0 %v327
        %v456 = vpop.f32.mrf.mxu0
        %v457 = vadd.f32 %v282, %v456
        %458 = vmatmul.f32.gmra.mxu0 %v330
        %v459 = vpop.f32.mrf.mxu0
        %v460 = vadd.f32 %v282, %v459
        %461 = vmatmul.f32.gmra.mxu0 %v333
        %v462 = vpop.f32.mrf.mxu0
        %v463 = vadd.f32 %v282, %v462
        %464 = vmatmul.f32.gmra.mxu0 %v336
        %v465 = vpop.f32.mrf.mxu0
        %v466 = vadd.f32 %v282, %v465
        %467 = vmatmul.f32.gmra.mxu0 %v339
        %v468 = vpop.f32.mrf.mxu0
        %v469 = vadd.f32 %v282, %v468
        %470 = vmatmul.f32.gmra.mxu0 %v342
        %v471 = vpop.f32.mrf.mxu0
        %v472 = vadd.f32 %v282, %v471
        %473 = vmatmul.f32.gmra.mxu0 %v345
        %v474 = vpop.f32.mrf.mxu0
        %v475 = vadd.f32 %v282, %v474
        %476 = vmatmul.f32.gmra.mxu0 %v348
        %v477 = vpop.f32.mrf.mxu0
        %v478 = vadd.f32 %v282, %v477
        %479 = vdwg.mxu0
        %480 = vmatpush.msra.mxu0 0.0
        %481 = vmatpush.msra.mxu0 0.0
        %482 = vmatpush.msra.mxu0 0.0
        %483 = vmatpush.msra.mxu0 0.0
        %484 = vmatpush.msra.mxu0 0.0
        %485 = vmatpush.msra.mxu0 0.0
        %486 = vmatpush.msra.mxu0 0.0
        %487 = vmatpush.msra.mxu0 0.0
        %488 = vmatpush.msra.mxu0 0.0
        %489 = vmatpush.msra.mxu0 0.0
        %490 = vmatpush.msra.mxu0 0.0
        %491 = vmatpush.msra.mxu0 0.0
        %492 = vmatpush.msra.mxu0 %v269
        %493 = vmatpush.msra.mxu0 %v259
        %494 = vmatpush.msra.mxu0 %v249
        %495 = vmatpush.msra.mxu0 %v239
        %496 = vmatmul.f32.gmra.mxu0 %v303
        %v497 = vpop.f32.mrf.mxu0
        %v498 = vadd.f32 %v283, %v497
        %499 = vmatmul.f32.gmra.mxu0 %v306
        %v500 = vpop.f32.mrf.mxu0
        %v501 = vadd.f32 %v283, %v500
        %502 = vmatmul.f32.gmra.mxu0 %v309
        %v503 = vpop.f32.mrf.mxu0
        %v504 = vadd.f32 %v283, %v503
        %505 = vmatmul.f32.gmra.mxu0 %v312
        %v506 = vpop.f32.mrf.mxu0
        %v507 = vadd.f32 %v283, %v506
        %508 = vmatmul.f32.gmra.mxu0 %v315
        %v509 = vpop.f32.mrf.mxu0
        %v510 = vadd.f32 %v283, %v509
        %511 = vmatmul.f32.gmra.mxu0 %v318
        %v512 = vpop.f32.mrf.mxu0
        %v513 = vadd.f32 %v283, %v512
        %514 = vmatmul.f32.gmra.mxu0 %v321
        %v515 = vpop.f32.mrf.mxu0
        %v516 = vadd.f32 %v283, %v515
        %517 = vmatmul.f32.gmra.mxu0 %v324
        %v518 = vpop.f32.mrf.mxu0
        %v519 = vadd.f32 %v283, %v518
        %520 = vmatmul.f32.gmra.mxu0 %v327
        %v521 = vpop.f32.mrf.mxu0
        %v522 = vadd.f32 %v283, %v521
        %523 = vmatmul.f32.gmra.mxu0 %v330
        %v524 = vpop.f32.mrf.mxu0
        %v525 = vadd.f32 %v283, %v524
        %526 = vmatmul.f32.gmra.mxu0 %v333
        %v527 = vpop.f32.mrf.mxu0
        %v528 = vadd.f32 %v283, %v527
        %529 = vmatmul.f32.gmra.mxu0 %v336
        %v530 = vpop.f32.mrf.mxu0
        %v531 = vadd.f32 %v283, %v530
        %532 = vmatmul.f32.gmra.mxu0 %v339
        %v533 = vpop.f32.mrf.mxu0
        %v534 = vadd.f32 %v283, %v533
        %535 = vmatmul.f32.gmra.mxu0 %v342
        %v536 = vpop.f32.mrf.mxu0
        %v537 = vadd.f32 %v283, %v536
        %538 = vmatmul.f32.gmra.mxu0 %v345
        %v539 = vpop.f32.mrf.mxu0
        %v540 = vadd.f32 %v283, %v539
        %541 = vmatmul.f32.gmra.mxu0 %v348
        %v542 = vpop.f32.mrf.mxu0
        %v543 = vadd.f32 %v283, %v542
        %544 = vdwg.mxu0
        %545 = vmatpush.msra.mxu0 0.0
        %546 = vmatpush.msra.mxu0 0.0
        %547 = vmatpush.msra.mxu0 0.0
        %548 = vmatpush.msra.mxu0 0.0
        %549 = vmatpush.msra.mxu0 0.0
        %550 = vmatpush.msra.mxu0 0.0
        %551 = vmatpush.msra.mxu0 0.0
        %552 = vmatpush.msra.mxu0 0.0
        %553 = vmatpush.msra.mxu0 0.0
        %554 = vmatpush.msra.mxu0 0.0
        %555 = vmatpush.msra.mxu0 0.0
        %556 = vmatpush.msra.mxu0 0.0
        %557 = vmatpush.msra.mxu0 %v270
        %558 = vmatpush.msra.mxu0 %v260
        %559 = vmatpush.msra.mxu0 %v250
        %560 = vmatpush.msra.mxu0 %v240
        %561 = vmatmul.f32.gmra.mxu0 %v303
        %v562 = vpop.f32.mrf.mxu0
        %v563 = vadd.f32 %v284, %v562
        %564 = vmatmul.f32.gmra.mxu0 %v306
        %v565 = vpop.f32.mrf.mxu0
        %v566 = vadd.f32 %v284, %v565
        %567 = vmatmul.f32.gmra.mxu0 %v309
        %v568 = vpop.f32.mrf.mxu0
        %v569 = vadd.f32 %v284, %v568
        %570 = vmatmul.f32.gmra.mxu0 %v312
        %v571 = vpop.f32.mrf.mxu0
        %v572 = vadd.f32 %v284, %v571
        %573 = vmatmul.f32.gmra.mxu0 %v315
        %v574 = vpop.f32.mrf.mxu0
        %v575 = vadd.f32 %v284, %v574
        %576 = vmatmul.f32.gmra.mxu0 %v318
        %v577 = vpop.f32.mrf.mxu0
        %v578 = vadd.f32 %v284, %v577
        %579 = vmatmul.f32.gmra.mxu0 %v321
        %v580 = vpop.f32.mrf.mxu0
        %v581 = vadd.f32 %v284, %v580
        %582 = vmatmul.f32.gmra.mxu0 %v324
        %v583 = vpop.f32.mrf.mxu0
        %v584 = vadd.f32 %v284, %v583
        %585 = vmatmul.f32.gmra.mxu0 %v327
        %v586 = vpop.f32.mrf.mxu0
        %v587 = vadd.f32 %v284, %v586
        %588 = vmatmul.f32.gmra.mxu0 %v330
        %v589 = vpop.f32.mrf.mxu0
        %v590 = vadd.f32 %v284, %v589
        %591 = vmatmul.f32.gmra.mxu0 %v333
        %v592 = vpop.f32.mrf.mxu0
        %v593 = vadd.f32 %v284, %v592
        %594 = vmatmul.f32.gmra.mxu0 %v336
        %v595 = vpop.f32.mrf.mxu0
        %v596 = vadd.f32 %v284, %v595
        %597 = vmatmul.f32.gmra.mxu0 %v339
        %v598 = vpop.f32.mrf.mxu0
        %v599 = vadd.f32 %v284, %v598
        %600 = vmatmul.f32.gmra.mxu0 %v342
        %v601 = vpop.f32.mrf.mxu0
        %v602 = vadd.f32 %v284, %v601
        %603 = vmatmul.f32.gmra.mxu0 %v345
        %v604 = vpop.f32.mrf.mxu0
        %v605 = vadd.f32 %v284, %v604
        %606 = vmatmul.f32.gmra.mxu0 %v348
        %v607 = vpop.f32.mrf.mxu0
        %v608 = vadd.f32 %v284, %v607
        %609 = vdwg.mxu0
        %610 = vmatpush.msra.mxu0 0.0
        %611 = vmatpush.msra.mxu0 0.0
        %612 = vmatpush.msra.mxu0 0.0
        %613 = vmatpush.msra.mxu0 0.0
        %614 = vmatpush.msra.mxu0 0.0
        %615 = vmatpush.msra.mxu0 0.0
        %616 = vmatpush.msra.mxu0 0.0
        %617 = vmatpush.msra.mxu0 0.0
        %618 = vmatpush.msra.mxu0 0.0
        %619 = vmatpush.msra.mxu0 0.0
        %620 = vmatpush.msra.mxu0 0.0
        %621 = vmatpush.msra.mxu0 0.0
        %622 = vmatpush.msra.mxu0 %v271
        %623 = vmatpush.msra.mxu0 %v261
        %624 = vmatpush.msra.mxu0 %v251
        %625 = vmatpush.msra.mxu0 %v241
        %626 = vmatmul.f32.gmra.mxu0 %v303
        %v627 = vpop.f32.mrf.mxu0
        %v628 = vadd.f32 %v285, %v627
        %629 = vmatmul.f32.gmra.mxu0 %v306
        %v630 = vpop.f32.mrf.mxu0
        %v631 = vadd.f32 %v285, %v630
        %632 = vmatmul.f32.gmra.mxu0 %v309
        %v633 = vpop.f32.mrf.mxu0
        %v634 = vadd.f32 %v285, %v633
        %635 = vmatmul.f32.gmra.mxu0 %v312
        %v636 = vpop.f32.mrf.mxu0
        %v637 = vadd.f32 %v285, %v636
        %638 = vmatmul.f32.gmra.mxu0 %v315
        %v639 = vpop.f32.mrf.mxu0
        %v640 = vadd.f32 %v285, %v639
        %641 = vmatmul.f32.gmra.mxu0 %v318
        %v642 = vpop.f32.mrf.mxu0
        %v643 = vadd.f32 %v285, %v642
        %644 = vmatmul.f32.gmra.mxu0 %v321
        %v645 = vpop.f32.mrf.mxu0
        %v646 = vadd.f32 %v285, %v645
        %647 = vmatmul.f32.gmra.mxu0 %v324
        %v648 = vpop.f32.mrf.mxu0
        %v649 = vadd.f32 %v285, %v648
        %650 = vmatmul.f32.gmra.mxu0 %v327
        %v651 = vpop.f32.mrf.mxu0
        %v652 = vadd.f32 %v285, %v651
        %653 = vmatmul.f32.gmra.mxu0 %v330
        %v654 = vpop.f32.mrf.mxu0
        %v655 = vadd.f32 %v285, %v654
        %656 = vmatmul.f32.gmra.mxu0 %v333
        %v657 = vpop.f32.mrf.mxu0
        %v658 = vadd.f32 %v285, %v657
        %659 = vmatmul.f32.gmra.mxu0 %v336
        %v660 = vpop.f32.mrf.mxu0
        %v661 = vadd.f32 %v285, %v660
        %662 = vmatmul.f32.gmra.mxu0 %v339
        %v663 = vpop.f32.mrf.mxu0
        %v664 = vadd.f32 %v285, %v663
        %665 = vmatmul.f32.gmra.mxu0 %v342
        %v666 = vpop.f32.mrf.mxu0
        %v667 = vadd.f32 %v285, %v666
        %668 = vmatmul.f32.gmra.mxu0 %v345
        %v669 = vpop.f32.mrf.mxu0
        %v670 = vadd.f32 %v285, %v669
        %671 = vmatmul.f32.gmra.mxu0 %v348
        %v672 = vpop.f32.mrf.mxu0
        %v673 = vadd.f32 %v285, %v672
        %674 = vdwg.mxu0
        %675 = vmatpush.msra.mxu0 0.0
        %676 = vmatpush.msra.mxu0 0.0
        %677 = vmatpush.msra.mxu0 0.0
        %678 = vmatpush.msra.mxu0 0.0
        %679 = vmatpush.msra.mxu0 0.0
        %680 = vmatpush.msra.mxu0 0.0
        %681 = vmatpush.msra.mxu0 0.0
        %682 = vmatpush.msra.mxu0 0.0
        %683 = vmatpush.msra.mxu0 0.0
        %684 = vmatpush.msra.mxu0 0.0
        %685 = vmatpush.msra.mxu0 0.0
        %686 = vmatpush.msra.mxu0 0.0
        %687 = vmatpush.msra.mxu0 %v272
        %688 = vmatpush.msra.mxu0 %v262
        %689 = vmatpush.msra.mxu0 %v252
        %690 = vmatpush.msra.mxu0 %v242
        %691 = vmatmul.f32.gmra.mxu0 %v303
        %v692 = vpop.f32.mrf.mxu0
        %v693 = vadd.f32 %v286, %v692
        %694 = vmatmul.f32.gmra.mxu0 %v306
        %v695 = vpop.f32.mrf.mxu0
        %v696 = vadd.f32 %v286, %v695
        %697 = vmatmul.f32.gmra.mxu0 %v309
        %v698 = vpop.f32.mrf.mxu0
        %v699 = vadd.f32 %v286, %v698
        %700 = vmatmul.f32.gmra.mxu0 %v312
        %v701 = vpop.f32.mrf.mxu0
        %v702 = vadd.f32 %v286, %v701
        %703 = vmatmul.f32.gmra.mxu0 %v315
        %v704 = vpop.f32.mrf.mxu0
        %v705 = vadd.f32 %v286, %v704
        %706 = vmatmul.f32.gmra.mxu0 %v318
        %v707 = vpop.f32.mrf.mxu0
        %v708 = vadd.f32 %v286, %v707
        %709 = vmatmul.f32.gmra.mxu0 %v321
        %v710 = vpop.f32.mrf.mxu0
        %v711 = vadd.f32 %v286, %v710
        %712 = vmatmul.f32.gmra.mxu0 %v324
        %v713 = vpop.f32.mrf.mxu0
        %v714 = vadd.f32 %v286, %v713
        %715 = vmatmul.f32.gmra.mxu0 %v327
        %v716 = vpop.f32.mrf.mxu0
        %v717 = vadd.f32 %v286, %v716
        %718 = vmatmul.f32.gmra.mxu0 %v330
        %v719 = vpop.f32.mrf.mxu0
        %v720 = vadd.f32 %v286, %v719
        %721 = vmatmul.f32.gmra.mxu0 %v333
        %v722 = vpop.f32.mrf.mxu0
        %v723 = vadd.f32 %v286, %v722
        %724 = vmatmul.f32.gmra.mxu0 %v336
        %v725 = vpop.f32.mrf.mxu0
        %v726 = vadd.f32 %v286, %v725
        %727 = vmatmul.f32.gmra.mxu0 %v339
        %v728 = vpop.f32.mrf.mxu0
        %v729 = vadd.f32 %v286, %v728
        %730 = vmatmul.f32.gmra.mxu0 %v342
        %v731 = vpop.f32.mrf.mxu0
        %v732 = vadd.f32 %v286, %v731
        %733 = vmatmul.f32.gmra.mxu0 %v345
        %v734 = vpop.f32.mrf.mxu0
        %v735 = vadd.f32 %v286, %v734
        %736 = vmatmul.f32.gmra.mxu0 %v348
        %v737 = vpop.f32.mrf.mxu0
        %v738 = vadd.f32 %v286, %v737
        %739 = vdwg.mxu0
        %740 = vmatpush.msra.mxu0 0.0
        %741 = vmatpush.msra.mxu0 0.0
        %742 = vmatpush.msra.mxu0 0.0
        %743 = vmatpush.msra.mxu0 0.0
        %744 = vmatpush.msra.mxu0 0.0
        %745 = vmatpush.msra.mxu0 0.0
        %746 = vmatpush.msra.mxu0 0.0
        %747 = vmatpush.msra.mxu0 0.0
        %748 = vmatpush.msra.mxu0 0.0
        %749 = vmatpush.msra.mxu0 0.0
        %750 = vmatpush.msra.mxu0 0.0
        %751 = vmatpush.msra.mxu0 0.0
        %752 = vmatpush.msra.mxu0 %v273
        %753 = vmatpush.msra.mxu0 %v263
        %754 = vmatpush.msra.mxu0 %v253
        %755 = vmatpush.msra.mxu0 %v243
        %756 = vmatmul.f32.gmra.mxu0 %v303
        %v757 = vpop.f32.mrf.mxu0
        %v758 = vadd.f32 %v287, %v757
        %759 = vmatmul.f32.gmra.mxu0 %v306
        %v760 = vpop.f32.mrf.mxu0
        %v761 = vadd.f32 %v287, %v760
        %762 = vmatmul.f32.gmra.mxu0 %v309
        %v763 = vpop.f32.mrf.mxu0
        %v764 = vadd.f32 %v287, %v763
        %765 = vmatmul.f32.gmra.mxu0 %v312
        %v766 = vpop.f32.mrf.mxu0
        %v767 = vadd.f32 %v287, %v766
        %768 = vmatmul.f32.gmra.mxu0 %v315
        %v769 = vpop.f32.mrf.mxu0
        %v770 = vadd.f32 %v287, %v769
        %771 = vmatmul.f32.gmra.mxu0 %v318
        %v772 = vpop.f32.mrf.mxu0
        %v773 = vadd.f32 %v287, %v772
        %774 = vmatmul.f32.gmra.mxu0 %v321
        %v775 = vpop.f32.mrf.mxu0
        %v776 = vadd.f32 %v287, %v775
        %777 = vmatmul.f32.gmra.mxu0 %v324
        %v778 = vpop.f32.mrf.mxu0
        %v779 = vadd.f32 %v287, %v778
        %780 = vmatmul.f32.gmra.mxu0 %v327
        %v781 = vpop.f32.mrf.mxu0
        %v782 = vadd.f32 %v287, %v781
        %783 = vmatmul.f32.gmra.mxu0 %v330
        %v784 = vpop.f32.mrf.mxu0
        %v785 = vadd.f32 %v287, %v784
        %786 = vmatmul.f32.gmra.mxu0 %v333
        %v787 = vpop.f32.mrf.mxu0
        %v788 = vadd.f32 %v287, %v787
        %789 = vmatmul.f32.gmra.mxu0 %v336
        %v790 = vpop.f32.mrf.mxu0
        %v791 = vadd.f32 %v287, %v790
        %792 = vmatmul.f32.gmra.mxu0 %v339
        %v793 = vpop.f32.mrf.mxu0
        %v794 = vadd.f32 %v287, %v793
        %795 = vmatmul.f32.gmra.mxu0 %v342
        %v796 = vpop.f32.mrf.mxu0
        %v797 = vadd.f32 %v287, %v796
        %798 = vmatmul.f32.gmra.mxu0 %v345
        %v799 = vpop.f32.mrf.mxu0
        %v800 = vadd.f32 %v287, %v799
        %801 = vmatmul.f32.gmra.mxu0 %v348
        %v802 = vpop.f32.mrf.mxu0
        %v803 = vadd.f32 %v287, %v802
        %804 = vdwg.mxu0
        %805 = vmatpush.msra.mxu0 0.0
        %806 = vmatpush.msra.mxu0 0.0
        %807 = vmatpush.msra.mxu0 0.0
        %808 = vmatpush.msra.mxu0 0.0
        %809 = vmatpush.msra.mxu0 0.0
        %810 = vmatpush.msra.mxu0 0.0
        %811 = vmatpush.msra.mxu0 0.0
        %812 = vmatpush.msra.mxu0 0.0
        %813 = vmatpush.msra.mxu0 0.0
        %814 = vmatpush.msra.mxu0 0.0
        %815 = vmatpush.msra.mxu0 0.0
        %816 = vmatpush.msra.mxu0 0.0
        %817 = vmatpush.msra.mxu0 %v274
        %818 = vmatpush.msra.mxu0 %v264
        %819 = vmatpush.msra.mxu0 %v254
        %820 = vmatpush.msra.mxu0 %v244
        %821 = vmatmul.f32.gmra.mxu0 %v303
        %v822 = vpop.f32.mrf.mxu0
        %v823 = vadd.f32 %v288, %v822
        %824 = vmatmul.f32.gmra.mxu0 %v306
        %v825 = vpop.f32.mrf.mxu0
        %v826 = vadd.f32 %v288, %v825
        %827 = vmatmul.f32.gmra.mxu0 %v309
        %v828 = vpop.f32.mrf.mxu0
        %v829 = vadd.f32 %v288, %v828
        %830 = vmatmul.f32.gmra.mxu0 %v312
        %v831 = vpop.f32.mrf.mxu0
        %v832 = vadd.f32 %v288, %v831
        %833 = vmatmul.f32.gmra.mxu0 %v315
        %v834 = vpop.f32.mrf.mxu0
        %v835 = vadd.f32 %v288, %v834
        %836 = vmatmul.f32.gmra.mxu0 %v318
        %v837 = vpop.f32.mrf.mxu0
        %v838 = vadd.f32 %v288, %v837
        %839 = vmatmul.f32.gmra.mxu0 %v321
        %v840 = vpop.f32.mrf.mxu0
        %v841 = vadd.f32 %v288, %v840
        %842 = vmatmul.f32.gmra.mxu0 %v324
        %v843 = vpop.f32.mrf.mxu0
        %v844 = vadd.f32 %v288, %v843
        %845 = vmatmul.f32.gmra.mxu0 %v327
        %v846 = vpop.f32.mrf.mxu0
        %v847 = vadd.f32 %v288, %v846
        %848 = vmatmul.f32.gmra.mxu0 %v330
        %v849 = vpop.f32.mrf.mxu0
        %v850 = vadd.f32 %v288, %v849
        %851 = vmatmul.f32.gmra.mxu0 %v333
        %v852 = vpop.f32.mrf.mxu0
        %v853 = vadd.f32 %v288, %v852
        %854 = vmatmul.f32.gmra.mxu0 %v336
        %v855 = vpop.f32.mrf.mxu0
        %v856 = vadd.f32 %v288, %v855
        %857 = vmatmul.f32.gmra.mxu0 %v339
        %v858 = vpop.f32.mrf.mxu0
        %v859 = vadd.f32 %v288, %v858
        %860 = vmatmul.f32.gmra.mxu0 %v342
        %v861 = vpop.f32.mrf.mxu0
        %v862 = vadd.f32 %v288, %v861
        %863 = vmatmul.f32.gmra.mxu0 %v345
        %v864 = vpop.f32.mrf.mxu0
        %v865 = vadd.f32 %v288, %v864
        %866 = vmatmul.f32.gmra.mxu0 %v348
        %v867 = vpop.f32.mrf.mxu0
        %v868 = vadd.f32 %v288, %v867
        %869 = vdwg.mxu0
        %870 = vmatpush.msra.mxu0 0.0
        %871 = vmatpush.msra.mxu0 0.0
        %872 = vmatpush.msra.mxu0 0.0
        %873 = vmatpush.msra.mxu0 0.0
        %874 = vmatpush.msra.mxu0 0.0
        %875 = vmatpush.msra.mxu0 0.0
        %876 = vmatpush.msra.mxu0 0.0
        %877 = vmatpush.msra.mxu0 0.0
        %878 = vmatpush.msra.mxu0 0.0
        %879 = vmatpush.msra.mxu0 0.0
        %880 = vmatpush.msra.mxu0 0.0
        %881 = vmatpush.msra.mxu0 0.0
        %882 = vmatpush.msra.mxu0 %v275
        %883 = vmatpush.msra.mxu0 %v265
        %884 = vmatpush.msra.mxu0 %v255
        %885 = vmatpush.msra.mxu0 %v245
        %886 = vmatmul.f32.gmra.mxu0 %v303
        %v887 = vpop.f32.mrf.mxu0
        %v888 = vadd.f32 %v289, %v887
        %889 = vmatmul.f32.gmra.mxu0 %v306
        %v890 = vpop.f32.mrf.mxu0
        %v891 = vadd.f32 %v289, %v890
        %892 = vmatmul.f32.gmra.mxu0 %v309
        %v893 = vpop.f32.mrf.mxu0
        %v894 = vadd.f32 %v289, %v893
        %895 = vmatmul.f32.gmra.mxu0 %v312
        %v896 = vpop.f32.mrf.mxu0
        %v897 = vadd.f32 %v289, %v896
        %898 = vmatmul.f32.gmra.mxu0 %v315
        %v899 = vpop.f32.mrf.mxu0
        %v900 = vadd.f32 %v289, %v899
        %901 = vmatmul.f32.gmra.mxu0 %v318
        %v902 = vpop.f32.mrf.mxu0
        %v903 = vadd.f32 %v289, %v902
        %904 = vmatmul.f32.gmra.mxu0 %v321
        %v905 = vpop.f32.mrf.mxu0
        %v906 = vadd.f32 %v289, %v905
        %907 = vmatmul.f32.gmra.mxu0 %v324
        %v908 = vpop.f32.mrf.mxu0
        %v909 = vadd.f32 %v289, %v908
        %910 = vmatmul.f32.gmra.mxu0 %v327
        %v911 = vpop.f32.mrf.mxu0
        %v912 = vadd.f32 %v289, %v911
        %913 = vmatmul.f32.gmra.mxu0 %v330
        %v914 = vpop.f32.mrf.mxu0
        %v915 = vadd.f32 %v289, %v914
        %916 = vmatmul.f32.gmra.mxu0 %v333
        %v917 = vpop.f32.mrf.mxu0
        %v918 = vadd.f32 %v289, %v917
        %919 = vmatmul.f32.gmra.mxu0 %v336
        %v920 = vpop.f32.mrf.mxu0
        %v921 = vadd.f32 %v289, %v920
        %922 = vmatmul.f32.gmra.mxu0 %v339
        %v923 = vpop.f32.mrf.mxu0
        %v924 = vadd.f32 %v289, %v923
        %925 = vmatmul.f32.gmra.mxu0 %v342
        %v926 = vpop.f32.mrf.mxu0
        %v927 = vadd.f32 %v289, %v926
        %928 = vmatmul.f32.gmra.mxu0 %v345
        %v929 = vpop.f32.mrf.mxu0
        %v930 = vadd.f32 %v289, %v929
        %931 = vmatmul.f32.gmra.mxu0 %v348
        %v932 = vpop.f32.mrf.mxu0
        %v933 = vadd.f32 %v289, %v932
        %934 = vdwg.mxu0
        %935 = vmatpush.msra.mxu0 0.0
        %936 = vmatpush.msra.mxu0 0.0
        %937 = vmatpush.msra.mxu0 0.0
        %938 = vmatpush.msra.mxu0 0.0
        %939 = vmatpush.msra.mxu0 0.0
        %940 = vmatpush.msra.mxu0 0.0
        %941 = vmatpush.msra.mxu0 0.0
        %942 = vmatpush.msra.mxu0 0.0
        %943 = vmatpush.msra.mxu0 0.0
        %944 = vmatpush.msra.mxu0 0.0
        %945 = vmatpush.msra.mxu0 0.0
        %946 = vmatpush.msra.mxu0 0.0
        %947 = vmatpush.msra.mxu0 %v276
        %948 = vmatpush.msra.mxu0 %v266
        %949 = vmatpush.msra.mxu0 %v256
        %950 = vmatpush.msra.mxu0 %v246
        %951 = vmatmul.f32.gmra.mxu0 %v303
        %v952 = vpop.f32.mrf.mxu0
        %v953 = vadd.f32 %v290, %v952
        %954 = vmatmul.f32.gmra.mxu0 %v306
        %v955 = vpop.f32.mrf.mxu0
        %v956 = vadd.f32 %v290, %v955
        %957 = vmatmul.f32.gmra.mxu0 %v309
        %v958 = vpop.f32.mrf.mxu0
        %v959 = vadd.f32 %v290, %v958
        %960 = vmatmul.f32.gmra.mxu0 %v312
        %v961 = vpop.f32.mrf.mxu0
        %v962 = vadd.f32 %v290, %v961
        %963 = vmatmul.f32.gmra.mxu0 %v315
        %v964 = vpop.f32.mrf.mxu0
        %v965 = vadd.f32 %v290, %v964
        %966 = vmatmul.f32.gmra.mxu0 %v318
        %v967 = vpop.f32.mrf.mxu0
        %v968 = vadd.f32 %v290, %v967
        %969 = vmatmul.f32.gmra.mxu0 %v321
        %v970 = vpop.f32.mrf.mxu0
        %v971 = vadd.f32 %v290, %v970
        %972 = vmatmul.f32.gmra.mxu0 %v324
        %v973 = vpop.f32.mrf.mxu0
        %v974 = vadd.f32 %v290, %v973
        %975 = vmatmul.f32.gmra.mxu0 %v327
        %v976 = vpop.f32.mrf.mxu0
        %v977 = vadd.f32 %v290, %v976
        %978 = vmatmul.f32.gmra.mxu0 %v330
        %v979 = vpop.f32.mrf.mxu0
        %v980 = vadd.f32 %v290, %v979
        %981 = vmatmul.f32.gmra.mxu0 %v333
        %v982 = vpop.f32.mrf.mxu0
        %v983 = vadd.f32 %v290, %v982
        %984 = vmatmul.f32.gmra.mxu0 %v336
        %v985 = vpop.f32.mrf.mxu0
        %v986 = vadd.f32 %v290, %v985
        %987 = vmatmul.f32.gmra.mxu0 %v339
        %v988 = vpop.f32.mrf.mxu0
        %v989 = vadd.f32 %v290, %v988
        %990 = vmatmul.f32.gmra.mxu0 %v342
        %v991 = vpop.f32.mrf.mxu0
        %v992 = vadd.f32 %v290, %v991
        %993 = vmatmul.f32.gmra.mxu0 %v345
        %v994 = vpop.f32.mrf.mxu0
        %v995 = vadd.f32 %v290, %v994
        %996 = vmatmul.f32.gmra.mxu0 %v348
        %v997 = vpop.f32.mrf.mxu0
        %v998 = vadd.f32 %v290, %v997
        %999 = vdwg.mxu0
        %v1000 = vld [vmem:[%s212] sm:$0xff]
        %v1001 = vld [vmem:[%s212 + $0x8] sm:$0xff]
        %v1002 = vld [vmem:[%s212 + $0x10] sm:$0xff]
        %v1003 = vld [vmem:[%s212 + $0x18] sm:$0xff]
        %v1004 = vld [vmem:[%s212 + $0x20] sm:$0xff]
        %v1005 = vld [vmem:[%s212 + $0x28] sm:$0xff]
        %v1006 = vld [vmem:[%s212 + $0x30] sm:$0xff]
        %v1007 = vld [vmem:[%s212 + $0x38] sm:$0xff]
        %v1008 = vld [vmem:[%s212 + $0x40] sm:$0xff]
        %v1009 = vld [vmem:[%s212 + $0x48] sm:$0xff]
        %v1010 = vld [vmem:[%s212 + $0x50] sm:$0xff]
        %v1011 = vld [vmem:[%s212 + $0x58] sm:$0xff]
        %v1012 = vld [vmem:[%s212 + $0x60] sm:$0xff]
        %v1013 = vld [vmem:[%s212 + $0x68] sm:$0xff]
        %v1014 = vld [vmem:[%s212 + $0x70] sm:$0xff]
        %v1015 = vld [vmem:[%s212 + $0x78] sm:$0xff]
        %vm1016 = vcmp.eq.s32.totalorder %v1000, 0
        %vm1017 = vcmp.eq.s32.totalorder %v1001, 0
        %vm1018 = vcmp.eq.s32.totalorder %v1002, 0
        %vm1019 = vcmp.eq.s32.totalorder %v1003, 0
        %vm1020 = vcmp.eq.s32.totalorder %v1004, 0
        %vm1021 = vcmp.eq.s32.totalorder %v1005, 0
        %vm1022 = vcmp.eq.s32.totalorder %v1006, 0
        %vm1023 = vcmp.eq.s32.totalorder %v1007, 0
        %vm1024 = vcmp.eq.s32.totalorder %v1008, 0
        %vm1025 = vcmp.eq.s32.totalorder %v1009, 0
        %vm1026 = vcmp.eq.s32.totalorder %v1010, 0
        %vm1027 = vcmp.eq.s32.totalorder %v1011, 0
        %vm1028 = vcmp.eq.s32.totalorder %v1012, 0
        %vm1029 = vcmp.eq.s32.totalorder %v1013, 0
        %vm1030 = vcmp.eq.s32.totalorder %v1014, 0
        %vm1031 = vcmp.eq.s32.totalorder %v1015, 0
        %v1032 = vsel %vm1016, 1, 0
        %v1033 = vsel %vm1017, 1, 0
        %v1034 = vsel %vm1018, 1, 0
        %v1035 = vsel %vm1019, 1, 0
        %v1036 = vsel %vm1020, 1, 0
        %v1037 = vsel %vm1021, 1, 0
        %v1038 = vsel %vm1022, 1, 0
        %v1039 = vsel %vm1023, 1, 0
        %v1040 = vsel %vm1024, 1, 0
        %v1041 = vsel %vm1025, 1, 0
        %v1042 = vsel %vm1026, 1, 0
        %v1043 = vsel %vm1027, 1, 0
        %v1044 = vsel %vm1028, 1, 0
        %v1045 = vsel %vm1029, 1, 0
        %v1046 = vsel %vm1030, 1, 0
        %v1047 = vsel %vm1031, 1, 0
        %v1048 = vcvt.s32.f32 %v1032
        %v1049 = vcvt.s32.f32 %v1033
        %v1050 = vcvt.s32.f32 %v1034
        %v1051 = vcvt.s32.f32 %v1035
        %v1052 = vcvt.s32.f32 %v1036
        %v1053 = vcvt.s32.f32 %v1037
        %v1054 = vcvt.s32.f32 %v1038
        %v1055 = vcvt.s32.f32 %v1039
        %v1056 = vcvt.s32.f32 %v1040
        %v1057 = vcvt.s32.f32 %v1041
        %v1058 = vcvt.s32.f32 %v1042
        %v1059 = vcvt.s32.f32 %v1043
        %v1060 = vcvt.s32.f32 %v1044
        %v1061 = vcvt.s32.f32 %v1045
        %v1062 = vcvt.s32.f32 %v1046
        %v1063 = vcvt.s32.f32 %v1047
        %1065 = vset.pattern.permute.xlu0 0
        %1066 = vperm.xlu0 %1065, %v1048
        %v1067 = vpop.permute.xlu0 %1066
        %1070 = vset.pattern.permute.xlu0 0
        %1071 = vperm.xlu0 %1070, %v1049
        %v1072 = vpop.permute.xlu0 %1071
        %1075 = vset.pattern.permute.xlu0 0
        %1076 = vperm.xlu0 %1075, %v1050
        %v1077 = vpop.permute.xlu0 %1076
        %1080 = vset.pattern.permute.xlu0 0
        %1081 = vperm.xlu0 %1080, %v1051
        %v1082 = vpop.permute.xlu0 %1081
        %1085 = vset.pattern.permute.xlu0 0
        %1086 = vperm.xlu0 %1085, %v1052
        %v1087 = vpop.permute.xlu0 %1086
        %1090 = vset.pattern.permute.xlu0 0
        %1091 = vperm.xlu0 %1090, %v1053
        %v1092 = vpop.permute.xlu0 %1091
        %1095 = vset.pattern.permute.xlu0 0
        %1096 = vperm.xlu0 %1095, %v1054
        %v1097 = vpop.permute.xlu0 %1096
        %1100 = vset.pattern.permute.xlu0 0
        %1101 = vperm.xlu0 %1100, %v1055
        %v1102 = vpop.permute.xlu0 %1101
        %1105 = vset.pattern.permute.xlu0 0
        %1106 = vperm.xlu0 %1105, %v1056
        %v1107 = vpop.permute.xlu0 %1106
        %1110 = vset.pattern.permute.xlu0 0
        %1111 = vperm.xlu0 %1110, %v1057
        %v1112 = vpop.permute.xlu0 %1111
        %1115 = vset.pattern.permute.xlu0 0
        %1116 = vperm.xlu0 %1115, %v1058
        %v1117 = vpop.permute.xlu0 %1116
        %1120 = vset.pattern.permute.xlu0 0
        %1121 = vperm.xlu0 %1120, %v1059
        %v1122 = vpop.permute.xlu0 %1121
        %1125 = vset.pattern.permute.xlu0 0
        %1126 = vperm.xlu0 %1125, %v1060
        %v1127 = vpop.permute.xlu0 %1126
        %1130 = vset.pattern.permute.xlu0 0
        %1131 = vperm.xlu0 %1130, %v1061
        %v1132 = vpop.permute.xlu0 %1131
        %1135 = vset.pattern.permute.xlu0 0
        %1136 = vperm.xlu0 %1135, %v1062
        %v1137 = vpop.permute.xlu0 %1136
        %1140 = vset.pattern.permute.xlu0 0
        %1141 = vperm.xlu0 %1140, %v1063
        %v1142 = vpop.permute.xlu0 %1141
        %v1144 = vmul.f32 %v368, %v1067
        %v1145 = vmul.f32 %v433, %v1067
        %v1146 = vmul.f32 %v371, %v1072
        %v1147 = vmul.f32 %v436, %v1072
        %v1148 = vmul.f32 %v374, %v1077
        %v1149 = vmul.f32 %v439, %v1077
        %v1150 = vmul.f32 %v377, %v1082
        %v1151 = vmul.f32 %v442, %v1082
        %v1152 = vmul.f32 %v380, %v1087
        %v1153 = vmul.f32 %v445, %v1087
        %v1154 = vmul.f32 %v383, %v1092
        %v1155 = vmul.f32 %v448, %v1092
        %v1156 = vmul.f32 %v386, %v1097
        %v1157 = vmul.f32 %v451, %v1097
        %v1158 = vmul.f32 %v389, %v1102
        %v1159 = vmul.f32 %v454, %v1102
        %v1160 = vmul.f32 %v392, %v1107
        %v1161 = vmul.f32 %v457, %v1107
        %v1162 = vmul.f32 %v395, %v1112
        %v1163 = vmul.f32 %v460, %v1112
        %v1164 = vmul.f32 %v398, %v1117
        %v1165 = vmul.f32 %v463, %v1117
        %v1166 = vmul.f32 %v401, %v1122
        %v1167 = vmul.f32 %v466, %v1122
        %v1168 = vmul.f32 %v404, %v1127
        %v1169 = vmul.f32 %v469, %v1127
        %v1170 = vmul.f32 %v407, %v1132
        %v1171 = vmul.f32 %v472, %v1132
        %v1172 = vmul.f32 %v410, %v1137
        %v1173 = vmul.f32 %v475, %v1137
        %v1174 = vmul.f32 %v413, %v1142
        %v1175 = vmul.f32 %v478, %v1142
        %vm1176 = vcmp.eq.s32.totalorder %v1000, 1
        %vm1177 = vcmp.eq.s32.totalorder %v1001, 1
        %vm1178 = vcmp.eq.s32.totalorder %v1002, 1
        %vm1179 = vcmp.eq.s32.totalorder %v1003, 1
        %vm1180 = vcmp.eq.s32.totalorder %v1004, 1
        %vm1181 = vcmp.eq.s32.totalorder %v1005, 1
        %vm1182 = vcmp.eq.s32.totalorder %v1006, 1
        %vm1183 = vcmp.eq.s32.totalorder %v1007, 1
        %vm1184 = vcmp.eq.s32.totalorder %v1008, 1
        %vm1185 = vcmp.eq.s32.totalorder %v1009, 1
        %vm1186 = vcmp.eq.s32.totalorder %v1010, 1
        %vm1187 = vcmp.eq.s32.totalorder %v1011, 1
        %vm1188 = vcmp.eq.s32.totalorder %v1012, 1
        %vm1189 = vcmp.eq.s32.totalorder %v1013, 1
        %vm1190 = vcmp.eq.s32.totalorder %v1014, 1
        %vm1191 = vcmp.eq.s32.totalorder %v1015, 1
        %v1192 = vsel %vm1176, 1, 0
        %v1193 = vsel %vm1177, 1, 0
        %v1194 = vsel %vm1178, 1, 0
        %v1195 = vsel %vm1179, 1, 0
        %v1196 = vsel %vm1180, 1, 0
        %v1197 = vsel %vm1181, 1, 0
        %v1198 = vsel %vm1182, 1, 0
        %v1199 = vsel %vm1183, 1, 0
        %v1200 = vsel %vm1184, 1, 0
        %v1201 = vsel %vm1185, 1, 0
        %v1202 = vsel %vm1186, 1, 0
        %v1203 = vsel %vm1187, 1, 0
        %v1204 = vsel %vm1188, 1, 0
        %v1205 = vsel %vm1189, 1, 0
        %v1206 = vsel %vm1190, 1, 0
        %v1207 = vsel %vm1191, 1, 0
        %v1208 = vcvt.s32.f32 %v1192
        %v1209 = vcvt.s32.f32 %v1193
        %v1210 = vcvt.s32.f32 %v1194
        %v1211 = vcvt.s32.f32 %v1195
        %v1212 = vcvt.s32.f32 %v1196
        %v1213 = vcvt.s32.f32 %v1197
        %v1214 = vcvt.s32.f32 %v1198
        %v1215 = vcvt.s32.f32 %v1199
        %v1216 = vcvt.s32.f32 %v1200
        %v1217 = vcvt.s32.f32 %v1201
        %v1218 = vcvt.s32.f32 %v1202
        %v1219 = vcvt.s32.f32 %v1203
        %v1220 = vcvt.s32.f32 %v1204
        %v1221 = vcvt.s32.f32 %v1205
        %v1222 = vcvt.s32.f32 %v1206
        %v1223 = vcvt.s32.f32 %v1207
        %1225 = vset.pattern.permute.xlu0 0
        %1226 = vperm.xlu0 %1225, %v1208
        %v1227 = vpop.permute.xlu0 %1226
        %1230 = vset.pattern.permute.xlu0 0
        %1231 = vperm.xlu0 %1230, %v1209
        %v1232 = vpop.permute.xlu0 %1231
        %1235 = vset.pattern.permute.xlu0 0
        %1236 = vperm.xlu0 %1235, %v1210
        %v1237 = vpop.permute.xlu0 %1236
        %1240 = vset.pattern.permute.xlu0 0
        %1241 = vperm.xlu0 %1240, %v1211
        %v1242 = vpop.permute.xlu0 %1241
        %1245 = vset.pattern.permute.xlu0 0
        %1246 = vperm.xlu0 %1245, %v1212
        %v1247 = vpop.permute.xlu0 %1246
        %1250 = vset.pattern.permute.xlu0 0
        %1251 = vperm.xlu0 %1250, %v1213
        %v1252 = vpop.permute.xlu0 %1251
        %1255 = vset.pattern.permute.xlu0 0
        %1256 = vperm.xlu0 %1255, %v1214
        %v1257 = vpop.permute.xlu0 %1256
        %1260 = vset.pattern.permute.xlu0 0
        %1261 = vperm.xlu0 %1260, %v1215
        %v1262 = vpop.permute.xlu0 %1261
        %1265 = vset.pattern.permute.xlu0 0
        %1266 = vperm.xlu0 %1265, %v1216
        %v1267 = vpop.permute.xlu0 %1266
        %1270 = vset.pattern.permute.xlu0 0
        %1271 = vperm.xlu0 %1270, %v1217
        %v1272 = vpop.permute.xlu0 %1271
        %1275 = vset.pattern.permute.xlu0 0
        %1276 = vperm.xlu0 %1275, %v1218
        %v1277 = vpop.permute.xlu0 %1276
        %1280 = vset.pattern.permute.xlu0 0
        %1281 = vperm.xlu0 %1280, %v1219
        %v1282 = vpop.permute.xlu0 %1281
        %1285 = vset.pattern.permute.xlu0 0
        %1286 = vperm.xlu0 %1285, %v1220
        %v1287 = vpop.permute.xlu0 %1286
        %1290 = vset.pattern.permute.xlu0 0
        %1291 = vperm.xlu0 %1290, %v1221
        %v1292 = vpop.permute.xlu0 %1291
        %1295 = vset.pattern.permute.xlu0 0
        %1296 = vperm.xlu0 %1295, %v1222
        %v1297 = vpop.permute.xlu0 %1296
        %1300 = vset.pattern.permute.xlu0 0
        %1301 = vperm.xlu0 %1300, %v1223
        %v1302 = vpop.permute.xlu0 %1301
        %v1304 = vmul.f32 %v498, %v1227
        %v1305 = vmul.f32 %v563, %v1227
        %v1306 = vmul.f32 %v501, %v1232
        %v1307 = vmul.f32 %v566, %v1232
        %v1308 = vmul.f32 %v504, %v1237
        %v1309 = vmul.f32 %v569, %v1237
        %v1310 = vmul.f32 %v507, %v1242
        %v1311 = vmul.f32 %v572, %v1242
        %v1312 = vmul.f32 %v510, %v1247
        %v1313 = vmul.f32 %v575, %v1247
        %v1314 = vmul.f32 %v513, %v1252
        %v1315 = vmul.f32 %v578, %v1252
        %v1316 = vmul.f32 %v516, %v1257
        %v1317 = vmul.f32 %v581, %v1257
        %v1318 = vmul.f32 %v519, %v1262
        %v1319 = vmul.f32 %v584, %v1262
        %v1320 = vmul.f32 %v522, %v1267
        %v1321 = vmul.f32 %v587, %v1267
        %v1322 = vmul.f32 %v525, %v1272
        %v1323 = vmul.f32 %v590, %v1272
        %v1324 = vmul.f32 %v528, %v1277
        %v1325 = vmul.f32 %v593, %v1277
        %v1326 = vmul.f32 %v531, %v1282
        %v1327 = vmul.f32 %v596, %v1282
        %v1328 = vmul.f32 %v534, %v1287
        %v1329 = vmul.f32 %v599, %v1287
        %v1330 = vmul.f32 %v537, %v1292
        %v1331 = vmul.f32 %v602, %v1292
        %v1332 = vmul.f32 %v540, %v1297
        %v1333 = vmul.f32 %v605, %v1297
        %v1334 = vmul.f32 %v543, %v1302
        %v1335 = vmul.f32 %v608, %v1302
        %v1336 = vadd.f32 %v1144, %v1304
        %v1337 = vadd.f32 %v1145, %v1305
        %v1338 = vadd.f32 %v1146, %v1306
        %v1339 = vadd.f32 %v1147, %v1307
        %v1340 = vadd.f32 %v1148, %v1308
        %v1341 = vadd.f32 %v1149, %v1309
        %v1342 = vadd.f32 %v1150, %v1310
        %v1343 = vadd.f32 %v1151, %v1311
        %v1344 = vadd.f32 %v1152, %v1312
        %v1345 = vadd.f32 %v1153, %v1313
        %v1346 = vadd.f32 %v1154, %v1314
        %v1347 = vadd.f32 %v1155, %v1315
        %v1348 = vadd.f32 %v1156, %v1316
        %v1349 = vadd.f32 %v1157, %v1317
        %v1350 = vadd.f32 %v1158, %v1318
        %v1351 = vadd.f32 %v1159, %v1319
        %v1352 = vadd.f32 %v1160, %v1320
        %v1353 = vadd.f32 %v1161, %v1321
        %v1354 = vadd.f32 %v1162, %v1322
        %v1355 = vadd.f32 %v1163, %v1323
        %v1356 = vadd.f32 %v1164, %v1324
        %v1357 = vadd.f32 %v1165, %v1325
        %v1358 = vadd.f32 %v1166, %v1326
        %v1359 = vadd.f32 %v1167, %v1327
        %v1360 = vadd.f32 %v1168, %v1328
        %v1361 = vadd.f32 %v1169, %v1329
        %v1362 = vadd.f32 %v1170, %v1330
        %v1363 = vadd.f32 %v1171, %v1331
        %v1364 = vadd.f32 %v1172, %v1332
        %v1365 = vadd.f32 %v1173, %v1333
        %v1366 = vadd.f32 %v1174, %v1334
        %v1367 = vadd.f32 %v1175, %v1335
        %vm1368 = vcmp.eq.s32.totalorder %v1000, 2
        %vm1369 = vcmp.eq.s32.totalorder %v1001, 2
        %vm1370 = vcmp.eq.s32.totalorder %v1002, 2
        %vm1371 = vcmp.eq.s32.totalorder %v1003, 2
        %vm1372 = vcmp.eq.s32.totalorder %v1004, 2
        %vm1373 = vcmp.eq.s32.totalorder %v1005, 2
        %vm1374 = vcmp.eq.s32.totalorder %v1006, 2
        %vm1375 = vcmp.eq.s32.totalorder %v1007, 2
        %vm1376 = vcmp.eq.s32.totalorder %v1008, 2
        %vm1377 = vcmp.eq.s32.totalorder %v1009, 2
        %vm1378 = vcmp.eq.s32.totalorder %v1010, 2
        %vm1379 = vcmp.eq.s32.totalorder %v1011, 2
        %vm1380 = vcmp.eq.s32.totalorder %v1012, 2
        %vm1381 = vcmp.eq.s32.totalorder %v1013, 2
        %vm1382 = vcmp.eq.s32.totalorder %v1014, 2
        %vm1383 = vcmp.eq.s32.totalorder %v1015, 2
        %v1384 = vsel %vm1368, 1, 0
        %v1385 = vsel %vm1369, 1, 0
        %v1386 = vsel %vm1370, 1, 0
        %v1387 = vsel %vm1371, 1, 0
        %v1388 = vsel %vm1372, 1, 0
        %v1389 = vsel %vm1373, 1, 0
        %v1390 = vsel %vm1374, 1, 0
        %v1391 = vsel %vm1375, 1, 0
        %v1392 = vsel %vm1376, 1, 0
        %v1393 = vsel %vm1377, 1, 0
        %v1394 = vsel %vm1378, 1, 0
        %v1395 = vsel %vm1379, 1, 0
        %v1396 = vsel %vm1380, 1, 0
        %v1397 = vsel %vm1381, 1, 0
        %v1398 = vsel %vm1382, 1, 0
        %v1399 = vsel %vm1383, 1, 0
        %v1400 = vcvt.s32.f32 %v1384
        %v1401 = vcvt.s32.f32 %v1385
        %v1402 = vcvt.s32.f32 %v1386
        %v1403 = vcvt.s32.f32 %v1387
        %v1404 = vcvt.s32.f32 %v1388
        %v1405 = vcvt.s32.f32 %v1389
        %v1406 = vcvt.s32.f32 %v1390
        %v1407 = vcvt.s32.f32 %v1391
        %v1408 = vcvt.s32.f32 %v1392
        %v1409 = vcvt.s32.f32 %v1393
        %v1410 = vcvt.s32.f32 %v1394
        %v1411 = vcvt.s32.f32 %v1395
        %v1412 = vcvt.s32.f32 %v1396
        %v1413 = vcvt.s32.f32 %v1397
        %v1414 = vcvt.s32.f32 %v1398
        %v1415 = vcvt.s32.f32 %v1399
        %1417 = vset.pattern.permute.xlu0 0
        %1418 = vperm.xlu0 %1417, %v1400
        %v1419 = vpop.permute.xlu0 %1418
        %1422 = vset.pattern.permute.xlu0 0
        %1423 = vperm.xlu0 %1422, %v1401
        %v1424 = vpop.permute.xlu0 %1423
        %1427 = vset.pattern.permute.xlu0 0
        %1428 = vperm.xlu0 %1427, %v1402
        %v1429 = vpop.permute.xlu0 %1428
        %1432 = vset.pattern.permute.xlu0 0
        %1433 = vperm.xlu0 %1432, %v1403
        %v1434 = vpop.permute.xlu0 %1433
        %1437 = vset.pattern.permute.xlu0 0
        %1438 = vperm.xlu0 %1437, %v1404
        %v1439 = vpop.permute.xlu0 %1438
        %1442 = vset.pattern.permute.xlu0 0
        %1443 = vperm.xlu0 %1442, %v1405
        %v1444 = vpop.permute.xlu0 %1443
        %1447 = vset.pattern.permute.xlu0 0
        %1448 = vperm.xlu0 %1447, %v1406
        %v1449 = vpop.permute.xlu0 %1448
        %1452 = vset.pattern.permute.xlu0 0
        %1453 = vperm.xlu0 %1452, %v1407
        %v1454 = vpop.permute.xlu0 %1453
        %1457 = vset.pattern.permute.xlu0 0
        %1458 = vperm.xlu0 %1457, %v1408
        %v1459 = vpop.permute.xlu0 %1458
        %1462 = vset.pattern.permute.xlu0 0
        %1463 = vperm.xlu0 %1462, %v1409
        %v1464 = vpop.permute.xlu0 %1463
        %1467 = vset.pattern.permute.xlu0 0
        %1468 = vperm.xlu0 %1467, %v1410
        %v1469 = vpop.permute.xlu0 %1468
        %1472 = vset.pattern.permute.xlu0 0
        %1473 = vperm.xlu0 %1472, %v1411
        %v1474 = vpop.permute.xlu0 %1473
        %1477 = vset.pattern.permute.xlu0 0
        %1478 = vperm.xlu0 %1477, %v1412
        %v1479 = vpop.permute.xlu0 %1478
        %1482 = vset.pattern.permute.xlu0 0
        %1483 = vperm.xlu0 %1482, %v1413
        %v1484 = vpop.permute.xlu0 %1483
        %1487 = vset.pattern.permute.xlu0 0
        %1488 = vperm.xlu0 %1487, %v1414
        %v1489 = vpop.permute.xlu0 %1488
        %1492 = vset.pattern.permute.xlu0 0
        %1493 = vperm.xlu0 %1492, %v1415
        %v1494 = vpop.permute.xlu0 %1493
        %v1496 = vmul.f32 %v628, %v1419
        %v1497 = vmul.f32 %v693, %v1419
        %v1498 = vmul.f32 %v631, %v1424
        %v1499 = vmul.f32 %v696, %v1424
        %v1500 = vmul.f32 %v634, %v1429
        %v1501 = vmul.f32 %v699, %v1429
        %v1502 = vmul.f32 %v637, %v1434
        %v1503 = vmul.f32 %v702, %v1434
        %v1504 = vmul.f32 %v640, %v1439
        %v1505 = vmul.f32 %v705, %v1439
        %v1506 = vmul.f32 %v643, %v1444
        %v1507 = vmul.f32 %v708, %v1444
        %v1508 = vmul.f32 %v646, %v1449
        %v1509 = vmul.f32 %v711, %v1449
        %v1510 = vmul.f32 %v649, %v1454
        %v1511 = vmul.f32 %v714, %v1454
        %v1512 = vmul.f32 %v652, %v1459
        %v1513 = vmul.f32 %v717, %v1459
        %v1514 = vmul.f32 %v655, %v1464
        %v1515 = vmul.f32 %v720, %v1464
        %v1516 = vmul.f32 %v658, %v1469
        %v1517 = vmul.f32 %v723, %v1469
        %v1518 = vmul.f32 %v661, %v1474
        %v1519 = vmul.f32 %v726, %v1474
        %v1520 = vmul.f32 %v664, %v1479
        %v1521 = vmul.f32 %v729, %v1479
        %v1522 = vmul.f32 %v667, %v1484
        %v1523 = vmul.f32 %v732, %v1484
        %v1524 = vmul.f32 %v670, %v1489
        %v1525 = vmul.f32 %v735, %v1489
        %v1526 = vmul.f32 %v673, %v1494
        %v1527 = vmul.f32 %v738, %v1494
        %v1528 = vadd.f32 %v1336, %v1496
        %v1529 = vadd.f32 %v1337, %v1497
        %v1530 = vadd.f32 %v1338, %v1498
        %v1531 = vadd.f32 %v1339, %v1499
        %v1532 = vadd.f32 %v1340, %v1500
        %v1533 = vadd.f32 %v1341, %v1501
        %v1534 = vadd.f32 %v1342, %v1502
        %v1535 = vadd.f32 %v1343, %v1503
        %v1536 = vadd.f32 %v1344, %v1504
        %v1537 = vadd.f32 %v1345, %v1505
        %v1538 = vadd.f32 %v1346, %v1506
        %v1539 = vadd.f32 %v1347, %v1507
        %v1540 = vadd.f32 %v1348, %v1508
        %v1541 = vadd.f32 %v1349, %v1509
        %v1542 = vadd.f32 %v1350, %v1510
        %v1543 = vadd.f32 %v1351, %v1511
        %v1544 = vadd.f32 %v1352, %v1512
        %v1545 = vadd.f32 %v1353, %v1513
        %v1546 = vadd.f32 %v1354, %v1514
        %v1547 = vadd.f32 %v1355, %v1515
        %v1548 = vadd.f32 %v1356, %v1516
        %v1549 = vadd.f32 %v1357, %v1517
        %v1550 = vadd.f32 %v1358, %v1518
        %v1551 = vadd.f32 %v1359, %v1519
        %v1552 = vadd.f32 %v1360, %v1520
        %v1553 = vadd.f32 %v1361, %v1521
        %v1554 = vadd.f32 %v1362, %v1522
        %v1555 = vadd.f32 %v1363, %v1523
        %v1556 = vadd.f32 %v1364, %v1524
        %v1557 = vadd.f32 %v1365, %v1525
        %v1558 = vadd.f32 %v1366, %v1526
        %v1559 = vadd.f32 %v1367, %v1527
        %vm1560 = vcmp.eq.s32.totalorder %v1000, 3
        %vm1561 = vcmp.eq.s32.totalorder %v1001, 3
        %vm1562 = vcmp.eq.s32.totalorder %v1002, 3
        %vm1563 = vcmp.eq.s32.totalorder %v1003, 3
        %vm1564 = vcmp.eq.s32.totalorder %v1004, 3
        %vm1565 = vcmp.eq.s32.totalorder %v1005, 3
        %vm1566 = vcmp.eq.s32.totalorder %v1006, 3
        %vm1567 = vcmp.eq.s32.totalorder %v1007, 3
        %vm1568 = vcmp.eq.s32.totalorder %v1008, 3
        %vm1569 = vcmp.eq.s32.totalorder %v1009, 3
        %vm1570 = vcmp.eq.s32.totalorder %v1010, 3
        %vm1571 = vcmp.eq.s32.totalorder %v1011, 3
        %vm1572 = vcmp.eq.s32.totalorder %v1012, 3
        %vm1573 = vcmp.eq.s32.totalorder %v1013, 3
        %vm1574 = vcmp.eq.s32.totalorder %v1014, 3
        %vm1575 = vcmp.eq.s32.totalorder %v1015, 3
        %v1576 = vsel %vm1560, 1, 0
        %v1577 = vsel %vm1561, 1, 0
        %v1578 = vsel %vm1562, 1, 0
        %v1579 = vsel %vm1563, 1, 0
        %v1580 = vsel %vm1564, 1, 0
        %v1581 = vsel %vm1565, 1, 0
        %v1582 = vsel %vm1566, 1, 0
        %v1583 = vsel %vm1567, 1, 0
        %v1584 = vsel %vm1568, 1, 0
        %v1585 = vsel %vm1569, 1, 0
        %v1586 = vsel %vm1570, 1, 0
        %v1587 = vsel %vm1571, 1, 0
        %v1588 = vsel %vm1572, 1, 0
        %v1589 = vsel %vm1573, 1, 0
        %v1590 = vsel %vm1574, 1, 0
        %v1591 = vsel %vm1575, 1, 0
        %v1592 = vcvt.s32.f32 %v1576
        %v1593 = vcvt.s32.f32 %v1577
        %v1594 = vcvt.s32.f32 %v1578
        %v1595 = vcvt.s32.f32 %v1579
        %v1596 = vcvt.s32.f32 %v1580
        %v1597 = vcvt.s32.f32 %v1581
        %v1598 = vcvt.s32.f32 %v1582
        %v1599 = vcvt.s32.f32 %v1583
        %v1600 = vcvt.s32.f32 %v1584
        %v1601 = vcvt.s32.f32 %v1585
        %v1602 = vcvt.s32.f32 %v1586
        %v1603 = vcvt.s32.f32 %v1587
        %v1604 = vcvt.s32.f32 %v1588
        %v1605 = vcvt.s32.f32 %v1589
        %v1606 = vcvt.s32.f32 %v1590
        %v1607 = vcvt.s32.f32 %v1591
        %1609 = vset.pattern.permute.xlu0 0
        %1610 = vperm.xlu0 %1609, %v1592
        %v1611 = vpop.permute.xlu0 %1610
        %1614 = vset.pattern.permute.xlu0 0
        %1615 = vperm.xlu0 %1614, %v1593
        %v1616 = vpop.permute.xlu0 %1615
        %1619 = vset.pattern.permute.xlu0 0
        %1620 = vperm.xlu0 %1619, %v1594
        %v1621 = vpop.permute.xlu0 %1620
        %1624 = vset.pattern.permute.xlu0 0
        %1625 = vperm.xlu0 %1624, %v1595
        %v1626 = vpop.permute.xlu0 %1625
        %1629 = vset.pattern.permute.xlu0 0
        %1630 = vperm.xlu0 %1629, %v1596
        %v1631 = vpop.permute.xlu0 %1630
        %1634 = vset.pattern.permute.xlu0 0
        %1635 = vperm.xlu0 %1634, %v1597
        %v1636 = vpop.permute.xlu0 %1635
        %1639 = vset.pattern.permute.xlu0 0
        %1640 = vperm.xlu0 %1639, %v1598
        %v1641 = vpop.permute.xlu0 %1640
        %1644 = vset.pattern.permute.xlu0 0
        %1645 = vperm.xlu0 %1644, %v1599
        %v1646 = vpop.permute.xlu0 %1645
        %1649 = vset.pattern.permute.xlu0 0
        %1650 = vperm.xlu0 %1649, %v1600
        %v1651 = vpop.permute.xlu0 %1650
        %1654 = vset.pattern.permute.xlu0 0
        %1655 = vperm.xlu0 %1654, %v1601
        %v1656 = vpop.permute.xlu0 %1655
        %1659 = vset.pattern.permute.xlu0 0
        %1660 = vperm.xlu0 %1659, %v1602
        %v1661 = vpop.permute.xlu0 %1660
        %1664 = vset.pattern.permute.xlu0 0
        %1665 = vperm.xlu0 %1664, %v1603
        %v1666 = vpop.permute.xlu0 %1665
        %1669 = vset.pattern.permute.xlu0 0
        %1670 = vperm.xlu0 %1669, %v1604
        %v1671 = vpop.permute.xlu0 %1670
        %1674 = vset.pattern.permute.xlu0 0
        %1675 = vperm.xlu0 %1674, %v1605
        %v1676 = vpop.permute.xlu0 %1675
        %1679 = vset.pattern.permute.xlu0 0
        %1680 = vperm.xlu0 %1679, %v1606
        %v1681 = vpop.permute.xlu0 %1680
        %1684 = vset.pattern.permute.xlu0 0
        %1685 = vperm.xlu0 %1684, %v1607
        %v1686 = vpop.permute.xlu0 %1685
        %v1688 = vmul.f32 %v758, %v1611
        %v1689 = vmul.f32 %v823, %v1611
        %v1690 = vmul.f32 %v761, %v1616
        %v1691 = vmul.f32 %v826, %v1616
        %v1692 = vmul.f32 %v764, %v1621
        %v1693 = vmul.f32 %v829, %v1621
        %v1694 = vmul.f32 %v767, %v1626
        %v1695 = vmul.f32 %v832, %v1626
        %v1696 = vmul.f32 %v770, %v1631
        %v1697 = vmul.f32 %v835, %v1631
        %v1698 = vmul.f32 %v773, %v1636
        %v1699 = vmul.f32 %v838, %v1636
        %v1700 = vmul.f32 %v776, %v1641
        %v1701 = vmul.f32 %v841, %v1641
        %v1702 = vmul.f32 %v779, %v1646
        %v1703 = vmul.f32 %v844, %v1646
        %v1704 = vmul.f32 %v782, %v1651
        %v1705 = vmul.f32 %v847, %v1651
        %v1706 = vmul.f32 %v785, %v1656
        %v1707 = vmul.f32 %v850, %v1656
        %v1708 = vmul.f32 %v788, %v1661
        %v1709 = vmul.f32 %v853, %v1661
        %v1710 = vmul.f32 %v791, %v1666
        %v1711 = vmul.f32 %v856, %v1666
        %v1712 = vmul.f32 %v794, %v1671
        %v1713 = vmul.f32 %v859, %v1671
        %v1714 = vmul.f32 %v797, %v1676
        %v1715 = vmul.f32 %v862, %v1676
        %v1716 = vmul.f32 %v800, %v1681
        %v1717 = vmul.f32 %v865, %v1681
        %v1718 = vmul.f32 %v803, %v1686
        %v1719 = vmul.f32 %v868, %v1686
        %v1720 = vadd.f32 %v1528, %v1688
        %v1721 = vadd.f32 %v1529, %v1689
        %v1722 = vadd.f32 %v1530, %v1690
        %v1723 = vadd.f32 %v1531, %v1691
        %v1724 = vadd.f32 %v1532, %v1692
        %v1725 = vadd.f32 %v1533, %v1693
        %v1726 = vadd.f32 %v1534, %v1694
        %v1727 = vadd.f32 %v1535, %v1695
        %v1728 = vadd.f32 %v1536, %v1696
        %v1729 = vadd.f32 %v1537, %v1697
        %v1730 = vadd.f32 %v1538, %v1698
        %v1731 = vadd.f32 %v1539, %v1699
        %v1732 = vadd.f32 %v1540, %v1700
        %v1733 = vadd.f32 %v1541, %v1701
        %v1734 = vadd.f32 %v1542, %v1702
        %v1735 = vadd.f32 %v1543, %v1703
        %v1736 = vadd.f32 %v1544, %v1704
        %v1737 = vadd.f32 %v1545, %v1705
        %v1738 = vadd.f32 %v1546, %v1706
        %v1739 = vadd.f32 %v1547, %v1707
        %v1740 = vadd.f32 %v1548, %v1708
        %v1741 = vadd.f32 %v1549, %v1709
        %v1742 = vadd.f32 %v1550, %v1710
        %v1743 = vadd.f32 %v1551, %v1711
        %v1744 = vadd.f32 %v1552, %v1712
        %v1745 = vadd.f32 %v1553, %v1713
        %v1746 = vadd.f32 %v1554, %v1714
        %v1747 = vadd.f32 %v1555, %v1715
        %v1748 = vadd.f32 %v1556, %v1716
        %v1749 = vadd.f32 %v1557, %v1717
        %v1750 = vadd.f32 %v1558, %v1718
        %v1751 = vadd.f32 %v1559, %v1719
        %vm1752 = vcmp.eq.s32.totalorder %v1000, 4
        %vm1753 = vcmp.eq.s32.totalorder %v1001, 4
        %vm1754 = vcmp.eq.s32.totalorder %v1002, 4
        %vm1755 = vcmp.eq.s32.totalorder %v1003, 4
        %vm1756 = vcmp.eq.s32.totalorder %v1004, 4
        %vm1757 = vcmp.eq.s32.totalorder %v1005, 4
        %vm1758 = vcmp.eq.s32.totalorder %v1006, 4
        %vm1759 = vcmp.eq.s32.totalorder %v1007, 4
        %vm1760 = vcmp.eq.s32.totalorder %v1008, 4
        %vm1761 = vcmp.eq.s32.totalorder %v1009, 4
        %vm1762 = vcmp.eq.s32.totalorder %v1010, 4
        %vm1763 = vcmp.eq.s32.totalorder %v1011, 4
        %vm1764 = vcmp.eq.s32.totalorder %v1012, 4
        %vm1765 = vcmp.eq.s32.totalorder %v1013, 4
        %vm1766 = vcmp.eq.s32.totalorder %v1014, 4
        %vm1767 = vcmp.eq.s32.totalorder %v1015, 4
        %v1768 = vsel %vm1752, 1, 0
        %v1769 = vsel %vm1753, 1, 0
        %v1770 = vsel %vm1754, 1, 0
        %v1771 = vsel %vm1755, 1, 0
        %v1772 = vsel %vm1756, 1, 0
        %v1773 = vsel %vm1757, 1, 0
        %v1774 = vsel %vm1758, 1, 0
        %v1775 = vsel %vm1759, 1, 0
        %v1776 = vsel %vm1760, 1, 0
        %v1777 = vsel %vm1761, 1, 0
        %v1778 = vsel %vm1762, 1, 0
        %v1779 = vsel %vm1763, 1, 0
        %v1780 = vsel %vm1764, 1, 0
        %v1781 = vsel %vm1765, 1, 0
        %v1782 = vsel %vm1766, 1, 0
        %v1783 = vsel %vm1767, 1, 0
        %v1784 = vcvt.s32.f32 %v1768
        %v1785 = vcvt.s32.f32 %v1769
        %v1786 = vcvt.s32.f32 %v1770
        %v1787 = vcvt.s32.f32 %v1771
        %v1788 = vcvt.s32.f32 %v1772
        %v1789 = vcvt.s32.f32 %v1773
        %v1790 = vcvt.s32.f32 %v1774
        %v1791 = vcvt.s32.f32 %v1775
        %v1792 = vcvt.s32.f32 %v1776
        %v1793 = vcvt.s32.f32 %v1777
        %v1794 = vcvt.s32.f32 %v1778
        %v1795 = vcvt.s32.f32 %v1779
        %v1796 = vcvt.s32.f32 %v1780
        %v1797 = vcvt.s32.f32 %v1781
        %v1798 = vcvt.s32.f32 %v1782
        %v1799 = vcvt.s32.f32 %v1783
        %1801 = vset.pattern.permute.xlu0 0
        %1802 = vperm.xlu0 %1801, %v1784
        %v1803 = vpop.permute.xlu0 %1802
        %1806 = vset.pattern.permute.xlu0 0
        %1807 = vperm.xlu0 %1806, %v1785
        %v1808 = vpop.permute.xlu0 %1807
        %1811 = vset.pattern.permute.xlu0 0
        %1812 = vperm.xlu0 %1811, %v1786
        %v1813 = vpop.permute.xlu0 %1812
        %1816 = vset.pattern.permute.xlu0 0
        %1817 = vperm.xlu0 %1816, %v1787
        %v1818 = vpop.permute.xlu0 %1817
        %1821 = vset.pattern.permute.xlu0 0
        %1822 = vperm.xlu0 %1821, %v1788
        %v1823 = vpop.permute.xlu0 %1822
        %1826 = vset.pattern.permute.xlu0 0
        %1827 = vperm.xlu0 %1826, %v1789
        %v1828 = vpop.permute.xlu0 %1827
        %1831 = vset.pattern.permute.xlu0 0
        %1832 = vperm.xlu0 %1831, %v1790
        %v1833 = vpop.permute.xlu0 %1832
        %1836 = vset.pattern.permute.xlu0 0
        %1837 = vperm.xlu0 %1836, %v1791
        %v1838 = vpop.permute.xlu0 %1837
        %1841 = vset.pattern.permute.xlu0 0
        %1842 = vperm.xlu0 %1841, %v1792
        %v1843 = vpop.permute.xlu0 %1842
        %1846 = vset.pattern.permute.xlu0 0
        %1847 = vperm.xlu0 %1846, %v1793
        %v1848 = vpop.permute.xlu0 %1847
        %1851 = vset.pattern.permute.xlu0 0
        %1852 = vperm.xlu0 %1851, %v1794
        %v1853 = vpop.permute.xlu0 %1852
        %1856 = vset.pattern.permute.xlu0 0
        %1857 = vperm.xlu0 %1856, %v1795
        %v1858 = vpop.permute.xlu0 %1857
        %1861 = vset.pattern.permute.xlu0 0
        %1862 = vperm.xlu0 %1861, %v1796
        %v1863 = vpop.permute.xlu0 %1862
        %1866 = vset.pattern.permute.xlu0 0
        %1867 = vperm.xlu0 %1866, %v1797
        %v1868 = vpop.permute.xlu0 %1867
        %1871 = vset.pattern.permute.xlu0 0
        %1872 = vperm.xlu0 %1871, %v1798
        %v1873 = vpop.permute.xlu0 %1872
        %1876 = vset.pattern.permute.xlu0 0
        %1877 = vperm.xlu0 %1876, %v1799
        %v1878 = vpop.permute.xlu0 %1877
        %v1880 = vmul.f32 %v888, %v1803
        %v1881 = vmul.f32 %v953, %v1803
        %v1882 = vmul.f32 %v891, %v1808
        %v1883 = vmul.f32 %v956, %v1808
        %v1884 = vmul.f32 %v894, %v1813
        %v1885 = vmul.f32 %v959, %v1813
        %v1886 = vmul.f32 %v897, %v1818
        %v1887 = vmul.f32 %v962, %v1818
        %v1888 = vmul.f32 %v900, %v1823
        %v1889 = vmul.f32 %v965, %v1823
        %v1890 = vmul.f32 %v903, %v1828
        %v1891 = vmul.f32 %v968, %v1828
        %v1892 = vmul.f32 %v906, %v1833
        %v1893 = vmul.f32 %v971, %v1833
        %v1894 = vmul.f32 %v909, %v1838
        %v1895 = vmul.f32 %v974, %v1838
        %v1896 = vmul.f32 %v912, %v1843
        %v1897 = vmul.f32 %v977, %v1843
        %v1898 = vmul.f32 %v915, %v1848
        %v1899 = vmul.f32 %v980, %v1848
        %v1900 = vmul.f32 %v918, %v1853
        %v1901 = vmul.f32 %v983, %v1853
        %v1902 = vmul.f32 %v921, %v1858
        %v1903 = vmul.f32 %v986, %v1858
        %v1904 = vmul.f32 %v924, %v1863
        %v1905 = vmul.f32 %v989, %v1863
        %v1906 = vmul.f32 %v927, %v1868
        %v1907 = vmul.f32 %v992, %v1868
        %v1908 = vmul.f32 %v930, %v1873
        %v1909 = vmul.f32 %v995, %v1873
        %v1910 = vmul.f32 %v933, %v1878
        %v1911 = vmul.f32 %v998, %v1878
        %v1912 = vadd.f32 %v1720, %v1880
        %v1913 = vadd.f32 %v1721, %v1881
        %v1914 = vadd.f32 %v1722, %v1882
        %v1915 = vadd.f32 %v1723, %v1883
        %v1916 = vadd.f32 %v1724, %v1884
        %v1917 = vadd.f32 %v1725, %v1885
        %v1918 = vadd.f32 %v1726, %v1886
        %v1919 = vadd.f32 %v1727, %v1887
        %v1920 = vadd.f32 %v1728, %v1888
        %v1921 = vadd.f32 %v1729, %v1889
        %v1922 = vadd.f32 %v1730, %v1890
        %v1923 = vadd.f32 %v1731, %v1891
        %v1924 = vadd.f32 %v1732, %v1892
        %v1925 = vadd.f32 %v1733, %v1893
        %v1926 = vadd.f32 %v1734, %v1894
        %v1927 = vadd.f32 %v1735, %v1895
        %v1928 = vadd.f32 %v1736, %v1896
        %v1929 = vadd.f32 %v1737, %v1897
        %v1930 = vadd.f32 %v1738, %v1898
        %v1931 = vadd.f32 %v1739, %v1899
        %v1932 = vadd.f32 %v1740, %v1900
        %v1933 = vadd.f32 %v1741, %v1901
        %v1934 = vadd.f32 %v1742, %v1902
        %v1935 = vadd.f32 %v1743, %v1903
        %v1936 = vadd.f32 %v1744, %v1904
        %v1937 = vadd.f32 %v1745, %v1905
        %v1938 = vadd.f32 %v1746, %v1906
        %v1939 = vadd.f32 %v1747, %v1907
        %v1940 = vadd.f32 %v1748, %v1908
        %v1941 = vadd.f32 %v1749, %v1909
        %v1942 = vadd.f32 %v1750, %v1910
        %v1943 = vadd.f32 %v1751, %v1911
        %v1944 = vmul.f32 %v1912, %v1912
        %v1945 = vmul.f32 %v1914, %v1914
        %v1946 = vmul.f32 %v1916, %v1916
        %v1947 = vmul.f32 %v1918, %v1918
        %v1948 = vmul.f32 %v1920, %v1920
        %v1949 = vmul.f32 %v1922, %v1922
        %v1950 = vmul.f32 %v1924, %v1924
        %v1951 = vmul.f32 %v1926, %v1926
        %v1952 = vmul.f32 %v1928, %v1928
        %v1953 = vmul.f32 %v1930, %v1930
        %v1954 = vmul.f32 %v1932, %v1932
        %v1955 = vmul.f32 %v1934, %v1934
        %v1956 = vmul.f32 %v1936, %v1936
        %v1957 = vmul.f32 %v1938, %v1938
        %v1958 = vmul.f32 %v1940, %v1940
        %v1959 = vmul.f32 %v1942, %v1942
        %v1960 = vsel %vm301, %v1944, 0.0
        %1961 = vadd.xlane.f32.xlu0 %v1960
        %v1962 = vpop.xlane.xlu0 %1961
        %v1963 = vsel %vm301, %v1945, 0.0
        %1964 = vadd.xlane.f32.xlu0 %v1963
        %v1965 = vpop.xlane.xlu0 %1964
        %v1966 = vsel %vm301, %v1946, 0.0
        %1967 = vadd.xlane.f32.xlu0 %v1966
        %v1968 = vpop.xlane.xlu0 %1967
        %v1969 = vsel %vm301, %v1947, 0.0
        %1970 = vadd.xlane.f32.xlu0 %v1969
        %v1971 = vpop.xlane.xlu0 %1970
        %v1972 = vsel %vm301, %v1948, 0.0
        %1973 = vadd.xlane.f32.xlu0 %v1972
        %v1974 = vpop.xlane.xlu0 %1973
        %v1975 = vsel %vm301, %v1949, 0.0
        %1976 = vadd.xlane.f32.xlu0 %v1975
        %v1977 = vpop.xlane.xlu0 %1976
        %v1978 = vsel %vm301, %v1950, 0.0
        %1979 = vadd.xlane.f32.xlu0 %v1978
        %v1980 = vpop.xlane.xlu0 %1979
        %v1981 = vsel %vm301, %v1951, 0.0
        %1982 = vadd.xlane.f32.xlu0 %v1981
        %v1983 = vpop.xlane.xlu0 %1982
        %v1984 = vsel %vm301, %v1952, 0.0
        %1985 = vadd.xlane.f32.xlu0 %v1984
        %v1986 = vpop.xlane.xlu0 %1985
        %v1987 = vsel %vm301, %v1953, 0.0
        %1988 = vadd.xlane.f32.xlu0 %v1987
        %v1989 = vpop.xlane.xlu0 %1988
        %v1990 = vsel %vm301, %v1954, 0.0
        %1991 = vadd.xlane.f32.xlu0 %v1990
        %v1992 = vpop.xlane.xlu0 %1991
        %v1993 = vsel %vm301, %v1955, 0.0
        %1994 = vadd.xlane.f32.xlu0 %v1993
        %v1995 = vpop.xlane.xlu0 %1994
        %v1996 = vsel %vm301, %v1956, 0.0
        %1997 = vadd.xlane.f32.xlu0 %v1996
        %v1998 = vpop.xlane.xlu0 %1997
        %v1999 = vsel %vm301, %v1957, 0.0
        %2000 = vadd.xlane.f32.xlu0 %v1999
        %v2001 = vpop.xlane.xlu0 %2000
        %v2002 = vsel %vm301, %v1958, 0.0
        %2003 = vadd.xlane.f32.xlu0 %v2002
        %v2004 = vpop.xlane.xlu0 %2003
        %v2005 = vsel %vm301, %v1959, 0.0
        %2006 = vadd.xlane.f32.xlu0 %v2005
        %v2007 = vpop.xlane.xlu0 %2006
        %v2008 = vrsqrt.pop %v1962
        %v2009 = vmul.f32 %v2008, %v1962
        %v2010 = vmul.f32 %v2009, %v2008
        %v2011 = vmul.f32 0.5, %v2010
        %v2012 = vsub.f32 1.5, %v2011
        %v2013 = vmul.f32 %v2008, %v2012
        %vm2014 = vweird.f32 %v1962
        %vm2015 = vweird.f32 %v2008
        %vm2016 = vmor %vm2014, %vm2015
        %v2017 = vsel %vm2016, %v2008, %v2013
        %v2018 = vrsqrt.pop %v1965
        %v2019 = vmul.f32 %v2018, %v1965
        %v2020 = vmul.f32 %v2019, %v2018
        %v2021 = vmul.f32 0.5, %v2020
        %v2022 = vsub.f32 1.5, %v2021
        %v2023 = vmul.f32 %v2018, %v2022
        %vm2024 = vweird.f32 %v1965
        %vm2025 = vweird.f32 %v2018
        %vm2026 = vmor %vm2024, %vm2025
        %v2027 = vsel %vm2026, %v2018, %v2023
        %v2028 = vrsqrt.pop %v1968
        %v2029 = vmul.f32 %v2028, %v1968
        %v2030 = vmul.f32 %v2029, %v2028
        %v2031 = vmul.f32 0.5, %v2030
        %v2032 = vsub.f32 1.5, %v2031
        %v2033 = vmul.f32 %v2028, %v2032
        %vm2034 = vweird.f32 %v1968
        %vm2035 = vweird.f32 %v2028
        %vm2036 = vmor %vm2034, %vm2035
        %v2037 = vsel %vm2036, %v2028, %v2033
        %v2038 = vrsqrt.pop %v1971
        %v2039 = vmul.f32 %v2038, %v1971
        %v2040 = vmul.f32 %v2039, %v2038
        %v2041 = vmul.f32 0.5, %v2040
        %v2042 = vsub.f32 1.5, %v2041
        %v2043 = vmul.f32 %v2038, %v2042
        %vm2044 = vweird.f32 %v1971
        %vm2045 = vweird.f32 %v2038
        %vm2046 = vmor %vm2044, %vm2045
        %v2047 = vsel %vm2046, %v2038, %v2043
        %v2048 = vrsqrt.pop %v1974
        %v2049 = vmul.f32 %v2048, %v1974
        %v2050 = vmul.f32 %v2049, %v2048
        %v2051 = vmul.f32 0.5, %v2050
        %v2052 = vsub.f32 1.5, %v2051
        %v2053 = vmul.f32 %v2048, %v2052
        %vm2054 = vweird.f32 %v1974
        %vm2055 = vweird.f32 %v2048
        %vm2056 = vmor %vm2054, %vm2055
        %v2057 = vsel %vm2056, %v2048, %v2053
        %v2058 = vrsqrt.pop %v1977
        %v2059 = vmul.f32 %v2058, %v1977
        %v2060 = vmul.f32 %v2059, %v2058
        %v2061 = vmul.f32 0.5, %v2060
        %v2062 = vsub.f32 1.5, %v2061
        %v2063 = vmul.f32 %v2058, %v2062
        %vm2064 = vweird.f32 %v1977
        %vm2065 = vweird.f32 %v2058
        %vm2066 = vmor %vm2064, %vm2065
        %v2067 = vsel %vm2066, %v2058, %v2063
        %v2068 = vrsqrt.pop %v1980
        %v2069 = vmul.f32 %v2068, %v1980
        %v2070 = vmul.f32 %v2069, %v2068
        %v2071 = vmul.f32 0.5, %v2070
        %v2072 = vsub.f32 1.5, %v2071
        %v2073 = vmul.f32 %v2068, %v2072
        %vm2074 = vweird.f32 %v1980
        %vm2075 = vweird.f32 %v2068
        %vm2076 = vmor %vm2074, %vm2075
        %v2077 = vsel %vm2076, %v2068, %v2073
        %v2078 = vrsqrt.pop %v1983
        %v2079 = vmul.f32 %v2078, %v1983
        %v2080 = vmul.f32 %v2079, %v2078
        %v2081 = vmul.f32 0.5, %v2080
        %v2082 = vsub.f32 1.5, %v2081
        %v2083 = vmul.f32 %v2078, %v2082
        %vm2084 = vweird.f32 %v1983
        %vm2085 = vweird.f32 %v2078
        %vm2086 = vmor %vm2084, %vm2085
        %v2087 = vsel %vm2086, %v2078, %v2083
        %v2088 = vrsqrt.pop %v1986
        %v2089 = vmul.f32 %v2088, %v1986
        %v2090 = vmul.f32 %v2089, %v2088
        %v2091 = vmul.f32 0.5, %v2090
        %v2092 = vsub.f32 1.5, %v2091
        %v2093 = vmul.f32 %v2088, %v2092
        %vm2094 = vweird.f32 %v1986
        %vm2095 = vweird.f32 %v2088
        %vm2096 = vmor %vm2094, %vm2095
        %v2097 = vsel %vm2096, %v2088, %v2093
        %v2098 = vrsqrt.pop %v1989
        %v2099 = vmul.f32 %v2098, %v1989
        %v2100 = vmul.f32 %v2099, %v2098
        %v2101 = vmul.f32 0.5, %v2100
        %v2102 = vsub.f32 1.5, %v2101
        %v2103 = vmul.f32 %v2098, %v2102
        %vm2104 = vweird.f32 %v1989
        %vm2105 = vweird.f32 %v2098
        %vm2106 = vmor %vm2104, %vm2105
        %v2107 = vsel %vm2106, %v2098, %v2103
        %v2108 = vrsqrt.pop %v1992
        %v2109 = vmul.f32 %v2108, %v1992
        %v2110 = vmul.f32 %v2109, %v2108
        %v2111 = vmul.f32 0.5, %v2110
        %v2112 = vsub.f32 1.5, %v2111
        %v2113 = vmul.f32 %v2108, %v2112
        %vm2114 = vweird.f32 %v1992
        %vm2115 = vweird.f32 %v2108
        %vm2116 = vmor %vm2114, %vm2115
        %v2117 = vsel %vm2116, %v2108, %v2113
        %v2118 = vrsqrt.pop %v1995
        %v2119 = vmul.f32 %v2118, %v1995
        %v2120 = vmul.f32 %v2119, %v2118
        %v2121 = vmul.f32 0.5, %v2120
        %v2122 = vsub.f32 1.5, %v2121
        %v2123 = vmul.f32 %v2118, %v2122
        %vm2124 = vweird.f32 %v1995
        %vm2125 = vweird.f32 %v2118
        %vm2126 = vmor %vm2124, %vm2125
        %v2127 = vsel %vm2126, %v2118, %v2123
        %v2128 = vrsqrt.pop %v1998
        %v2129 = vmul.f32 %v2128, %v1998
        %v2130 = vmul.f32 %v2129, %v2128
        %v2131 = vmul.f32 0.5, %v2130
        %v2132 = vsub.f32 1.5, %v2131
        %v2133 = vmul.f32 %v2128, %v2132
        %vm2134 = vweird.f32 %v1998
        %vm2135 = vweird.f32 %v2128
        %vm2136 = vmor %vm2134, %vm2135
        %v2137 = vsel %vm2136, %v2128, %v2133
        %v2138 = vrsqrt.pop %v2001
        %v2139 = vmul.f32 %v2138, %v2001
        %v2140 = vmul.f32 %v2139, %v2138
        %v2141 = vmul.f32 0.5, %v2140
        %v2142 = vsub.f32 1.5, %v2141
        %v2143 = vmul.f32 %v2138, %v2142
        %vm2144 = vweird.f32 %v2001
        %vm2145 = vweird.f32 %v2138
        %vm2146 = vmor %vm2144, %vm2145
        %v2147 = vsel %vm2146, %v2138, %v2143
        %v2148 = vrsqrt.pop %v2004
        %v2149 = vmul.f32 %v2148, %v2004
        %v2150 = vmul.f32 %v2149, %v2148
        %v2151 = vmul.f32 0.5, %v2150
        %v2152 = vsub.f32 1.5, %v2151
        %v2153 = vmul.f32 %v2148, %v2152
        %vm2154 = vweird.f32 %v2004
        %vm2155 = vweird.f32 %v2148
        %vm2156 = vmor %vm2154, %vm2155
        %v2157 = vsel %vm2156, %v2148, %v2153
        %v2158 = vrsqrt.pop %v2007
        %v2159 = vmul.f32 %v2158, %v2007
        %v2160 = vmul.f32 %v2159, %v2158
        %v2161 = vmul.f32 0.5, %v2160
        %v2162 = vsub.f32 1.5, %v2161
        %v2163 = vmul.f32 %v2158, %v2162
        %vm2164 = vweird.f32 %v2007
        %vm2165 = vweird.f32 %v2158
        %vm2166 = vmor %vm2164, %vm2165
        %v2167 = vsel %vm2166, %v2158, %v2163
        %v2168 = vmul.f32 %v1912, %v2017
        %v2169 = vmul.f32 %v1914, %v2027
        %v2170 = vmul.f32 %v1916, %v2037
        %v2171 = vmul.f32 %v1918, %v2047
        %v2172 = vmul.f32 %v1920, %v2057
        %v2173 = vmul.f32 %v1922, %v2067
        %v2174 = vmul.f32 %v1924, %v2077
        %v2175 = vmul.f32 %v1926, %v2087
        %v2176 = vmul.f32 %v1928, %v2097
        %v2177 = vmul.f32 %v1930, %v2107
        %v2178 = vmul.f32 %v1932, %v2117
        %v2179 = vmul.f32 %v1934, %v2127
        %v2180 = vmul.f32 %v1936, %v2137
        %v2181 = vmul.f32 %v1938, %v2147
        %v2182 = vmul.f32 %v1940, %v2157
        %v2183 = vmul.f32 %v1942, %v2167
        %2184 = vst.msk [vmem:[%s207] sm:$0xff] %vm301, %v2168
        %2185 = vst.msk [vmem:[%s207 + $0x10] sm:$0xff] %vm301, %v2169
        %2186 = vst.msk [vmem:[%s207 + $0x20] sm:$0xff] %vm301, %v2170
        %2187 = vst.msk [vmem:[%s207 + $0x30] sm:$0xff] %vm301, %v2171
        %2188 = vst.msk [vmem:[%s207 + $0x40] sm:$0xff] %vm301, %v2172
        %2189 = vst.msk [vmem:[%s207 + $0x50] sm:$0xff] %vm301, %v2173
        %2190 = vst.msk [vmem:[%s207 + $0x60] sm:$0xff] %vm301, %v2174
        %2191 = vst.msk [vmem:[%s207 + $0x70] sm:$0xff] %vm301, %v2175
        %2192 = vst.msk [vmem:[%s207 + $0x80] sm:$0xff] %vm301, %v2176
        %2193 = vst.msk [vmem:[%s207 + $0x90] sm:$0xff] %vm301, %v2177
        %2194 = vst.msk [vmem:[%s207 + $0xa0] sm:$0xff] %vm301, %v2178
        %2195 = vst.msk [vmem:[%s207 + $0xb0] sm:$0xff] %vm301, %v2179
        %2196 = vst.msk [vmem:[%s207 + $0xc0] sm:$0xff] %vm301, %v2180
        %2197 = vst.msk [vmem:[%s207 + $0xd0] sm:$0xff] %vm301, %v2181
        %2198 = vst.msk [vmem:[%s207 + $0xe0] sm:$0xff] %vm301, %v2182
        %2199 = vst.msk [vmem:[%s207 + $0xf0] sm:$0xff] %vm301, %v2183
        %2216 = vrot.lane.b32.xlu0 %v1944, 96
        %v2217 = vpop.permute.xlu0 %2216
        %2218 = vrot.lane.b32.xlu0 %v1945, 96
        %v2219 = vpop.permute.xlu0 %2218
        %2220 = vrot.lane.b32.xlu0 %v1946, 96
        %v2221 = vpop.permute.xlu0 %2220
        %2222 = vrot.lane.b32.xlu0 %v1947, 96
        %v2223 = vpop.permute.xlu0 %2222
        %2224 = vrot.lane.b32.xlu0 %v1948, 96
        %v2225 = vpop.permute.xlu0 %2224
        %2226 = vrot.lane.b32.xlu0 %v1949, 96
        %v2227 = vpop.permute.xlu0 %2226
        %2228 = vrot.lane.b32.xlu0 %v1950, 96
        %v2229 = vpop.permute.xlu0 %2228
        %2230 = vrot.lane.b32.xlu0 %v1951, 96
        %v2231 = vpop.permute.xlu0 %2230
        %2232 = vrot.lane.b32.xlu0 %v1952, 96
        %v2233 = vpop.permute.xlu0 %2232
        %2234 = vrot.lane.b32.xlu0 %v1953, 96
        %v2235 = vpop.permute.xlu0 %2234
        %2236 = vrot.lane.b32.xlu0 %v1954, 96
        %v2237 = vpop.permute.xlu0 %2236
        %2238 = vrot.lane.b32.xlu0 %v1955, 96
        %v2239 = vpop.permute.xlu0 %2238
        %2240 = vrot.lane.b32.xlu0 %v1956, 96
        %v2241 = vpop.permute.xlu0 %2240
        %2242 = vrot.lane.b32.xlu0 %v1957, 96
        %v2243 = vpop.permute.xlu0 %2242
        %2244 = vrot.lane.b32.xlu0 %v1958, 96
        %v2245 = vpop.permute.xlu0 %2244
        %2246 = vrot.lane.b32.xlu0 %v1959, 96
        %v2247 = vpop.permute.xlu0 %2246
        %v2264 = vsel %vm301, %v2217, 0.0
        %2265 = vadd.xlane.f32.xlu0 %v2264
        %v2266 = vpop.xlane.xlu0 %2265
        %v2267 = vsel %vm301, %v2219, 0.0
        %2268 = vadd.xlane.f32.xlu0 %v2267
        %v2269 = vpop.xlane.xlu0 %2268
        %v2270 = vsel %vm301, %v2221, 0.0
        %2271 = vadd.xlane.f32.xlu0 %v2270
        %v2272 = vpop.xlane.xlu0 %2271
        %v2273 = vsel %vm301, %v2223, 0.0
        %2274 = vadd.xlane.f32.xlu0 %v2273
        %v2275 = vpop.xlane.xlu0 %2274
        %v2276 = vsel %vm301, %v2225, 0.0
        %2277 = vadd.xlane.f32.xlu0 %v2276
        %v2278 = vpop.xlane.xlu0 %2277
        %v2279 = vsel %vm301, %v2227, 0.0
        %2280 = vadd.xlane.f32.xlu0 %v2279
        %v2281 = vpop.xlane.xlu0 %2280
        %v2282 = vsel %vm301, %v2229, 0.0
        %2283 = vadd.xlane.f32.xlu0 %v2282
        %v2284 = vpop.xlane.xlu0 %2283
        %v2285 = vsel %vm301, %v2231, 0.0
        %2286 = vadd.xlane.f32.xlu0 %v2285
        %v2287 = vpop.xlane.xlu0 %2286
        %v2288 = vsel %vm301, %v2233, 0.0
        %2289 = vadd.xlane.f32.xlu0 %v2288
        %v2290 = vpop.xlane.xlu0 %2289
        %v2291 = vsel %vm301, %v2235, 0.0
        %2292 = vadd.xlane.f32.xlu0 %v2291
        %v2293 = vpop.xlane.xlu0 %2292
        %v2294 = vsel %vm301, %v2237, 0.0
        %2295 = vadd.xlane.f32.xlu0 %v2294
        %v2296 = vpop.xlane.xlu0 %2295
        %v2297 = vsel %vm301, %v2239, 0.0
        %2298 = vadd.xlane.f32.xlu0 %v2297
        %v2299 = vpop.xlane.xlu0 %2298
        %v2300 = vsel %vm301, %v2241, 0.0
        %2301 = vadd.xlane.f32.xlu0 %v2300
        %v2302 = vpop.xlane.xlu0 %2301
        %v2303 = vsel %vm301, %v2243, 0.0
        %2304 = vadd.xlane.f32.xlu0 %v2303
        %v2305 = vpop.xlane.xlu0 %2304
        %v2306 = vsel %vm301, %v2245, 0.0
        %2307 = vadd.xlane.f32.xlu0 %v2306
        %v2308 = vpop.xlane.xlu0 %2307
        %v2309 = vsel %vm301, %v2247, 0.0
        %2310 = vadd.xlane.f32.xlu0 %v2309
        %v2311 = vpop.xlane.xlu0 %2310
        %v2312 = vrsqrt.pop %v2266
        %v2313 = vmul.f32 %v2312, %v2266
        %v2314 = vmul.f32 %v2313, %v2312
        %v2315 = vmul.f32 0.5, %v2314
        %v2316 = vsub.f32 1.5, %v2315
        %v2317 = vmul.f32 %v2312, %v2316
        %vm2318 = vweird.f32 %v2266
        %vm2319 = vweird.f32 %v2312
        %vm2320 = vmor %vm2318, %vm2319
        %v2321 = vsel %vm2320, %v2312, %v2317
        %v2322 = vrsqrt.pop %v2269
        %v2323 = vmul.f32 %v2322, %v2269
        %v2324 = vmul.f32 %v2323, %v2322
        %v2325 = vmul.f32 0.5, %v2324
        %v2326 = vsub.f32 1.5, %v2325
        %v2327 = vmul.f32 %v2322, %v2326
        %vm2328 = vweird.f32 %v2269
        %vm2329 = vweird.f32 %v2322
        %vm2330 = vmor %vm2328, %vm2329
        %v2331 = vsel %vm2330, %v2322, %v2327
        %v2332 = vrsqrt.pop %v2272
        %v2333 = vmul.f32 %v2332, %v2272
        %v2334 = vmul.f32 %v2333, %v2332
        %v2335 = vmul.f32 0.5, %v2334
        %v2336 = vsub.f32 1.5, %v2335
        %v2337 = vmul.f32 %v2332, %v2336
        %vm2338 = vweird.f32 %v2272
        %vm2339 = vweird.f32 %v2332
        %vm2340 = vmor %vm2338, %vm2339
        %v2341 = vsel %vm2340, %v2332, %v2337
        %v2342 = vrsqrt.pop %v2275
        %v2343 = vmul.f32 %v2342, %v2275
        %v2344 = vmul.f32 %v2343, %v2342
        %v2345 = vmul.f32 0.5, %v2344
        %v2346 = vsub.f32 1.5, %v2345
        %v2347 = vmul.f32 %v2342, %v2346
        %vm2348 = vweird.f32 %v2275
        %vm2349 = vweird.f32 %v2342
        %vm2350 = vmor %vm2348, %vm2349
        %v2351 = vsel %vm2350, %v2342, %v2347
        %v2352 = vrsqrt.pop %v2278
        %v2353 = vmul.f32 %v2352, %v2278
        %v2354 = vmul.f32 %v2353, %v2352
        %v2355 = vmul.f32 0.5, %v2354
        %v2356 = vsub.f32 1.5, %v2355
        %v2357 = vmul.f32 %v2352, %v2356
        %vm2358 = vweird.f32 %v2278
        %vm2359 = vweird.f32 %v2352
        %vm2360 = vmor %vm2358, %vm2359
        %v2361 = vsel %vm2360, %v2352, %v2357
        %v2362 = vrsqrt.pop %v2281
        %v2363 = vmul.f32 %v2362, %v2281
        %v2364 = vmul.f32 %v2363, %v2362
        %v2365 = vmul.f32 0.5, %v2364
        %v2366 = vsub.f32 1.5, %v2365
        %v2367 = vmul.f32 %v2362, %v2366
        %vm2368 = vweird.f32 %v2281
        %vm2369 = vweird.f32 %v2362
        %vm2370 = vmor %vm2368, %vm2369
        %v2371 = vsel %vm2370, %v2362, %v2367
        %v2372 = vrsqrt.pop %v2284
        %v2373 = vmul.f32 %v2372, %v2284
        %v2374 = vmul.f32 %v2373, %v2372
        %v2375 = vmul.f32 0.5, %v2374
        %v2376 = vsub.f32 1.5, %v2375
        %v2377 = vmul.f32 %v2372, %v2376
        %vm2378 = vweird.f32 %v2284
        %vm2379 = vweird.f32 %v2372
        %vm2380 = vmor %vm2378, %vm2379
        %v2381 = vsel %vm2380, %v2372, %v2377
        %v2382 = vrsqrt.pop %v2287
        %v2383 = vmul.f32 %v2382, %v2287
        %v2384 = vmul.f32 %v2383, %v2382
        %v2385 = vmul.f32 0.5, %v2384
        %v2386 = vsub.f32 1.5, %v2385
        %v2387 = vmul.f32 %v2382, %v2386
        %vm2388 = vweird.f32 %v2287
        %vm2389 = vweird.f32 %v2382
        %vm2390 = vmor %vm2388, %vm2389
        %v2391 = vsel %vm2390, %v2382, %v2387
        %v2392 = vrsqrt.pop %v2290
        %v2393 = vmul.f32 %v2392, %v2290
        %v2394 = vmul.f32 %v2393, %v2392
        %v2395 = vmul.f32 0.5, %v2394
        %v2396 = vsub.f32 1.5, %v2395
        %v2397 = vmul.f32 %v2392, %v2396
        %vm2398 = vweird.f32 %v2290
        %vm2399 = vweird.f32 %v2392
        %vm2400 = vmor %vm2398, %vm2399
        %v2401 = vsel %vm2400, %v2392, %v2397
        %v2402 = vrsqrt.pop %v2293
        %v2403 = vmul.f32 %v2402, %v2293
        %v2404 = vmul.f32 %v2403, %v2402
        %v2405 = vmul.f32 0.5, %v2404
        %v2406 = vsub.f32 1.5, %v2405
        %v2407 = vmul.f32 %v2402, %v2406
        %vm2408 = vweird.f32 %v2293
        %vm2409 = vweird.f32 %v2402
        %vm2410 = vmor %vm2408, %vm2409
        %v2411 = vsel %vm2410, %v2402, %v2407
        %v2412 = vrsqrt.pop %v2296
        %v2413 = vmul.f32 %v2412, %v2296
        %v2414 = vmul.f32 %v2413, %v2412
        %v2415 = vmul.f32 0.5, %v2414
        %v2416 = vsub.f32 1.5, %v2415
        %v2417 = vmul.f32 %v2412, %v2416
        %vm2418 = vweird.f32 %v2296
        %vm2419 = vweird.f32 %v2412
        %vm2420 = vmor %vm2418, %vm2419
        %v2421 = vsel %vm2420, %v2412, %v2417
        %v2422 = vrsqrt.pop %v2299
        %v2423 = vmul.f32 %v2422, %v2299
        %v2424 = vmul.f32 %v2423, %v2422
        %v2425 = vmul.f32 0.5, %v2424
        %v2426 = vsub.f32 1.5, %v2425
        %v2427 = vmul.f32 %v2422, %v2426
        %vm2428 = vweird.f32 %v2299
        %vm2429 = vweird.f32 %v2422
        %vm2430 = vmor %vm2428, %vm2429
        %v2431 = vsel %vm2430, %v2422, %v2427
        %v2432 = vrsqrt.pop %v2302
        %v2433 = vmul.f32 %v2432, %v2302
        %v2434 = vmul.f32 %v2433, %v2432
        %v2435 = vmul.f32 0.5, %v2434
        %v2436 = vsub.f32 1.5, %v2435
        %v2437 = vmul.f32 %v2432, %v2436
        %vm2438 = vweird.f32 %v2302
        %vm2439 = vweird.f32 %v2432
        %vm2440 = vmor %vm2438, %vm2439
        %v2441 = vsel %vm2440, %v2432, %v2437
        %v2442 = vrsqrt.pop %v2305
        %v2443 = vmul.f32 %v2442, %v2305
        %v2444 = vmul.f32 %v2443, %v2442
        %v2445 = vmul.f32 0.5, %v2444
        %v2446 = vsub.f32 1.5, %v2445
        %v2447 = vmul.f32 %v2442, %v2446
        %vm2448 = vweird.f32 %v2305
        %vm2449 = vweird.f32 %v2442
        %vm2450 = vmor %vm2448, %vm2449
        %v2451 = vsel %vm2450, %v2442, %v2447
        %v2452 = vrsqrt.pop %v2308
        %v2453 = vmul.f32 %v2452, %v2308
        %v2454 = vmul.f32 %v2453, %v2452
        %v2455 = vmul.f32 0.5, %v2454
        %v2456 = vsub.f32 1.5, %v2455
        %v2457 = vmul.f32 %v2452, %v2456
        %vm2458 = vweird.f32 %v2308
        %vm2459 = vweird.f32 %v2452
        %vm2460 = vmor %vm2458, %vm2459
        %v2461 = vsel %vm2460, %v2452, %v2457
        %v2462 = vrsqrt.pop %v2311
        %v2463 = vmul.f32 %v2462, %v2311
        %v2464 = vmul.f32 %v2463, %v2462
        %v2465 = vmul.f32 0.5, %v2464
        %v2466 = vsub.f32 1.5, %v2465
        %v2467 = vmul.f32 %v2462, %v2466
        %vm2468 = vweird.f32 %v2311
        %vm2469 = vweird.f32 %v2462
        %vm2470 = vmor %vm2468, %vm2469
        %v2471 = vsel %vm2470, %v2462, %v2467
        %v2472 = vmul.f32 %v1912, %v2321
        %v2473 = vmul.f32 %v1914, %v2331
        %v2474 = vmul.f32 %v1916, %v2341
        %v2475 = vmul.f32 %v1918, %v2351
        %v2476 = vmul.f32 %v1920, %v2361
        %v2477 = vmul.f32 %v1922, %v2371
        %v2478 = vmul.f32 %v1924, %v2381
        %v2479 = vmul.f32 %v1926, %v2391
        %v2480 = vmul.f32 %v1928, %v2401
        %v2481 = vmul.f32 %v1930, %v2411
        %v2482 = vmul.f32 %v1932, %v2421
        %v2483 = vmul.f32 %v1934, %v2431
        %v2484 = vmul.f32 %v1936, %v2441
        %v2485 = vmul.f32 %v1938, %v2451
        %v2486 = vmul.f32 %v1940, %v2461
        %v2487 = vmul.f32 %v1942, %v2471
        %vm2488 = vcmask 523520
        %2489 = vst.msk [vmem:[%s207] sm:$0xff] %vm2488, %v2472
        %2490 = vst.msk [vmem:[%s207 + $0x10] sm:$0xff] %vm2488, %v2473
        %2491 = vst.msk [vmem:[%s207 + $0x20] sm:$0xff] %vm2488, %v2474
        %2492 = vst.msk [vmem:[%s207 + $0x30] sm:$0xff] %vm2488, %v2475
        %2493 = vst.msk [vmem:[%s207 + $0x40] sm:$0xff] %vm2488, %v2476
        %2494 = vst.msk [vmem:[%s207 + $0x50] sm:$0xff] %vm2488, %v2477
        %2495 = vst.msk [vmem:[%s207 + $0x60] sm:$0xff] %vm2488, %v2478
        %2496 = vst.msk [vmem:[%s207 + $0x70] sm:$0xff] %vm2488, %v2479
        %2497 = vst.msk [vmem:[%s207 + $0x80] sm:$0xff] %vm2488, %v2480
        %2498 = vst.msk [vmem:[%s207 + $0x90] sm:$0xff] %vm2488, %v2481
        %2499 = vst.msk [vmem:[%s207 + $0xa0] sm:$0xff] %vm2488, %v2482
        %2500 = vst.msk [vmem:[%s207 + $0xb0] sm:$0xff] %vm2488, %v2483
        %2501 = vst.msk [vmem:[%s207 + $0xc0] sm:$0xff] %vm2488, %v2484
        %2502 = vst.msk [vmem:[%s207 + $0xd0] sm:$0xff] %vm2488, %v2485
        %2503 = vst.msk [vmem:[%s207 + $0xe0] sm:$0xff] %vm2488, %v2486
        %2504 = vst.msk [vmem:[%s207 + $0xf0] sm:$0xff] %vm2488, %v2487
        %2505 = vrot.lane.b32.xlu0 %v1944, 64
        %v2506 = vpop.permute.xlu0 %2505
        %2507 = vrot.lane.b32.xlu0 %v1945, 64
        %v2508 = vpop.permute.xlu0 %2507
        %2509 = vrot.lane.b32.xlu0 %v1946, 64
        %v2510 = vpop.permute.xlu0 %2509
        %2511 = vrot.lane.b32.xlu0 %v1947, 64
        %v2512 = vpop.permute.xlu0 %2511
        %2513 = vrot.lane.b32.xlu0 %v1948, 64
        %v2514 = vpop.permute.xlu0 %2513
        %2515 = vrot.lane.b32.xlu0 %v1949, 64
        %v2516 = vpop.permute.xlu0 %2515
        %2517 = vrot.lane.b32.xlu0 %v1950, 64
        %v2518 = vpop.permute.xlu0 %2517
        %2519 = vrot.lane.b32.xlu0 %v1951, 64
        %v2520 = vpop.permute.xlu0 %2519
        %2521 = vrot.lane.b32.xlu0 %v1952, 64
        %v2522 = vpop.permute.xlu0 %2521
        %2523 = vrot.lane.b32.xlu0 %v1953, 64
        %v2524 = vpop.permute.xlu0 %2523
        %2525 = vrot.lane.b32.xlu0 %v1954, 64
        %v2526 = vpop.permute.xlu0 %2525
        %2527 = vrot.lane.b32.xlu0 %v1955, 64
        %v2528 = vpop.permute.xlu0 %2527
        %2529 = vrot.lane.b32.xlu0 %v1956, 64
        %v2530 = vpop.permute.xlu0 %2529
        %2531 = vrot.lane.b32.xlu0 %v1957, 64
        %v2532 = vpop.permute.xlu0 %2531
        %2533 = vrot.lane.b32.xlu0 %v1958, 64
        %v2534 = vpop.permute.xlu0 %2533
        %2535 = vrot.lane.b32.xlu0 %v1959, 64
        %v2536 = vpop.permute.xlu0 %2535
        %v2553 = vsel %vm301, %v2506, 0.0
        %2554 = vadd.xlane.f32.xlu0 %v2553
        %v2555 = vpop.xlane.xlu0 %2554
        %v2556 = vsel %vm301, %v2508, 0.0
        %2557 = vadd.xlane.f32.xlu0 %v2556
        %v2558 = vpop.xlane.xlu0 %2557
        %v2559 = vsel %vm301, %v2510, 0.0
        %2560 = vadd.xlane.f32.xlu0 %v2559
        %v2561 = vpop.xlane.xlu0 %2560
        %v2562 = vsel %vm301, %v2512, 0.0
        %2563 = vadd.xlane.f32.xlu0 %v2562
        %v2564 = vpop.xlane.xlu0 %2563
        %v2565 = vsel %vm301, %v2514, 0.0
        %2566 = vadd.xlane.f32.xlu0 %v2565
        %v2567 = vpop.xlane.xlu0 %2566
        %v2568 = vsel %vm301, %v2516, 0.0
        %2569 = vadd.xlane.f32.xlu0 %v2568
        %v2570 = vpop.xlane.xlu0 %2569
        %v2571 = vsel %vm301, %v2518, 0.0
        %2572 = vadd.xlane.f32.xlu0 %v2571
        %v2573 = vpop.xlane.xlu0 %2572
        %v2574 = vsel %vm301, %v2520, 0.0
        %2575 = vadd.xlane.f32.xlu0 %v2574
        %v2576 = vpop.xlane.xlu0 %2575
        %v2577 = vsel %vm301, %v2522, 0.0
        %2578 = vadd.xlane.f32.xlu0 %v2577
        %v2579 = vpop.xlane.xlu0 %2578
        %v2580 = vsel %vm301, %v2524, 0.0
        %2581 = vadd.xlane.f32.xlu0 %v2580
        %v2582 = vpop.xlane.xlu0 %2581
        %v2583 = vsel %vm301, %v2526, 0.0
        %2584 = vadd.xlane.f32.xlu0 %v2583
        %v2585 = vpop.xlane.xlu0 %2584
        %v2586 = vsel %vm301, %v2528, 0.0
        %2587 = vadd.xlane.f32.xlu0 %v2586
        %v2588 = vpop.xlane.xlu0 %2587
        %v2589 = vsel %vm301, %v2530, 0.0
        %2590 = vadd.xlane.f32.xlu0 %v2589
        %v2591 = vpop.xlane.xlu0 %2590
        %v2592 = vsel %vm301, %v2532, 0.0
        %2593 = vadd.xlane.f32.xlu0 %v2592
        %v2594 = vpop.xlane.xlu0 %2593
        %v2595 = vsel %vm301, %v2534, 0.0
        %2596 = vadd.xlane.f32.xlu0 %v2595
        %v2597 = vpop.xlane.xlu0 %2596
        %v2598 = vsel %vm301, %v2536, 0.0
        %2599 = vadd.xlane.f32.xlu0 %v2598
        %v2600 = vpop.xlane.xlu0 %2599
        %v2601 = vrsqrt.pop %v2555
        %v2602 = vmul.f32 %v2601, %v2555
        %v2603 = vmul.f32 %v2602, %v2601
        %v2604 = vmul.f32 0.5, %v2603
        %v2605 = vsub.f32 1.5, %v2604
        %v2606 = vmul.f32 %v2601, %v2605
        %vm2607 = vweird.f32 %v2555
        %vm2608 = vweird.f32 %v2601
        %vm2609 = vmor %vm2607, %vm2608
        %v2610 = vsel %vm2609, %v2601, %v2606
        %v2611 = vrsqrt.pop %v2558
        %v2612 = vmul.f32 %v2611, %v2558
        %v2613 = vmul.f32 %v2612, %v2611
        %v2614 = vmul.f32 0.5, %v2613
        %v2615 = vsub.f32 1.5, %v2614
        %v2616 = vmul.f32 %v2611, %v2615
        %vm2617 = vweird.f32 %v2558
        %vm2618 = vweird.f32 %v2611
        %vm2619 = vmor %vm2617, %vm2618
        %v2620 = vsel %vm2619, %v2611, %v2616
        %v2621 = vrsqrt.pop %v2561
        %v2622 = vmul.f32 %v2621, %v2561
        %v2623 = vmul.f32 %v2622, %v2621
        %v2624 = vmul.f32 0.5, %v2623
        %v2625 = vsub.f32 1.5, %v2624
        %v2626 = vmul.f32 %v2621, %v2625
        %vm2627 = vweird.f32 %v2561
        %vm2628 = vweird.f32 %v2621
        %vm2629 = vmor %vm2627, %vm2628
        %v2630 = vsel %vm2629, %v2621, %v2626
        %v2631 = vrsqrt.pop %v2564
        %v2632 = vmul.f32 %v2631, %v2564
        %v2633 = vmul.f32 %v2632, %v2631
        %v2634 = vmul.f32 0.5, %v2633
        %v2635 = vsub.f32 1.5, %v2634
        %v2636 = vmul.f32 %v2631, %v2635
        %vm2637 = vweird.f32 %v2564
        %vm2638 = vweird.f32 %v2631
        %vm2639 = vmor %vm2637, %vm2638
        %v2640 = vsel %vm2639, %v2631, %v2636
        %v2641 = vrsqrt.pop %v2567
        %v2642 = vmul.f32 %v2641, %v2567
        %v2643 = vmul.f32 %v2642, %v2641
        %v2644 = vmul.f32 0.5, %v2643
        %v2645 = vsub.f32 1.5, %v2644
        %v2646 = vmul.f32 %v2641, %v2645
        %vm2647 = vweird.f32 %v2567
        %vm2648 = vweird.f32 %v2641
        %vm2649 = vmor %vm2647, %vm2648
        %v2650 = vsel %vm2649, %v2641, %v2646
        %v2651 = vrsqrt.pop %v2570
        %v2652 = vmul.f32 %v2651, %v2570
        %v2653 = vmul.f32 %v2652, %v2651
        %v2654 = vmul.f32 0.5, %v2653
        %v2655 = vsub.f32 1.5, %v2654
        %v2656 = vmul.f32 %v2651, %v2655
        %vm2657 = vweird.f32 %v2570
        %vm2658 = vweird.f32 %v2651
        %vm2659 = vmor %vm2657, %vm2658
        %v2660 = vsel %vm2659, %v2651, %v2656
        %v2661 = vrsqrt.pop %v2573
        %v2662 = vmul.f32 %v2661, %v2573
        %v2663 = vmul.f32 %v2662, %v2661
        %v2664 = vmul.f32 0.5, %v2663
        %v2665 = vsub.f32 1.5, %v2664
        %v2666 = vmul.f32 %v2661, %v2665
        %vm2667 = vweird.f32 %v2573
        %vm2668 = vweird.f32 %v2661
        %vm2669 = vmor %vm2667, %vm2668
        %v2670 = vsel %vm2669, %v2661, %v2666
        %v2671 = vrsqrt.pop %v2576
        %v2672 = vmul.f32 %v2671, %v2576
        %v2673 = vmul.f32 %v2672, %v2671
        %v2674 = vmul.f32 0.5, %v2673
        %v2675 = vsub.f32 1.5, %v2674
        %v2676 = vmul.f32 %v2671, %v2675
        %vm2677 = vweird.f32 %v2576
        %vm2678 = vweird.f32 %v2671
        %vm2679 = vmor %vm2677, %vm2678
        %v2680 = vsel %vm2679, %v2671, %v2676
        %v2681 = vrsqrt.pop %v2579
        %v2682 = vmul.f32 %v2681, %v2579
        %v2683 = vmul.f32 %v2682, %v2681
        %v2684 = vmul.f32 0.5, %v2683
        %v2685 = vsub.f32 1.5, %v2684
        %v2686 = vmul.f32 %v2681, %v2685
        %vm2687 = vweird.f32 %v2579
        %vm2688 = vweird.f32 %v2681
        %vm2689 = vmor %vm2687, %vm2688
        %v2690 = vsel %vm2689, %v2681, %v2686
        %v2691 = vrsqrt.pop %v2582
        %v2692 = vmul.f32 %v2691, %v2582
        %v2693 = vmul.f32 %v2692, %v2691
        %v2694 = vmul.f32 0.5, %v2693
        %v2695 = vsub.f32 1.5, %v2694
        %v2696 = vmul.f32 %v2691, %v2695
        %vm2697 = vweird.f32 %v2582
        %vm2698 = vweird.f32 %v2691
        %vm2699 = vmor %vm2697, %vm2698
        %v2700 = vsel %vm2699, %v2691, %v2696
        %v2701 = vrsqrt.pop %v2585
        %v2702 = vmul.f32 %v2701, %v2585
        %v2703 = vmul.f32 %v2702, %v2701
        %v2704 = vmul.f32 0.5, %v2703
        %v2705 = vsub.f32 1.5, %v2704
        %v2706 = vmul.f32 %v2701, %v2705
        %vm2707 = vweird.f32 %v2585
        %vm2708 = vweird.f32 %v2701
        %vm2709 = vmor %vm2707, %vm2708
        %v2710 = vsel %vm2709, %v2701, %v2706
        %v2711 = vrsqrt.pop %v2588
        %v2712 = vmul.f32 %v2711, %v2588
        %v2713 = vmul.f32 %v2712, %v2711
        %v2714 = vmul.f32 0.5, %v2713
        %v2715 = vsub.f32 1.5, %v2714
        %v2716 = vmul.f32 %v2711, %v2715
        %vm2717 = vweird.f32 %v2588
        %vm2718 = vweird.f32 %v2711
        %vm2719 = vmor %vm2717, %vm2718
        %v2720 = vsel %vm2719, %v2711, %v2716
        %v2721 = vrsqrt.pop %v2591
        %v2722 = vmul.f32 %v2721, %v2591
        %v2723 = vmul.f32 %v2722, %v2721
        %v2724 = vmul.f32 0.5, %v2723
        %v2725 = vsub.f32 1.5, %v2724
        %v2726 = vmul.f32 %v2721, %v2725
        %vm2727 = vweird.f32 %v2591
        %vm2728 = vweird.f32 %v2721
        %vm2729 = vmor %vm2727, %vm2728
        %v2730 = vsel %vm2729, %v2721, %v2726
        %v2731 = vrsqrt.pop %v2594
        %v2732 = vmul.f32 %v2731, %v2594
        %v2733 = vmul.f32 %v2732, %v2731
        %v2734 = vmul.f32 0.5, %v2733
        %v2735 = vsub.f32 1.5, %v2734
        %v2736 = vmul.f32 %v2731, %v2735
        %vm2737 = vweird.f32 %v2594
        %vm2738 = vweird.f32 %v2731
        %vm2739 = vmor %vm2737, %vm2738
        %v2740 = vsel %vm2739, %v2731, %v2736
        %v2741 = vrsqrt.pop %v2597
        %v2742 = vmul.f32 %v2741, %v2597
        %v2743 = vmul.f32 %v2742, %v2741
        %v2744 = vmul.f32 0.5, %v2743
        %v2745 = vsub.f32 1.5, %v2744
        %v2746 = vmul.f32 %v2741, %v2745
        %vm2747 = vweird.f32 %v2597
        %vm2748 = vweird.f32 %v2741
        %vm2749 = vmor %vm2747, %vm2748
        %v2750 = vsel %vm2749, %v2741, %v2746
        %v2751 = vrsqrt.pop %v2600
        %v2752 = vmul.f32 %v2751, %v2600
        %v2753 = vmul.f32 %v2752, %v2751
        %v2754 = vmul.f32 0.5, %v2753
        %v2755 = vsub.f32 1.5, %v2754
        %v2756 = vmul.f32 %v2751, %v2755
        %vm2757 = vweird.f32 %v2600
        %vm2758 = vweird.f32 %v2751
        %vm2759 = vmor %vm2757, %vm2758
        %v2760 = vsel %vm2759, %v2751, %v2756
        %v2761 = vmul.f32 %v1912, %v2610
        %v2762 = vmul.f32 %v1914, %v2620
        %v2763 = vmul.f32 %v1916, %v2630
        %v2764 = vmul.f32 %v1918, %v2640
        %v2765 = vmul.f32 %v1920, %v2650
        %v2766 = vmul.f32 %v1922, %v2660
        %v2767 = vmul.f32 %v1924, %v2670
        %v2768 = vmul.f32 %v1926, %v2680
        %v2769 = vmul.f32 %v1928, %v2690
        %v2770 = vmul.f32 %v1930, %v2700
        %v2771 = vmul.f32 %v1932, %v2710
        %v2772 = vmul.f32 %v1934, %v2720
        %v2773 = vmul.f32 %v1936, %v2730
        %v2774 = vmul.f32 %v1938, %v2740
        %v2775 = vmul.f32 %v1940, %v2750
        %v2776 = vmul.f32 %v1942, %v2760
        %vm2777 = vcmask 785920
        %2778 = vst.msk [vmem:[%s207] sm:$0xff] %vm2777, %v2761
        %2779 = vst.msk [vmem:[%s207 + $0x10] sm:$0xff] %vm2777, %v2762
        %2780 = vst.msk [vmem:[%s207 + $0x20] sm:$0xff] %vm2777, %v2763
        %2781 = vst.msk [vmem:[%s207 + $0x30] sm:$0xff] %vm2777, %v2764
        %2782 = vst.msk [vmem:[%s207 + $0x40] sm:$0xff] %vm2777, %v2765
        %2783 = vst.msk [vmem:[%s207 + $0x50] sm:$0xff] %vm2777, %v2766
        %2784 = vst.msk [vmem:[%s207 + $0x60] sm:$0xff] %vm2777, %v2767
        %2785 = vst.msk [vmem:[%s207 + $0x70] sm:$0xff] %vm2777, %v2768
        %2786 = vst.msk [vmem:[%s207 + $0x80] sm:$0xff] %vm2777, %v2769
        %2787 = vst.msk [vmem:[%s207 + $0x90] sm:$0xff] %vm2777, %v2770
        %2788 = vst.msk [vmem:[%s207 + $0xa0] sm:$0xff] %vm2777, %v2771
        %2789 = vst.msk [vmem:[%s207 + $0xb0] sm:$0xff] %vm2777, %v2772
        %2790 = vst.msk [vmem:[%s207 + $0xc0] sm:$0xff] %vm2777, %v2773
        %2791 = vst.msk [vmem:[%s207 + $0xd0] sm:$0xff] %vm2777, %v2774
        %2792 = vst.msk [vmem:[%s207 + $0xe0] sm:$0xff] %vm2777, %v2775
        %2793 = vst.msk [vmem:[%s207 + $0xf0] sm:$0xff] %vm2777, %v2776
        %2794 = vrot.lane.b32.xlu0 %v1944, 32
        %v2795 = vpop.permute.xlu0 %2794
        %2796 = vrot.lane.b32.xlu0 %v1945, 32
        %v2797 = vpop.permute.xlu0 %2796
        %2798 = vrot.lane.b32.xlu0 %v1946, 32
        %v2799 = vpop.permute.xlu0 %2798
        %2800 = vrot.lane.b32.xlu0 %v1947, 32
        %v2801 = vpop.permute.xlu0 %2800
        %2802 = vrot.lane.b32.xlu0 %v1948, 32
        %v2803 = vpop.permute.xlu0 %2802
        %2804 = vrot.lane.b32.xlu0 %v1949, 32
        %v2805 = vpop.permute.xlu0 %2804
        %2806 = vrot.lane.b32.xlu0 %v1950, 32
        %v2807 = vpop.permute.xlu0 %2806
        %2808 = vrot.lane.b32.xlu0 %v1951, 32
        %v2809 = vpop.permute.xlu0 %2808
        %2810 = vrot.lane.b32.xlu0 %v1952, 32
        %v2811 = vpop.permute.xlu0 %2810
        %2812 = vrot.lane.b32.xlu0 %v1953, 32
        %v2813 = vpop.permute.xlu0 %2812
        %2814 = vrot.lane.b32.xlu0 %v1954, 32
        %v2815 = vpop.permute.xlu0 %2814
        %2816 = vrot.lane.b32.xlu0 %v1955, 32
        %v2817 = vpop.permute.xlu0 %2816
        %2818 = vrot.lane.b32.xlu0 %v1956, 32
        %v2819 = vpop.permute.xlu0 %2818
        %2820 = vrot.lane.b32.xlu0 %v1957, 32
        %v2821 = vpop.permute.xlu0 %2820
        %2822 = vrot.lane.b32.xlu0 %v1958, 32
        %v2823 = vpop.permute.xlu0 %2822
        %2824 = vrot.lane.b32.xlu0 %v1959, 32
        %v2825 = vpop.permute.xlu0 %2824
        %v2842 = vsel %vm301, %v2795, 0.0
        %2843 = vadd.xlane.f32.xlu0 %v2842
        %v2844 = vpop.xlane.xlu0 %2843
        %v2845 = vsel %vm301, %v2797, 0.0
        %2846 = vadd.xlane.f32.xlu0 %v2845
        %v2847 = vpop.xlane.xlu0 %2846
        %v2848 = vsel %vm301, %v2799, 0.0
        %2849 = vadd.xlane.f32.xlu0 %v2848
        %v2850 = vpop.xlane.xlu0 %2849
        %v2851 = vsel %vm301, %v2801, 0.0
        %2852 = vadd.xlane.f32.xlu0 %v2851
        %v2853 = vpop.xlane.xlu0 %2852
        %v2854 = vsel %vm301, %v2803, 0.0
        %2855 = vadd.xlane.f32.xlu0 %v2854
        %v2856 = vpop.xlane.xlu0 %2855
        %v2857 = vsel %vm301, %v2805, 0.0
        %2858 = vadd.xlane.f32.xlu0 %v2857
        %v2859 = vpop.xlane.xlu0 %2858
        %v2860 = vsel %vm301, %v2807, 0.0
        %2861 = vadd.xlane.f32.xlu0 %v2860
        %v2862 = vpop.xlane.xlu0 %2861
        %v2863 = vsel %vm301, %v2809, 0.0
        %2864 = vadd.xlane.f32.xlu0 %v2863
        %v2865 = vpop.xlane.xlu0 %2864
        %v2866 = vsel %vm301, %v2811, 0.0
        %2867 = vadd.xlane.f32.xlu0 %v2866
        %v2868 = vpop.xlane.xlu0 %2867
        %v2869 = vsel %vm301, %v2813, 0.0
        %2870 = vadd.xlane.f32.xlu0 %v2869
        %v2871 = vpop.xlane.xlu0 %2870
        %v2872 = vsel %vm301, %v2815, 0.0
        %2873 = vadd.xlane.f32.xlu0 %v2872
        %v2874 = vpop.xlane.xlu0 %2873
        %v2875 = vsel %vm301, %v2817, 0.0
        %2876 = vadd.xlane.f32.xlu0 %v2875
        %v2877 = vpop.xlane.xlu0 %2876
        %v2878 = vsel %vm301, %v2819, 0.0
        %2879 = vadd.xlane.f32.xlu0 %v2878
        %v2880 = vpop.xlane.xlu0 %2879
        %v2881 = vsel %vm301, %v2821, 0.0
        %2882 = vadd.xlane.f32.xlu0 %v2881
        %v2883 = vpop.xlane.xlu0 %2882
        %v2884 = vsel %vm301, %v2823, 0.0
        %2885 = vadd.xlane.f32.xlu0 %v2884
        %v2886 = vpop.xlane.xlu0 %2885
        %v2887 = vsel %vm301, %v2825, 0.0
        %2888 = vadd.xlane.f32.xlu0 %v2887
        %v2889 = vpop.xlane.xlu0 %2888
        %v2890 = vrsqrt.pop %v2844
        %v2891 = vmul.f32 %v2890, %v2844
        %v2892 = vmul.f32 %v2891, %v2890
        %v2893 = vmul.f32 0.5, %v2892
        %v2894 = vsub.f32 1.5, %v2893
        %v2895 = vmul.f32 %v2890, %v2894
        %vm2896 = vweird.f32 %v2844
        %vm2897 = vweird.f32 %v2890
        %vm2898 = vmor %vm2896, %vm2897
        %v2899 = vsel %vm2898, %v2890, %v2895
        %v2900 = vrsqrt.pop %v2847
        %v2901 = vmul.f32 %v2900, %v2847
        %v2902 = vmul.f32 %v2901, %v2900
        %v2903 = vmul.f32 0.5, %v2902
        %v2904 = vsub.f32 1.5, %v2903
        %v2905 = vmul.f32 %v2900, %v2904
        %vm2906 = vweird.f32 %v2847
        %vm2907 = vweird.f32 %v2900
        %vm2908 = vmor %vm2906, %vm2907
        %v2909 = vsel %vm2908, %v2900, %v2905
        %v2910 = vrsqrt.pop %v2850
        %v2911 = vmul.f32 %v2910, %v2850
        %v2912 = vmul.f32 %v2911, %v2910
        %v2913 = vmul.f32 0.5, %v2912
        %v2914 = vsub.f32 1.5, %v2913
        %v2915 = vmul.f32 %v2910, %v2914
        %vm2916 = vweird.f32 %v2850
        %vm2917 = vweird.f32 %v2910
        %vm2918 = vmor %vm2916, %vm2917
        %v2919 = vsel %vm2918, %v2910, %v2915
        %v2920 = vrsqrt.pop %v2853
        %v2921 = vmul.f32 %v2920, %v2853
        %v2922 = vmul.f32 %v2921, %v2920
        %v2923 = vmul.f32 0.5, %v2922
        %v2924 = vsub.f32 1.5, %v2923
        %v2925 = vmul.f32 %v2920, %v2924
        %vm2926 = vweird.f32 %v2853
        %vm2927 = vweird.f32 %v2920
        %vm2928 = vmor %vm2926, %vm2927
        %v2929 = vsel %vm2928, %v2920, %v2925
        %v2930 = vrsqrt.pop %v2856
        %v2931 = vmul.f32 %v2930, %v2856
        %v2932 = vmul.f32 %v2931, %v2930
        %v2933 = vmul.f32 0.5, %v2932
        %v2934 = vsub.f32 1.5, %v2933
        %v2935 = vmul.f32 %v2930, %v2934
        %vm2936 = vweird.f32 %v2856
        %vm2937 = vweird.f32 %v2930
        %vm2938 = vmor %vm2936, %vm2937
        %v2939 = vsel %vm2938, %v2930, %v2935
        %v2940 = vrsqrt.pop %v2859
        %v2941 = vmul.f32 %v2940, %v2859
        %v2942 = vmul.f32 %v2941, %v2940
        %v2943 = vmul.f32 0.5, %v2942
        %v2944 = vsub.f32 1.5, %v2943
        %v2945 = vmul.f32 %v2940, %v2944
        %vm2946 = vweird.f32 %v2859
        %vm2947 = vweird.f32 %v2940
        %vm2948 = vmor %vm2946, %vm2947
        %v2949 = vsel %vm2948, %v2940, %v2945
        %v2950 = vrsqrt.pop %v2862
        %v2951 = vmul.f32 %v2950, %v2862
        %v2952 = vmul.f32 %v2951, %v2950
        %v2953 = vmul.f32 0.5, %v2952
        %v2954 = vsub.f32 1.5, %v2953
        %v2955 = vmul.f32 %v2950, %v2954
        %vm2956 = vweird.f32 %v2862
        %vm2957 = vweird.f32 %v2950
        %vm2958 = vmor %vm2956, %vm2957
        %v2959 = vsel %vm2958, %v2950, %v2955
        %v2960 = vrsqrt.pop %v2865
        %v2961 = vmul.f32 %v2960, %v2865
        %v2962 = vmul.f32 %v2961, %v2960
        %v2963 = vmul.f32 0.5, %v2962
        %v2964 = vsub.f32 1.5, %v2963
        %v2965 = vmul.f32 %v2960, %v2964
        %vm2966 = vweird.f32 %v2865
        %vm2967 = vweird.f32 %v2960
        %vm2968 = vmor %vm2966, %vm2967
        %v2969 = vsel %vm2968, %v2960, %v2965
        %v2970 = vrsqrt.pop %v2868
        %v2971 = vmul.f32 %v2970, %v2868
        %v2972 = vmul.f32 %v2971, %v2970
        %v2973 = vmul.f32 0.5, %v2972
        %v2974 = vsub.f32 1.5, %v2973
        %v2975 = vmul.f32 %v2970, %v2974
        %vm2976 = vweird.f32 %v2868
        %vm2977 = vweird.f32 %v2970
        %vm2978 = vmor %vm2976, %vm2977
        %v2979 = vsel %vm2978, %v2970, %v2975
        %v2980 = vrsqrt.pop %v2871
        %v2981 = vmul.f32 %v2980, %v2871
        %v2982 = vmul.f32 %v2981, %v2980
        %v2983 = vmul.f32 0.5, %v2982
        %v2984 = vsub.f32 1.5, %v2983
        %v2985 = vmul.f32 %v2980, %v2984
        %vm2986 = vweird.f32 %v2871
        %vm2987 = vweird.f32 %v2980
        %vm2988 = vmor %vm2986, %vm2987
        %v2989 = vsel %vm2988, %v2980, %v2985
        %v2990 = vrsqrt.pop %v2874
        %v2991 = vmul.f32 %v2990, %v2874
        %v2992 = vmul.f32 %v2991, %v2990
        %v2993 = vmul.f32 0.5, %v2992
        %v2994 = vsub.f32 1.5, %v2993
        %v2995 = vmul.f32 %v2990, %v2994
        %vm2996 = vweird.f32 %v2874
        %vm2997 = vweird.f32 %v2990
        %vm2998 = vmor %vm2996, %vm2997
        %v2999 = vsel %vm2998, %v2990, %v2995
        %v3000 = vrsqrt.pop %v2877
        %v3001 = vmul.f32 %v3000, %v2877
        %v3002 = vmul.f32 %v3001, %v3000
        %v3003 = vmul.f32 0.5, %v3002
        %v3004 = vsub.f32 1.5, %v3003
        %v3005 = vmul.f32 %v3000, %v3004
        %vm3006 = vweird.f32 %v2877
        %vm3007 = vweird.f32 %v3000
        %vm3008 = vmor %vm3006, %vm3007
        %v3009 = vsel %vm3008, %v3000, %v3005
        %v3010 = vrsqrt.pop %v2880
        %v3011 = vmul.f32 %v3010, %v2880
        %v3012 = vmul.f32 %v3011, %v3010
        %v3013 = vmul.f32 0.5, %v3012
        %v3014 = vsub.f32 1.5, %v3013
        %v3015 = vmul.f32 %v3010, %v3014
        %vm3016 = vweird.f32 %v2880
        %vm3017 = vweird.f32 %v3010
        %vm3018 = vmor %vm3016, %vm3017
        %v3019 = vsel %vm3018, %v3010, %v3015
        %v3020 = vrsqrt.pop %v2883
        %v3021 = vmul.f32 %v3020, %v2883
        %v3022 = vmul.f32 %v3021, %v3020
        %v3023 = vmul.f32 0.5, %v3022
        %v3024 = vsub.f32 1.5, %v3023
        %v3025 = vmul.f32 %v3020, %v3024
        %vm3026 = vweird.f32 %v2883
        %vm3027 = vweird.f32 %v3020
        %vm3028 = vmor %vm3026, %vm3027
        %v3029 = vsel %vm3028, %v3020, %v3025
        %v3030 = vrsqrt.pop %v2886
        %v3031 = vmul.f32 %v3030, %v2886
        %v3032 = vmul.f32 %v3031, %v3030
        %v3033 = vmul.f32 0.5, %v3032
        %v3034 = vsub.f32 1.5, %v3033
        %v3035 = vmul.f32 %v3030, %v3034
        %vm3036 = vweird.f32 %v2886
        %vm3037 = vweird.f32 %v3030
        %vm3038 = vmor %vm3036, %vm3037
        %v3039 = vsel %vm3038, %v3030, %v3035
        %v3040 = vrsqrt.pop %v2889
        %v3041 = vmul.f32 %v3040, %v2889
        %v3042 = vmul.f32 %v3041, %v3040
        %v3043 = vmul.f32 0.5, %v3042
        %v3044 = vsub.f32 1.5, %v3043
        %v3045 = vmul.f32 %v3040, %v3044
        %vm3046 = vweird.f32 %v2889
        %vm3047 = vweird.f32 %v3040
        %vm3048 = vmor %vm3046, %vm3047
        %v3049 = vsel %vm3048, %v3040, %v3045
        %v3050 = vmul.f32 %v1912, %v2899
        %v3051 = vmul.f32 %v1914, %v2909
        %v3052 = vmul.f32 %v1916, %v2919
        %v3053 = vmul.f32 %v1918, %v2929
        %v3054 = vmul.f32 %v1920, %v2939
        %v3055 = vmul.f32 %v1922, %v2949
        %v3056 = vmul.f32 %v1924, %v2959
        %v3057 = vmul.f32 %v1926, %v2969
        %v3058 = vmul.f32 %v1928, %v2979
        %v3059 = vmul.f32 %v1930, %v2989
        %v3060 = vmul.f32 %v1932, %v2999
        %v3061 = vmul.f32 %v1934, %v3009
        %v3062 = vmul.f32 %v1936, %v3019
        %v3063 = vmul.f32 %v1938, %v3029
        %v3064 = vmul.f32 %v1940, %v3039
        %v3065 = vmul.f32 %v1942, %v3049
        %vm3066 = vcmask 1048320
        %3067 = vst.msk [vmem:[%s207] sm:$0xff] %vm3066, %v3050
        %3068 = vst.msk [vmem:[%s207 + $0x10] sm:$0xff] %vm3066, %v3051
        %3069 = vst.msk [vmem:[%s207 + $0x20] sm:$0xff] %vm3066, %v3052
        %3070 = vst.msk [vmem:[%s207 + $0x30] sm:$0xff] %vm3066, %v3053
        %3071 = vst.msk [vmem:[%s207 + $0x40] sm:$0xff] %vm3066, %v3054
        %3072 = vst.msk [vmem:[%s207 + $0x50] sm:$0xff] %vm3066, %v3055
        %3073 = vst.msk [vmem:[%s207 + $0x60] sm:$0xff] %vm3066, %v3056
        %3074 = vst.msk [vmem:[%s207 + $0x70] sm:$0xff] %vm3066, %v3057
        %3075 = vst.msk [vmem:[%s207 + $0x80] sm:$0xff] %vm3066, %v3058
        %3076 = vst.msk [vmem:[%s207 + $0x90] sm:$0xff] %vm3066, %v3059
        %3077 = vst.msk [vmem:[%s207 + $0xa0] sm:$0xff] %vm3066, %v3060
        %3078 = vst.msk [vmem:[%s207 + $0xb0] sm:$0xff] %vm3066, %v3061
        %3079 = vst.msk [vmem:[%s207 + $0xc0] sm:$0xff] %vm3066, %v3062
        %3080 = vst.msk [vmem:[%s207 + $0xd0] sm:$0xff] %vm3066, %v3063
        %3081 = vst.msk [vmem:[%s207 + $0xe0] sm:$0xff] %vm3066, %v3064
        %3082 = vst.msk [vmem:[%s207 + $0xf0] sm:$0xff] %vm3066, %v3065
        %v3083 = vmul.f32 %v1913, %v1913
        %v3084 = vmul.f32 %v1915, %v1915
        %v3085 = vmul.f32 %v1917, %v1917
        %v3086 = vmul.f32 %v1919, %v1919
        %v3087 = vmul.f32 %v1921, %v1921
        %v3088 = vmul.f32 %v1923, %v1923
        %v3089 = vmul.f32 %v1925, %v1925
        %v3090 = vmul.f32 %v1927, %v1927
        %v3091 = vmul.f32 %v1929, %v1929
        %v3092 = vmul.f32 %v1931, %v1931
        %v3093 = vmul.f32 %v1933, %v1933
        %v3094 = vmul.f32 %v1935, %v1935
        %v3095 = vmul.f32 %v1937, %v1937
        %v3096 = vmul.f32 %v1939, %v1939
        %v3097 = vmul.f32 %v1941, %v1941
        %v3098 = vmul.f32 %v1943, %v1943
        %v3099 = vsel %vm301, %v3083, 0.0
        %3100 = vadd.xlane.f32.xlu0 %v3099
        %v3101 = vpop.xlane.xlu0 %3100
        %v3102 = vsel %vm301, %v3084, 0.0
        %3103 = vadd.xlane.f32.xlu0 %v3102
        %v3104 = vpop.xlane.xlu0 %3103
        %v3105 = vsel %vm301, %v3085, 0.0
        %3106 = vadd.xlane.f32.xlu0 %v3105
        %v3107 = vpop.xlane.xlu0 %3106
        %v3108 = vsel %vm301, %v3086, 0.0
        %3109 = vadd.xlane.f32.xlu0 %v3108
        %v3110 = vpop.xlane.xlu0 %3109
        %v3111 = vsel %vm301, %v3087, 0.0
        %3112 = vadd.xlane.f32.xlu0 %v3111
        %v3113 = vpop.xlane.xlu0 %3112
        %v3114 = vsel %vm301, %v3088, 0.0
        %3115 = vadd.xlane.f32.xlu0 %v3114
        %v3116 = vpop.xlane.xlu0 %3115
        %v3117 = vsel %vm301, %v3089, 0.0
        %3118 = vadd.xlane.f32.xlu0 %v3117
        %v3119 = vpop.xlane.xlu0 %3118
        %v3120 = vsel %vm301, %v3090, 0.0
        %3121 = vadd.xlane.f32.xlu0 %v3120
        %v3122 = vpop.xlane.xlu0 %3121
        %v3123 = vsel %vm301, %v3091, 0.0
        %3124 = vadd.xlane.f32.xlu0 %v3123
        %v3125 = vpop.xlane.xlu0 %3124
        %v3126 = vsel %vm301, %v3092, 0.0
        %3127 = vadd.xlane.f32.xlu0 %v3126
        %v3128 = vpop.xlane.xlu0 %3127
        %v3129 = vsel %vm301, %v3093, 0.0
        %3130 = vadd.xlane.f32.xlu0 %v3129
        %v3131 = vpop.xlane.xlu0 %3130
        %v3132 = vsel %vm301, %v3094, 0.0
        %3133 = vadd.xlane.f32.xlu0 %v3132
        %v3134 = vpop.xlane.xlu0 %3133
        %v3135 = vsel %vm301, %v3095, 0.0
        %3136 = vadd.xlane.f32.xlu0 %v3135
        %v3137 = vpop.xlane.xlu0 %3136
        %v3138 = vsel %vm301, %v3096, 0.0
        %3139 = vadd.xlane.f32.xlu0 %v3138
        %v3140 = vpop.xlane.xlu0 %3139
        %v3141 = vsel %vm301, %v3097, 0.0
        %3142 = vadd.xlane.f32.xlu0 %v3141
        %v3143 = vpop.xlane.xlu0 %3142
        %v3144 = vsel %vm301, %v3098, 0.0
        %3145 = vadd.xlane.f32.xlu0 %v3144
        %v3146 = vpop.xlane.xlu0 %3145
        %v3147 = vrsqrt.pop %v3101
        %v3148 = vmul.f32 %v3147, %v3101
        %v3149 = vmul.f32 %v3148, %v3147
        %v3150 = vmul.f32 0.5, %v3149
        %v3151 = vsub.f32 1.5, %v3150
        %v3152 = vmul.f32 %v3147, %v3151
        %vm3153 = vweird.f32 %v3101
        %vm3154 = vweird.f32 %v3147
        %vm3155 = vmor %vm3153, %vm3154
        %v3156 = vsel %vm3155, %v3147, %v3152
        %v3157 = vrsqrt.pop %v3104
        %v3158 = vmul.f32 %v3157, %v3104
        %v3159 = vmul.f32 %v3158, %v3157
        %v3160 = vmul.f32 0.5, %v3159
        %v3161 = vsub.f32 1.5, %v3160
        %v3162 = vmul.f32 %v3157, %v3161
        %vm3163 = vweird.f32 %v3104
        %vm3164 = vweird.f32 %v3157
        %vm3165 = vmor %vm3163, %vm3164
        %v3166 = vsel %vm3165, %v3157, %v3162
        %v3167 = vrsqrt.pop %v3107
        %v3168 = vmul.f32 %v3167, %v3107
        %v3169 = vmul.f32 %v3168, %v3167
        %v3170 = vmul.f32 0.5, %v3169
        %v3171 = vsub.f32 1.5, %v3170
        %v3172 = vmul.f32 %v3167, %v3171
        %vm3173 = vweird.f32 %v3107
        %vm3174 = vweird.f32 %v3167
        %vm3175 = vmor %vm3173, %vm3174
        %v3176 = vsel %vm3175, %v3167, %v3172
        %v3177 = vrsqrt.pop %v3110
        %v3178 = vmul.f32 %v3177, %v3110
        %v3179 = vmul.f32 %v3178, %v3177
        %v3180 = vmul.f32 0.5, %v3179
        %v3181 = vsub.f32 1.5, %v3180
        %v3182 = vmul.f32 %v3177, %v3181
        %vm3183 = vweird.f32 %v3110
        %vm3184 = vweird.f32 %v3177
        %vm3185 = vmor %vm3183, %vm3184
        %v3186 = vsel %vm3185, %v3177, %v3182
        %v3187 = vrsqrt.pop %v3113
        %v3188 = vmul.f32 %v3187, %v3113
        %v3189 = vmul.f32 %v3188, %v3187
        %v3190 = vmul.f32 0.5, %v3189
        %v3191 = vsub.f32 1.5, %v3190
        %v3192 = vmul.f32 %v3187, %v3191
        %vm3193 = vweird.f32 %v3113
        %vm3194 = vweird.f32 %v3187
        %vm3195 = vmor %vm3193, %vm3194
        %v3196 = vsel %vm3195, %v3187, %v3192
        %v3197 = vrsqrt.pop %v3116
        %v3198 = vmul.f32 %v3197, %v3116
        %v3199 = vmul.f32 %v3198, %v3197
        %v3200 = vmul.f32 0.5, %v3199
        %v3201 = vsub.f32 1.5, %v3200
        %v3202 = vmul.f32 %v3197, %v3201
        %vm3203 = vweird.f32 %v3116
        %vm3204 = vweird.f32 %v3197
        %vm3205 = vmor %vm3203, %vm3204
        %v3206 = vsel %vm3205, %v3197, %v3202
        %v3207 = vrsqrt.pop %v3119
        %v3208 = vmul.f32 %v3207, %v3119
        %v3209 = vmul.f32 %v3208, %v3207
        %v3210 = vmul.f32 0.5, %v3209
        %v3211 = vsub.f32 1.5, %v3210
        %v3212 = vmul.f32 %v3207, %v3211
        %vm3213 = vweird.f32 %v3119
        %vm3214 = vweird.f32 %v3207
        %vm3215 = vmor %vm3213, %vm3214
        %v3216 = vsel %vm3215, %v3207, %v3212
        %v3217 = vrsqrt.pop %v3122
        %v3218 = vmul.f32 %v3217, %v3122
        %v3219 = vmul.f32 %v3218, %v3217
        %v3220 = vmul.f32 0.5, %v3219
        %v3221 = vsub.f32 1.5, %v3220
        %v3222 = vmul.f32 %v3217, %v3221
        %vm3223 = vweird.f32 %v3122
        %vm3224 = vweird.f32 %v3217
        %vm3225 = vmor %vm3223, %vm3224
        %v3226 = vsel %vm3225, %v3217, %v3222
        %v3227 = vrsqrt.pop %v3125
        %v3228 = vmul.f32 %v3227, %v3125
        %v3229 = vmul.f32 %v3228, %v3227
        %v3230 = vmul.f32 0.5, %v3229
        %v3231 = vsub.f32 1.5, %v3230
        %v3232 = vmul.f32 %v3227, %v3231
        %vm3233 = vweird.f32 %v3125
        %vm3234 = vweird.f32 %v3227
        %vm3235 = vmor %vm3233, %vm3234
        %v3236 = vsel %vm3235, %v3227, %v3232
        %v3237 = vrsqrt.pop %v3128
        %v3238 = vmul.f32 %v3237, %v3128
        %v3239 = vmul.f32 %v3238, %v3237
        %v3240 = vmul.f32 0.5, %v3239
        %v3241 = vsub.f32 1.5, %v3240
        %v3242 = vmul.f32 %v3237, %v3241
        %vm3243 = vweird.f32 %v3128
        %vm3244 = vweird.f32 %v3237
        %vm3245 = vmor %vm3243, %vm3244
        %v3246 = vsel %vm3245, %v3237, %v3242
        %v3247 = vrsqrt.pop %v3131
        %v3248 = vmul.f32 %v3247, %v3131
        %v3249 = vmul.f32 %v3248, %v3247
        %v3250 = vmul.f32 0.5, %v3249
        %v3251 = vsub.f32 1.5, %v3250
        %v3252 = vmul.f32 %v3247, %v3251
        %vm3253 = vweird.f32 %v3131
        %vm3254 = vweird.f32 %v3247
        %vm3255 = vmor %vm3253, %vm3254
        %v3256 = vsel %vm3255, %v3247, %v3252
        %v3257 = vrsqrt.pop %v3134
        %v3258 = vmul.f32 %v3257, %v3134
        %v3259 = vmul.f32 %v3258, %v3257
        %v3260 = vmul.f32 0.5, %v3259
        %v3261 = vsub.f32 1.5, %v3260
        %v3262 = vmul.f32 %v3257, %v3261
        %vm3263 = vweird.f32 %v3134
        %vm3264 = vweird.f32 %v3257
        %vm3265 = vmor %vm3263, %vm3264
        %v3266 = vsel %vm3265, %v3257, %v3262
        %v3267 = vrsqrt.pop %v3137
        %v3268 = vmul.f32 %v3267, %v3137
        %v3269 = vmul.f32 %v3268, %v3267
        %v3270 = vmul.f32 0.5, %v3269
        %v3271 = vsub.f32 1.5, %v3270
        %v3272 = vmul.f32 %v3267, %v3271
        %vm3273 = vweird.f32 %v3137
        %vm3274 = vweird.f32 %v3267
        %vm3275 = vmor %vm3273, %vm3274
        %v3276 = vsel %vm3275, %v3267, %v3272
        %v3277 = vrsqrt.pop %v3140
        %v3278 = vmul.f32 %v3277, %v3140
        %v3279 = vmul.f32 %v3278, %v3277
        %v3280 = vmul.f32 0.5, %v3279
        %v3281 = vsub.f32 1.5, %v3280
        %v3282 = vmul.f32 %v3277, %v3281
        %vm3283 = vweird.f32 %v3140
        %vm3284 = vweird.f32 %v3277
        %vm3285 = vmor %vm3283, %vm3284
        %v3286 = vsel %vm3285, %v3277, %v3282
        %v3287 = vrsqrt.pop %v3143
        %v3288 = vmul.f32 %v3287, %v3143
        %v3289 = vmul.f32 %v3288, %v3287
        %v3290 = vmul.f32 0.5, %v3289
        %v3291 = vsub.f32 1.5, %v3290
        %v3292 = vmul.f32 %v3287, %v3291
        %vm3293 = vweird.f32 %v3143
        %vm3294 = vweird.f32 %v3287
        %vm3295 = vmor %vm3293, %vm3294
        %v3296 = vsel %vm3295, %v3287, %v3292
        %v3297 = vrsqrt.pop %v3146
        %v3298 = vmul.f32 %v3297, %v3146
        %v3299 = vmul.f32 %v3298, %v3297
        %v3300 = vmul.f32 0.5, %v3299
        %v3301 = vsub.f32 1.5, %v3300
        %v3302 = vmul.f32 %v3297, %v3301
        %vm3303 = vweird.f32 %v3146
        %vm3304 = vweird.f32 %v3297
        %vm3305 = vmor %vm3303, %vm3304
        %v3306 = vsel %vm3305, %v3297, %v3302
        %v3307 = vmul.f32 %v1913, %v3156
        %v3308 = vmul.f32 %v1915, %v3166
        %v3309 = vmul.f32 %v1917, %v3176
        %v3310 = vmul.f32 %v1919, %v3186
        %v3311 = vmul.f32 %v1921, %v3196
        %v3312 = vmul.f32 %v1923, %v3206
        %v3313 = vmul.f32 %v1925, %v3216
        %v3314 = vmul.f32 %v1927, %v3226
        %v3315 = vmul.f32 %v1929, %v3236
        %v3316 = vmul.f32 %v1931, %v3246
        %v3317 = vmul.f32 %v1933, %v3256
        %v3318 = vmul.f32 %v1935, %v3266
        %v3319 = vmul.f32 %v1937, %v3276
        %v3320 = vmul.f32 %v1939, %v3286
        %v3321 = vmul.f32 %v1941, %v3296
        %v3322 = vmul.f32 %v1943, %v3306
        %3323 = vst.msk [vmem:[%s207 + $0x8] sm:$0xff] %vm301, %v3307
        %3324 = vst.msk [vmem:[%s207 + $0x18] sm:$0xff] %vm301, %v3308
        %3325 = vst.msk [vmem:[%s207 + $0x28] sm:$0xff] %vm301, %v3309
        %3326 = vst.msk [vmem:[%s207 + $0x38] sm:$0xff] %vm301, %v3310
        %3327 = vst.msk [vmem:[%s207 + $0x48] sm:$0xff] %vm301, %v3311
        %3328 = vst.msk [vmem:[%s207 + $0x58] sm:$0xff] %vm301, %v3312
        %3329 = vst.msk [vmem:[%s207 + $0x68] sm:$0xff] %vm301, %v3313
        %3330 = vst.msk [vmem:[%s207 + $0x78] sm:$0xff] %vm301, %v3314
        %3331 = vst.msk [vmem:[%s207 + $0x88] sm:$0xff] %vm301, %v3315
        %3332 = vst.msk [vmem:[%s207 + $0x98] sm:$0xff] %vm301, %v3316
        %3333 = vst.msk [vmem:[%s207 + $0xa8] sm:$0xff] %vm301, %v3317
        %3334 = vst.msk [vmem:[%s207 + $0xb8] sm:$0xff] %vm301, %v3318
        %3335 = vst.msk [vmem:[%s207 + $0xc8] sm:$0xff] %vm301, %v3319
        %3336 = vst.msk [vmem:[%s207 + $0xd8] sm:$0xff] %vm301, %v3320
        %3337 = vst.msk [vmem:[%s207 + $0xe8] sm:$0xff] %vm301, %v3321
        %3338 = vst.msk [vmem:[%s207 + $0xf8] sm:$0xff] %vm301, %v3322
        %3355 = vrot.lane.b32.xlu0 %v3083, 96
        %v3356 = vpop.permute.xlu0 %3355
        %3357 = vrot.lane.b32.xlu0 %v3084, 96
        %v3358 = vpop.permute.xlu0 %3357
        %3359 = vrot.lane.b32.xlu0 %v3085, 96
        %v3360 = vpop.permute.xlu0 %3359
        %3361 = vrot.lane.b32.xlu0 %v3086, 96
        %v3362 = vpop.permute.xlu0 %3361
        %3363 = vrot.lane.b32.xlu0 %v3087, 96
        %v3364 = vpop.permute.xlu0 %3363
        %3365 = vrot.lane.b32.xlu0 %v3088, 96
        %v3366 = vpop.permute.xlu0 %3365
        %3367 = vrot.lane.b32.xlu0 %v3089, 96
        %v3368 = vpop.permute.xlu0 %3367
        %3369 = vrot.lane.b32.xlu0 %v3090, 96
        %v3370 = vpop.permute.xlu0 %3369
        %3371 = vrot.lane.b32.xlu0 %v3091, 96
        %v3372 = vpop.permute.xlu0 %3371
        %3373 = vrot.lane.b32.xlu0 %v3092, 96
        %v3374 = vpop.permute.xlu0 %3373
        %3375 = vrot.lane.b32.xlu0 %v3093, 96
        %v3376 = vpop.permute.xlu0 %3375
        %3377 = vrot.lane.b32.xlu0 %v3094, 96
        %v3378 = vpop.permute.xlu0 %3377
        %3379 = vrot.lane.b32.xlu0 %v3095, 96
        %v3380 = vpop.permute.xlu0 %3379
        %3381 = vrot.lane.b32.xlu0 %v3096, 96
        %v3382 = vpop.permute.xlu0 %3381
        %3383 = vrot.lane.b32.xlu0 %v3097, 96
        %v3384 = vpop.permute.xlu0 %3383
        %3385 = vrot.lane.b32.xlu0 %v3098, 96
        %v3386 = vpop.permute.xlu0 %3385
        %v3403 = vsel %vm301, %v3356, 0.0
        %3404 = vadd.xlane.f32.xlu0 %v3403
        %v3405 = vpop.xlane.xlu0 %3404
        %v3406 = vsel %vm301, %v3358, 0.0
        %3407 = vadd.xlane.f32.xlu0 %v3406
        %v3408 = vpop.xlane.xlu0 %3407
        %v3409 = vsel %vm301, %v3360, 0.0
        %3410 = vadd.xlane.f32.xlu0 %v3409
        %v3411 = vpop.xlane.xlu0 %3410
        %v3412 = vsel %vm301, %v3362, 0.0
        %3413 = vadd.xlane.f32.xlu0 %v3412
        %v3414 = vpop.xlane.xlu0 %3413
        %v3415 = vsel %vm301, %v3364, 0.0
        %3416 = vadd.xlane.f32.xlu0 %v3415
        %v3417 = vpop.xlane.xlu0 %3416
        %v3418 = vsel %vm301, %v3366, 0.0
        %3419 = vadd.xlane.f32.xlu0 %v3418
        %v3420 = vpop.xlane.xlu0 %3419
        %v3421 = vsel %vm301, %v3368, 0.0
        %3422 = vadd.xlane.f32.xlu0 %v3421
        %v3423 = vpop.xlane.xlu0 %3422
        %v3424 = vsel %vm301, %v3370, 0.0
        %3425 = vadd.xlane.f32.xlu0 %v3424
        %v3426 = vpop.xlane.xlu0 %3425
        %v3427 = vsel %vm301, %v3372, 0.0
        %3428 = vadd.xlane.f32.xlu0 %v3427
        %v3429 = vpop.xlane.xlu0 %3428
        %v3430 = vsel %vm301, %v3374, 0.0
        %3431 = vadd.xlane.f32.xlu0 %v3430
        %v3432 = vpop.xlane.xlu0 %3431
        %v3433 = vsel %vm301, %v3376, 0.0
        %3434 = vadd.xlane.f32.xlu0 %v3433
        %v3435 = vpop.xlane.xlu0 %3434
        %v3436 = vsel %vm301, %v3378, 0.0
        %3437 = vadd.xlane.f32.xlu0 %v3436
        %v3438 = vpop.xlane.xlu0 %3437
        %v3439 = vsel %vm301, %v3380, 0.0
        %3440 = vadd.xlane.f32.xlu0 %v3439
        %v3441 = vpop.xlane.xlu0 %3440
        %v3442 = vsel %vm301, %v3382, 0.0
        %3443 = vadd.xlane.f32.xlu0 %v3442
        %v3444 = vpop.xlane.xlu0 %3443
        %v3445 = vsel %vm301, %v3384, 0.0
        %3446 = vadd.xlane.f32.xlu0 %v3445
        %v3447 = vpop.xlane.xlu0 %3446
        %v3448 = vsel %vm301, %v3386, 0.0
        %3449 = vadd.xlane.f32.xlu0 %v3448
        %v3450 = vpop.xlane.xlu0 %3449
        %v3451 = vrsqrt.pop %v3405
        %v3452 = vmul.f32 %v3451, %v3405
        %v3453 = vmul.f32 %v3452, %v3451
        %v3454 = vmul.f32 0.5, %v3453
        %v3455 = vsub.f32 1.5, %v3454
        %v3456 = vmul.f32 %v3451, %v3455
        %vm3457 = vweird.f32 %v3405
        %vm3458 = vweird.f32 %v3451
        %vm3459 = vmor %vm3457, %vm3458
        %v3460 = vsel %vm3459, %v3451, %v3456
        %v3461 = vrsqrt.pop %v3408
        %v3462 = vmul.f32 %v3461, %v3408
        %v3463 = vmul.f32 %v3462, %v3461
        %v3464 = vmul.f32 0.5, %v3463
        %v3465 = vsub.f32 1.5, %v3464
        %v3466 = vmul.f32 %v3461, %v3465
        %vm3467 = vweird.f32 %v3408
        %vm3468 = vweird.f32 %v3461
        %vm3469 = vmor %vm3467, %vm3468
        %v3470 = vsel %vm3469, %v3461, %v3466
        %v3471 = vrsqrt.pop %v3411
        %v3472 = vmul.f32 %v3471, %v3411
        %v3473 = vmul.f32 %v3472, %v3471
        %v3474 = vmul.f32 0.5, %v3473
        %v3475 = vsub.f32 1.5, %v3474
        %v3476 = vmul.f32 %v3471, %v3475
        %vm3477 = vweird.f32 %v3411
        %vm3478 = vweird.f32 %v3471
        %vm3479 = vmor %vm3477, %vm3478
        %v3480 = vsel %vm3479, %v3471, %v3476
        %v3481 = vrsqrt.pop %v3414
        %v3482 = vmul.f32 %v3481, %v3414
        %v3483 = vmul.f32 %v3482, %v3481
        %v3484 = vmul.f32 0.5, %v3483
        %v3485 = vsub.f32 1.5, %v3484
        %v3486 = vmul.f32 %v3481, %v3485
        %vm3487 = vweird.f32 %v3414
        %vm3488 = vweird.f32 %v3481
        %vm3489 = vmor %vm3487, %vm3488
        %v3490 = vsel %vm3489, %v3481, %v3486
        %v3491 = vrsqrt.pop %v3417
        %v3492 = vmul.f32 %v3491, %v3417
        %v3493 = vmul.f32 %v3492, %v3491
        %v3494 = vmul.f32 0.5, %v3493
        %v3495 = vsub.f32 1.5, %v3494
        %v3496 = vmul.f32 %v3491, %v3495
        %vm3497 = vweird.f32 %v3417
        %vm3498 = vweird.f32 %v3491
        %vm3499 = vmor %vm3497, %vm3498
        %v3500 = vsel %vm3499, %v3491, %v3496
        %v3501 = vrsqrt.pop %v3420
        %v3502 = vmul.f32 %v3501, %v3420
        %v3503 = vmul.f32 %v3502, %v3501
        %v3504 = vmul.f32 0.5, %v3503
        %v3505 = vsub.f32 1.5, %v3504
        %v3506 = vmul.f32 %v3501, %v3505
        %vm3507 = vweird.f32 %v3420
        %vm3508 = vweird.f32 %v3501
        %vm3509 = vmor %vm3507, %vm3508
        %v3510 = vsel %vm3509, %v3501, %v3506
        %v3511 = vrsqrt.pop %v3423
        %v3512 = vmul.f32 %v3511, %v3423
        %v3513 = vmul.f32 %v3512, %v3511
        %v3514 = vmul.f32 0.5, %v3513
        %v3515 = vsub.f32 1.5, %v3514
        %v3516 = vmul.f32 %v3511, %v3515
        %vm3517 = vweird.f32 %v3423
        %vm3518 = vweird.f32 %v3511
        %vm3519 = vmor %vm3517, %vm3518
        %v3520 = vsel %vm3519, %v3511, %v3516
        %v3521 = vrsqrt.pop %v3426
        %v3522 = vmul.f32 %v3521, %v3426
        %v3523 = vmul.f32 %v3522, %v3521
        %v3524 = vmul.f32 0.5, %v3523
        %v3525 = vsub.f32 1.5, %v3524
        %v3526 = vmul.f32 %v3521, %v3525
        %vm3527 = vweird.f32 %v3426
        %vm3528 = vweird.f32 %v3521
        %vm3529 = vmor %vm3527, %vm3528
        %v3530 = vsel %vm3529, %v3521, %v3526
        %v3531 = vrsqrt.pop %v3429
        %v3532 = vmul.f32 %v3531, %v3429
        %v3533 = vmul.f32 %v3532, %v3531
        %v3534 = vmul.f32 0.5, %v3533
        %v3535 = vsub.f32 1.5, %v3534
        %v3536 = vmul.f32 %v3531, %v3535
        %vm3537 = vweird.f32 %v3429
        %vm3538 = vweird.f32 %v3531
        %vm3539 = vmor %vm3537, %vm3538
        %v3540 = vsel %vm3539, %v3531, %v3536
        %v3541 = vrsqrt.pop %v3432
        %v3542 = vmul.f32 %v3541, %v3432
        %v3543 = vmul.f32 %v3542, %v3541
        %v3544 = vmul.f32 0.5, %v3543
        %v3545 = vsub.f32 1.5, %v3544
        %v3546 = vmul.f32 %v3541, %v3545
        %vm3547 = vweird.f32 %v3432
        %vm3548 = vweird.f32 %v3541
        %vm3549 = vmor %vm3547, %vm3548
        %v3550 = vsel %vm3549, %v3541, %v3546
        %v3551 = vrsqrt.pop %v3435
        %v3552 = vmul.f32 %v3551, %v3435
        %v3553 = vmul.f32 %v3552, %v3551
        %v3554 = vmul.f32 0.5, %v3553
        %v3555 = vsub.f32 1.5, %v3554
        %v3556 = vmul.f32 %v3551, %v3555
        %vm3557 = vweird.f32 %v3435
        %vm3558 = vweird.f32 %v3551
        %vm3559 = vmor %vm3557, %vm3558
        %v3560 = vsel %vm3559, %v3551, %v3556
        %v3561 = vrsqrt.pop %v3438
        %v3562 = vmul.f32 %v3561, %v3438
        %v3563 = vmul.f32 %v3562, %v3561
        %v3564 = vmul.f32 0.5, %v3563
        %v3565 = vsub.f32 1.5, %v3564
        %v3566 = vmul.f32 %v3561, %v3565
        %vm3567 = vweird.f32 %v3438
        %vm3568 = vweird.f32 %v3561
        %vm3569 = vmor %vm3567, %vm3568
        %v3570 = vsel %vm3569, %v3561, %v3566
        %v3571 = vrsqrt.pop %v3441
        %v3572 = vmul.f32 %v3571, %v3441
        %v3573 = vmul.f32 %v3572, %v3571
        %v3574 = vmul.f32 0.5, %v3573
        %v3575 = vsub.f32 1.5, %v3574
        %v3576 = vmul.f32 %v3571, %v3575
        %vm3577 = vweird.f32 %v3441
        %vm3578 = vweird.f32 %v3571
        %vm3579 = vmor %vm3577, %vm3578
        %v3580 = vsel %vm3579, %v3571, %v3576
        %v3581 = vrsqrt.pop %v3444
        %v3582 = vmul.f32 %v3581, %v3444
        %v3583 = vmul.f32 %v3582, %v3581
        %v3584 = vmul.f32 0.5, %v3583
        %v3585 = vsub.f32 1.5, %v3584
        %v3586 = vmul.f32 %v3581, %v3585
        %vm3587 = vweird.f32 %v3444
        %vm3588 = vweird.f32 %v3581
        %vm3589 = vmor %vm3587, %vm3588
        %v3590 = vsel %vm3589, %v3581, %v3586
        %v3591 = vrsqrt.pop %v3447
        %v3592 = vmul.f32 %v3591, %v3447
        %v3593 = vmul.f32 %v3592, %v3591
        %v3594 = vmul.f32 0.5, %v3593
        %v3595 = vsub.f32 1.5, %v3594
        %v3596 = vmul.f32 %v3591, %v3595
        %vm3597 = vweird.f32 %v3447
        %vm3598 = vweird.f32 %v3591
        %vm3599 = vmor %vm3597, %vm3598
        %v3600 = vsel %vm3599, %v3591, %v3596
        %v3601 = vrsqrt.pop %v3450
        %v3602 = vmul.f32 %v3601, %v3450
        %v3603 = vmul.f32 %v3602, %v3601
        %v3604 = vmul.f32 0.5, %v3603
        %v3605 = vsub.f32 1.5, %v3604
        %v3606 = vmul.f32 %v3601, %v3605
        %vm3607 = vweird.f32 %v3450
        %vm3608 = vweird.f32 %v3601
        %vm3609 = vmor %vm3607, %vm3608
        %v3610 = vsel %vm3609, %v3601, %v3606
        %v3611 = vmul.f32 %v1913, %v3460
        %v3612 = vmul.f32 %v1915, %v3470
        %v3613 = vmul.f32 %v1917, %v3480
        %v3614 = vmul.f32 %v1919, %v3490
        %v3615 = vmul.f32 %v1921, %v3500
        %v3616 = vmul.f32 %v1923, %v3510
        %v3617 = vmul.f32 %v1925, %v3520
        %v3618 = vmul.f32 %v1927, %v3530
        %v3619 = vmul.f32 %v1929, %v3540
        %v3620 = vmul.f32 %v1931, %v3550
        %v3621 = vmul.f32 %v1933, %v3560
        %v3622 = vmul.f32 %v1935, %v3570
        %v3623 = vmul.f32 %v1937, %v3580
        %v3624 = vmul.f32 %v1939, %v3590
        %v3625 = vmul.f32 %v1941, %v3600
        %v3626 = vmul.f32 %v1943, %v3610
        %3627 = vst.msk [vmem:[%s207 + $0x8] sm:$0xff] %vm2488, %v3611
        %3628 = vst.msk [vmem:[%s207 + $0x18] sm:$0xff] %vm2488, %v3612
        %3629 = vst.msk [vmem:[%s207 + $0x28] sm:$0xff] %vm2488, %v3613
        %3630 = vst.msk [vmem:[%s207 + $0x38] sm:$0xff] %vm2488, %v3614
        %3631 = vst.msk [vmem:[%s207 + $0x48] sm:$0xff] %vm2488, %v3615
        %3632 = vst.msk [vmem:[%s207 + $0x58] sm:$0xff] %vm2488, %v3616
        %3633 = vst.msk [vmem:[%s207 + $0x68] sm:$0xff] %vm2488, %v3617
        %3634 = vst.msk [vmem:[%s207 + $0x78] sm:$0xff] %vm2488, %v3618
        %3635 = vst.msk [vmem:[%s207 + $0x88] sm:$0xff] %vm2488, %v3619
        %3636 = vst.msk [vmem:[%s207 + $0x98] sm:$0xff] %vm2488, %v3620
        %3637 = vst.msk [vmem:[%s207 + $0xa8] sm:$0xff] %vm2488, %v3621
        %3638 = vst.msk [vmem:[%s207 + $0xb8] sm:$0xff] %vm2488, %v3622
        %3639 = vst.msk [vmem:[%s207 + $0xc8] sm:$0xff] %vm2488, %v3623
        %3640 = vst.msk [vmem:[%s207 + $0xd8] sm:$0xff] %vm2488, %v3624
        %3641 = vst.msk [vmem:[%s207 + $0xe8] sm:$0xff] %vm2488, %v3625
        %3642 = vst.msk [vmem:[%s207 + $0xf8] sm:$0xff] %vm2488, %v3626
        %3643 = vrot.lane.b32.xlu0 %v3083, 64
        %v3644 = vpop.permute.xlu0 %3643
        %3645 = vrot.lane.b32.xlu0 %v3084, 64
        %v3646 = vpop.permute.xlu0 %3645
        %3647 = vrot.lane.b32.xlu0 %v3085, 64
        %v3648 = vpop.permute.xlu0 %3647
        %3649 = vrot.lane.b32.xlu0 %v3086, 64
        %v3650 = vpop.permute.xlu0 %3649
        %3651 = vrot.lane.b32.xlu0 %v3087, 64
        %v3652 = vpop.permute.xlu0 %3651
        %3653 = vrot.lane.b32.xlu0 %v3088, 64
        %v3654 = vpop.permute.xlu0 %3653
        %3655 = vrot.lane.b32.xlu0 %v3089, 64
        %v3656 = vpop.permute.xlu0 %3655
        %3657 = vrot.lane.b32.xlu0 %v3090, 64
        %v3658 = vpop.permute.xlu0 %3657
        %3659 = vrot.lane.b32.xlu0 %v3091, 64
        %v3660 = vpop.permute.xlu0 %3659
        %3661 = vrot.lane.b32.xlu0 %v3092, 64
        %v3662 = vpop.permute.xlu0 %3661
        %3663 = vrot.lane.b32.xlu0 %v3093, 64
        %v3664 = vpop.permute.xlu0 %3663
        %3665 = vrot.lane.b32.xlu0 %v3094, 64
        %v3666 = vpop.permute.xlu0 %3665
        %3667 = vrot.lane.b32.xlu0 %v3095, 64
        %v3668 = vpop.permute.xlu0 %3667
        %3669 = vrot.lane.b32.xlu0 %v3096, 64
        %v3670 = vpop.permute.xlu0 %3669
        %3671 = vrot.lane.b32.xlu0 %v3097, 64
        %v3672 = vpop.permute.xlu0 %3671
        %3673 = vrot.lane.b32.xlu0 %v3098, 64
        %v3674 = vpop.permute.xlu0 %3673
        %v3691 = vsel %vm301, %v3644, 0.0
        %3692 = vadd.xlane.f32.xlu0 %v3691
        %v3693 = vpop.xlane.xlu0 %3692
        %v3694 = vsel %vm301, %v3646, 0.0
        %3695 = vadd.xlane.f32.xlu0 %v3694
        %v3696 = vpop.xlane.xlu0 %3695
        %v3697 = vsel %vm301, %v3648, 0.0
        %3698 = vadd.xlane.f32.xlu0 %v3697
        %v3699 = vpop.xlane.xlu0 %3698
        %v3700 = vsel %vm301, %v3650, 0.0
        %3701 = vadd.xlane.f32.xlu0 %v3700
        %v3702 = vpop.xlane.xlu0 %3701
        %v3703 = vsel %vm301, %v3652, 0.0
        %3704 = vadd.xlane.f32.xlu0 %v3703
        %v3705 = vpop.xlane.xlu0 %3704
        %v3706 = vsel %vm301, %v3654, 0.0
        %3707 = vadd.xlane.f32.xlu0 %v3706
        %v3708 = vpop.xlane.xlu0 %3707
        %v3709 = vsel %vm301, %v3656, 0.0
        %3710 = vadd.xlane.f32.xlu0 %v3709
        %v3711 = vpop.xlane.xlu0 %3710
        %v3712 = vsel %vm301, %v3658, 0.0
        %3713 = vadd.xlane.f32.xlu0 %v3712
        %v3714 = vpop.xlane.xlu0 %3713
        %v3715 = vsel %vm301, %v3660, 0.0
        %3716 = vadd.xlane.f32.xlu0 %v3715
        %v3717 = vpop.xlane.xlu0 %3716
        %v3718 = vsel %vm301, %v3662, 0.0
        %3719 = vadd.xlane.f32.xlu0 %v3718
        %v3720 = vpop.xlane.xlu0 %3719
        %v3721 = vsel %vm301, %v3664, 0.0
        %3722 = vadd.xlane.f32.xlu0 %v3721
        %v3723 = vpop.xlane.xlu0 %3722
        %v3724 = vsel %vm301, %v3666, 0.0
        %3725 = vadd.xlane.f32.xlu0 %v3724
        %v3726 = vpop.xlane.xlu0 %3725
        %v3727 = vsel %vm301, %v3668, 0.0
        %3728 = vadd.xlane.f32.xlu0 %v3727
        %v3729 = vpop.xlane.xlu0 %3728
        %v3730 = vsel %vm301, %v3670, 0.0
        %3731 = vadd.xlane.f32.xlu0 %v3730
        %v3732 = vpop.xlane.xlu0 %3731
        %v3733 = vsel %vm301, %v3672, 0.0
        %3734 = vadd.xlane.f32.xlu0 %v3733
        %v3735 = vpop.xlane.xlu0 %3734
        %v3736 = vsel %vm301, %v3674, 0.0
        %3737 = vadd.xlane.f32.xlu0 %v3736
        %v3738 = vpop.xlane.xlu0 %3737
        %v3739 = vrsqrt.pop %v3693
        %v3740 = vmul.f32 %v3739, %v3693
        %v3741 = vmul.f32 %v3740, %v3739
        %v3742 = vmul.f32 0.5, %v3741
        %v3743 = vsub.f32 1.5, %v3742
        %v3744 = vmul.f32 %v3739, %v3743
        %vm3745 = vweird.f32 %v3693
        %vm3746 = vweird.f32 %v3739
        %vm3747 = vmor %vm3745, %vm3746
        %v3748 = vsel %vm3747, %v3739, %v3744
        %v3749 = vrsqrt.pop %v3696
        %v3750 = vmul.f32 %v3749, %v3696
        %v3751 = vmul.f32 %v3750, %v3749
        %v3752 = vmul.f32 0.5, %v3751
        %v3753 = vsub.f32 1.5, %v3752
        %v3754 = vmul.f32 %v3749, %v3753
        %vm3755 = vweird.f32 %v3696
        %vm3756 = vweird.f32 %v3749
        %vm3757 = vmor %vm3755, %vm3756
        %v3758 = vsel %vm3757, %v3749, %v3754
        %v3759 = vrsqrt.pop %v3699
        %v3760 = vmul.f32 %v3759, %v3699
        %v3761 = vmul.f32 %v3760, %v3759
        %v3762 = vmul.f32 0.5, %v3761
        %v3763 = vsub.f32 1.5, %v3762
        %v3764 = vmul.f32 %v3759, %v3763
        %vm3765 = vweird.f32 %v3699
        %vm3766 = vweird.f32 %v3759
        %vm3767 = vmor %vm3765, %vm3766
        %v3768 = vsel %vm3767, %v3759, %v3764
        %v3769 = vrsqrt.pop %v3702
        %v3770 = vmul.f32 %v3769, %v3702
        %v3771 = vmul.f32 %v3770, %v3769
        %v3772 = vmul.f32 0.5, %v3771
        %v3773 = vsub.f32 1.5, %v3772
        %v3774 = vmul.f32 %v3769, %v3773
        %vm3775 = vweird.f32 %v3702
        %vm3776 = vweird.f32 %v3769
        %vm3777 = vmor %vm3775, %vm3776
        %v3778 = vsel %vm3777, %v3769, %v3774
        %v3779 = vrsqrt.pop %v3705
        %v3780 = vmul.f32 %v3779, %v3705
        %v3781 = vmul.f32 %v3780, %v3779
        %v3782 = vmul.f32 0.5, %v3781
        %v3783 = vsub.f32 1.5, %v3782
        %v3784 = vmul.f32 %v3779, %v3783
        %vm3785 = vweird.f32 %v3705
        %vm3786 = vweird.f32 %v3779
        %vm3787 = vmor %vm3785, %vm3786
        %v3788 = vsel %vm3787, %v3779, %v3784
        %v3789 = vrsqrt.pop %v3708
        %v3790 = vmul.f32 %v3789, %v3708
        %v3791 = vmul.f32 %v3790, %v3789
        %v3792 = vmul.f32 0.5, %v3791
        %v3793 = vsub.f32 1.5, %v3792
        %v3794 = vmul.f32 %v3789, %v3793
        %vm3795 = vweird.f32 %v3708
        %vm3796 = vweird.f32 %v3789
        %vm3797 = vmor %vm3795, %vm3796
        %v3798 = vsel %vm3797, %v3789, %v3794
        %v3799 = vrsqrt.pop %v3711
        %v3800 = vmul.f32 %v3799, %v3711
        %v3801 = vmul.f32 %v3800, %v3799
        %v3802 = vmul.f32 0.5, %v3801
        %v3803 = vsub.f32 1.5, %v3802
        %v3804 = vmul.f32 %v3799, %v3803
        %vm3805 = vweird.f32 %v3711
        %vm3806 = vweird.f32 %v3799
        %vm3807 = vmor %vm3805, %vm3806
        %v3808 = vsel %vm3807, %v3799, %v3804
        %v3809 = vrsqrt.pop %v3714
        %v3810 = vmul.f32 %v3809, %v3714
        %v3811 = vmul.f32 %v3810, %v3809
        %v3812 = vmul.f32 0.5, %v3811
        %v3813 = vsub.f32 1.5, %v3812
        %v3814 = vmul.f32 %v3809, %v3813
        %vm3815 = vweird.f32 %v3714
        %vm3816 = vweird.f32 %v3809
        %vm3817 = vmor %vm3815, %vm3816
        %v3818 = vsel %vm3817, %v3809, %v3814
        %v3819 = vrsqrt.pop %v3717
        %v3820 = vmul.f32 %v3819, %v3717
        %v3821 = vmul.f32 %v3820, %v3819
        %v3822 = vmul.f32 0.5, %v3821
        %v3823 = vsub.f32 1.5, %v3822
        %v3824 = vmul.f32 %v3819, %v3823
        %vm3825 = vweird.f32 %v3717
        %vm3826 = vweird.f32 %v3819
        %vm3827 = vmor %vm3825, %vm3826
        %v3828 = vsel %vm3827, %v3819, %v3824
        %v3829 = vrsqrt.pop %v3720
        %v3830 = vmul.f32 %v3829, %v3720
        %v3831 = vmul.f32 %v3830, %v3829
        %v3832 = vmul.f32 0.5, %v3831
        %v3833 = vsub.f32 1.5, %v3832
        %v3834 = vmul.f32 %v3829, %v3833
        %vm3835 = vweird.f32 %v3720
        %vm3836 = vweird.f32 %v3829
        %vm3837 = vmor %vm3835, %vm3836
        %v3838 = vsel %vm3837, %v3829, %v3834
        %v3839 = vrsqrt.pop %v3723
        %v3840 = vmul.f32 %v3839, %v3723
        %v3841 = vmul.f32 %v3840, %v3839
        %v3842 = vmul.f32 0.5, %v3841
        %v3843 = vsub.f32 1.5, %v3842
        %v3844 = vmul.f32 %v3839, %v3843
        %vm3845 = vweird.f32 %v3723
        %vm3846 = vweird.f32 %v3839
        %vm3847 = vmor %vm3845, %vm3846
        %v3848 = vsel %vm3847, %v3839, %v3844
        %v3849 = vrsqrt.pop %v3726
        %v3850 = vmul.f32 %v3849, %v3726
        %v3851 = vmul.f32 %v3850, %v3849
        %v3852 = vmul.f32 0.5, %v3851
        %v3853 = vsub.f32 1.5, %v3852
        %v3854 = vmul.f32 %v3849, %v3853
        %vm3855 = vweird.f32 %v3726
        %vm3856 = vweird.f32 %v3849
        %vm3857 = vmor %vm3855, %vm3856
        %v3858 = vsel %vm3857, %v3849, %v3854
        %v3859 = vrsqrt.pop %v3729
        %v3860 = vmul.f32 %v3859, %v3729
        %v3861 = vmul.f32 %v3860, %v3859
        %v3862 = vmul.f32 0.5, %v3861
        %v3863 = vsub.f32 1.5, %v3862
        %v3864 = vmul.f32 %v3859, %v3863
        %vm3865 = vweird.f32 %v3729
        %vm3866 = vweird.f32 %v3859
        %vm3867 = vmor %vm3865, %vm3866
        %v3868 = vsel %vm3867, %v3859, %v3864
        %v3869 = vrsqrt.pop %v3732
        %v3870 = vmul.f32 %v3869, %v3732
        %v3871 = vmul.f32 %v3870, %v3869
        %v3872 = vmul.f32 0.5, %v3871
        %v3873 = vsub.f32 1.5, %v3872
        %v3874 = vmul.f32 %v3869, %v3873
        %vm3875 = vweird.f32 %v3732
        %vm3876 = vweird.f32 %v3869
        %vm3877 = vmor %vm3875, %vm3876
        %v3878 = vsel %vm3877, %v3869, %v3874
        %v3879 = vrsqrt.pop %v3735
        %v3880 = vmul.f32 %v3879, %v3735
        %v3881 = vmul.f32 %v3880, %v3879
        %v3882 = vmul.f32 0.5, %v3881
        %v3883 = vsub.f32 1.5, %v3882
        %v3884 = vmul.f32 %v3879, %v3883
        %vm3885 = vweird.f32 %v3735
        %vm3886 = vweird.f32 %v3879
        %vm3887 = vmor %vm3885, %vm3886
        %v3888 = vsel %vm3887, %v3879, %v3884
        %v3889 = vrsqrt.pop %v3738
        %v3890 = vmul.f32 %v3889, %v3738
        %v3891 = vmul.f32 %v3890, %v3889
        %v3892 = vmul.f32 0.5, %v3891
        %v3893 = vsub.f32 1.5, %v3892
        %v3894 = vmul.f32 %v3889, %v3893
        %vm3895 = vweird.f32 %v3738
        %vm3896 = vweird.f32 %v3889
        %vm3897 = vmor %vm3895, %vm3896
        %v3898 = vsel %vm3897, %v3889, %v3894
        %v3899 = vmul.f32 %v1913, %v3748
        %v3900 = vmul.f32 %v1915, %v3758
        %v3901 = vmul.f32 %v1917, %v3768
        %v3902 = vmul.f32 %v1919, %v3778
        %v3903 = vmul.f32 %v1921, %v3788
        %v3904 = vmul.f32 %v1923, %v3798
        %v3905 = vmul.f32 %v1925, %v3808
        %v3906 = vmul.f32 %v1927, %v3818
        %v3907 = vmul.f32 %v1929, %v3828
        %v3908 = vmul.f32 %v1931, %v3838
        %v3909 = vmul.f32 %v1933, %v3848
        %v3910 = vmul.f32 %v1935, %v3858
        %v3911 = vmul.f32 %v1937, %v3868
        %v3912 = vmul.f32 %v1939, %v3878
        %v3913 = vmul.f32 %v1941, %v3888
        %v3914 = vmul.f32 %v1943, %v3898
        %3915 = vst.msk [vmem:[%s207 + $0x8] sm:$0xff] %vm2777, %v3899
        %3916 = vst.msk [vmem:[%s207 + $0x18] sm:$0xff] %vm2777, %v3900
        %3917 = vst.msk [vmem:[%s207 + $0x28] sm:$0xff] %vm2777, %v3901
        %3918 = vst.msk [vmem:[%s207 + $0x38] sm:$0xff] %vm2777, %v3902
        %3919 = vst.msk [vmem:[%s207 + $0x48] sm:$0xff] %vm2777, %v3903
        %3920 = vst.msk [vmem:[%s207 + $0x58] sm:$0xff] %vm2777, %v3904
        %3921 = vst.msk [vmem:[%s207 + $0x68] sm:$0xff] %vm2777, %v3905
        %3922 = vst.msk [vmem:[%s207 + $0x78] sm:$0xff] %vm2777, %v3906
        %3923 = vst.msk [vmem:[%s207 + $0x88] sm:$0xff] %vm2777, %v3907
        %3924 = vst.msk [vmem:[%s207 + $0x98] sm:$0xff] %vm2777, %v3908
        %3925 = vst.msk [vmem:[%s207 + $0xa8] sm:$0xff] %vm2777, %v3909
        %3926 = vst.msk [vmem:[%s207 + $0xb8] sm:$0xff] %vm2777, %v3910
        %3927 = vst.msk [vmem:[%s207 + $0xc8] sm:$0xff] %vm2777, %v3911
        %3928 = vst.msk [vmem:[%s207 + $0xd8] sm:$0xff] %vm2777, %v3912
        %3929 = vst.msk [vmem:[%s207 + $0xe8] sm:$0xff] %vm2777, %v3913
        %3930 = vst.msk [vmem:[%s207 + $0xf8] sm:$0xff] %vm2777, %v3914
        %3931 = vrot.lane.b32.xlu0 %v3083, 32
        %v3932 = vpop.permute.xlu0 %3931
        %3933 = vrot.lane.b32.xlu0 %v3084, 32
        %v3934 = vpop.permute.xlu0 %3933
        %3935 = vrot.lane.b32.xlu0 %v3085, 32
        %v3936 = vpop.permute.xlu0 %3935
        %3937 = vrot.lane.b32.xlu0 %v3086, 32
        %v3938 = vpop.permute.xlu0 %3937
        %3939 = vrot.lane.b32.xlu0 %v3087, 32
        %v3940 = vpop.permute.xlu0 %3939
        %3941 = vrot.lane.b32.xlu0 %v3088, 32
        %v3942 = vpop.permute.xlu0 %3941
        %3943 = vrot.lane.b32.xlu0 %v3089, 32
        %v3944 = vpop.permute.xlu0 %3943
        %3945 = vrot.lane.b32.xlu0 %v3090, 32
        %v3946 = vpop.permute.xlu0 %3945
        %3947 = vrot.lane.b32.xlu0 %v3091, 32
        %v3948 = vpop.permute.xlu0 %3947
        %3949 = vrot.lane.b32.xlu0 %v3092, 32
        %v3950 = vpop.permute.xlu0 %3949
        %3951 = vrot.lane.b32.xlu0 %v3093, 32
        %v3952 = vpop.permute.xlu0 %3951
        %3953 = vrot.lane.b32.xlu0 %v3094, 32
        %v3954 = vpop.permute.xlu0 %3953
        %3955 = vrot.lane.b32.xlu0 %v3095, 32
        %v3956 = vpop.permute.xlu0 %3955
        %3957 = vrot.lane.b32.xlu0 %v3096, 32
        %v3958 = vpop.permute.xlu0 %3957
        %3959 = vrot.lane.b32.xlu0 %v3097, 32
        %v3960 = vpop.permute.xlu0 %3959
        %3961 = vrot.lane.b32.xlu0 %v3098, 32
        %v3962 = vpop.permute.xlu0 %3961
        %v3979 = vsel %vm301, %v3932, 0.0
        %3980 = vadd.xlane.f32.xlu0 %v3979
        %v3981 = vpop.xlane.xlu0 %3980
        %v3982 = vsel %vm301, %v3934, 0.0
        %3983 = vadd.xlane.f32.xlu0 %v3982
        %v3984 = vpop.xlane.xlu0 %3983
        %v3985 = vsel %vm301, %v3936, 0.0
        %3986 = vadd.xlane.f32.xlu0 %v3985
        %v3987 = vpop.xlane.xlu0 %3986
        %v3988 = vsel %vm301, %v3938, 0.0
        %3989 = vadd.xlane.f32.xlu0 %v3988
        %v3990 = vpop.xlane.xlu0 %3989
        %v3991 = vsel %vm301, %v3940, 0.0
        %3992 = vadd.xlane.f32.xlu0 %v3991
        %v3993 = vpop.xlane.xlu0 %3992
        %v3994 = vsel %vm301, %v3942, 0.0
        %3995 = vadd.xlane.f32.xlu0 %v3994
        %v3996 = vpop.xlane.xlu0 %3995
        %v3997 = vsel %vm301, %v3944, 0.0
        %3998 = vadd.xlane.f32.xlu0 %v3997
        %v3999 = vpop.xlane.xlu0 %3998
        %v4000 = vsel %vm301, %v3946, 0.0
        %4001 = vadd.xlane.f32.xlu0 %v4000
        %v4002 = vpop.xlane.xlu0 %4001
        %v4003 = vsel %vm301, %v3948, 0.0
        %4004 = vadd.xlane.f32.xlu0 %v4003
        %v4005 = vpop.xlane.xlu0 %4004
        %v4006 = vsel %vm301, %v3950, 0.0
        %4007 = vadd.xlane.f32.xlu0 %v4006
        %v4008 = vpop.xlane.xlu0 %4007
        %v4009 = vsel %vm301, %v3952, 0.0
        %4010 = vadd.xlane.f32.xlu0 %v4009
        %v4011 = vpop.xlane.xlu0 %4010
        %v4012 = vsel %vm301, %v3954, 0.0
        %4013 = vadd.xlane.f32.xlu0 %v4012
        %v4014 = vpop.xlane.xlu0 %4013
        %v4015 = vsel %vm301, %v3956, 0.0
        %4016 = vadd.xlane.f32.xlu0 %v4015
        %v4017 = vpop.xlane.xlu0 %4016
        %v4018 = vsel %vm301, %v3958, 0.0
        %4019 = vadd.xlane.f32.xlu0 %v4018
        %v4020 = vpop.xlane.xlu0 %4019
        %v4021 = vsel %vm301, %v3960, 0.0
        %4022 = vadd.xlane.f32.xlu0 %v4021
        %v4023 = vpop.xlane.xlu0 %4022
        %v4024 = vsel %vm301, %v3962, 0.0
        %4025 = vadd.xlane.f32.xlu0 %v4024
        %v4026 = vpop.xlane.xlu0 %4025
        %v4027 = vrsqrt.pop %v3981
        %v4028 = vmul.f32 %v4027, %v3981
        %v4029 = vmul.f32 %v4028, %v4027
        %v4030 = vmul.f32 0.5, %v4029
        %v4031 = vsub.f32 1.5, %v4030
        %v4032 = vmul.f32 %v4027, %v4031
        %vm4033 = vweird.f32 %v3981
        %vm4034 = vweird.f32 %v4027
        %vm4035 = vmor %vm4033, %vm4034
        %v4036 = vsel %vm4035, %v4027, %v4032
        %v4037 = vrsqrt.pop %v3984
        %v4038 = vmul.f32 %v4037, %v3984
        %v4039 = vmul.f32 %v4038, %v4037
        %v4040 = vmul.f32 0.5, %v4039
        %v4041 = vsub.f32 1.5, %v4040
        %v4042 = vmul.f32 %v4037, %v4041
        %vm4043 = vweird.f32 %v3984
        %vm4044 = vweird.f32 %v4037
        %vm4045 = vmor %vm4043, %vm4044
        %v4046 = vsel %vm4045, %v4037, %v4042
        %v4047 = vrsqrt.pop %v3987
        %v4048 = vmul.f32 %v4047, %v3987
        %v4049 = vmul.f32 %v4048, %v4047
        %v4050 = vmul.f32 0.5, %v4049
        %v4051 = vsub.f32 1.5, %v4050
        %v4052 = vmul.f32 %v4047, %v4051
        %vm4053 = vweird.f32 %v3987
        %vm4054 = vweird.f32 %v4047
        %vm4055 = vmor %vm4053, %vm4054
        %v4056 = vsel %vm4055, %v4047, %v4052
        %v4057 = vrsqrt.pop %v3990
        %v4058 = vmul.f32 %v4057, %v3990
        %v4059 = vmul.f32 %v4058, %v4057
        %v4060 = vmul.f32 0.5, %v4059
        %v4061 = vsub.f32 1.5, %v4060
        %v4062 = vmul.f32 %v4057, %v4061
        %vm4063 = vweird.f32 %v3990
        %vm4064 = vweird.f32 %v4057
        %vm4065 = vmor %vm4063, %vm4064
        %v4066 = vsel %vm4065, %v4057, %v4062
        %v4067 = vrsqrt.pop %v3993
        %v4068 = vmul.f32 %v4067, %v3993
        %v4069 = vmul.f32 %v4068, %v4067
        %v4070 = vmul.f32 0.5, %v4069
        %v4071 = vsub.f32 1.5, %v4070
        %v4072 = vmul.f32 %v4067, %v4071
        %vm4073 = vweird.f32 %v3993
        %vm4074 = vweird.f32 %v4067
        %vm4075 = vmor %vm4073, %vm4074
        %v4076 = vsel %vm4075, %v4067, %v4072
        %v4077 = vrsqrt.pop %v3996
        %v4078 = vmul.f32 %v4077, %v3996
        %v4079 = vmul.f32 %v4078, %v4077
        %v4080 = vmul.f32 0.5, %v4079
        %v4081 = vsub.f32 1.5, %v4080
        %v4082 = vmul.f32 %v4077, %v4081
        %vm4083 = vweird.f32 %v3996
        %vm4084 = vweird.f32 %v4077
        %vm4085 = vmor %vm4083, %vm4084
        %v4086 = vsel %vm4085, %v4077, %v4082
        %v4087 = vrsqrt.pop %v3999
        %v4088 = vmul.f32 %v4087, %v3999
        %v4089 = vmul.f32 %v4088, %v4087
        %v4090 = vmul.f32 0.5, %v4089
        %v4091 = vsub.f32 1.5, %v4090
        %v4092 = vmul.f32 %v4087, %v4091
        %vm4093 = vweird.f32 %v3999
        %vm4094 = vweird.f32 %v4087
        %vm4095 = vmor %vm4093, %vm4094
        %v4096 = vsel %vm4095, %v4087, %v4092
        %v4097 = vrsqrt.pop %v4002
        %v4098 = vmul.f32 %v4097, %v4002
        %v4099 = vmul.f32 %v4098, %v4097
        %v4100 = vmul.f32 0.5, %v4099
        %v4101 = vsub.f32 1.5, %v4100
        %v4102 = vmul.f32 %v4097, %v4101
        %vm4103 = vweird.f32 %v4002
        %vm4104 = vweird.f32 %v4097
        %vm4105 = vmor %vm4103, %vm4104
        %v4106 = vsel %vm4105, %v4097, %v4102
        %v4107 = vrsqrt.pop %v4005
        %v4108 = vmul.f32 %v4107, %v4005
        %v4109 = vmul.f32 %v4108, %v4107
        %v4110 = vmul.f32 0.5, %v4109
        %v4111 = vsub.f32 1.5, %v4110
        %v4112 = vmul.f32 %v4107, %v4111
        %vm4113 = vweird.f32 %v4005
        %vm4114 = vweird.f32 %v4107
        %vm4115 = vmor %vm4113, %vm4114
        %v4116 = vsel %vm4115, %v4107, %v4112
        %v4117 = vrsqrt.pop %v4008
        %v4118 = vmul.f32 %v4117, %v4008
        %v4119 = vmul.f32 %v4118, %v4117
        %v4120 = vmul.f32 0.5, %v4119
        %v4121 = vsub.f32 1.5, %v4120
        %v4122 = vmul.f32 %v4117, %v4121
        %vm4123 = vweird.f32 %v4008
        %vm4124 = vweird.f32 %v4117
        %vm4125 = vmor %vm4123, %vm4124
        %v4126 = vsel %vm4125, %v4117, %v4122
        %v4127 = vrsqrt.pop %v4011
        %v4128 = vmul.f32 %v4127, %v4011
        %v4129 = vmul.f32 %v4128, %v4127
        %v4130 = vmul.f32 0.5, %v4129
        %v4131 = vsub.f32 1.5, %v4130
        %v4132 = vmul.f32 %v4127, %v4131
        %vm4133 = vweird.f32 %v4011
        %vm4134 = vweird.f32 %v4127
        %vm4135 = vmor %vm4133, %vm4134
        %v4136 = vsel %vm4135, %v4127, %v4132
        %v4137 = vrsqrt.pop %v4014
        %v4138 = vmul.f32 %v4137, %v4014
        %v4139 = vmul.f32 %v4138, %v4137
        %v4140 = vmul.f32 0.5, %v4139
        %v4141 = vsub.f32 1.5, %v4140
        %v4142 = vmul.f32 %v4137, %v4141
        %vm4143 = vweird.f32 %v4014
        %vm4144 = vweird.f32 %v4137
        %vm4145 = vmor %vm4143, %vm4144
        %v4146 = vsel %vm4145, %v4137, %v4142
        %v4147 = vrsqrt.pop %v4017
        %v4148 = vmul.f32 %v4147, %v4017
        %v4149 = vmul.f32 %v4148, %v4147
        %v4150 = vmul.f32 0.5, %v4149
        %v4151 = vsub.f32 1.5, %v4150
        %v4152 = vmul.f32 %v4147, %v4151
        %vm4153 = vweird.f32 %v4017
        %vm4154 = vweird.f32 %v4147
        %vm4155 = vmor %vm4153, %vm4154
        %v4156 = vsel %vm4155, %v4147, %v4152
        %v4157 = vrsqrt.pop %v4020
        %v4158 = vmul.f32 %v4157, %v4020
        %v4159 = vmul.f32 %v4158, %v4157
        %v4160 = vmul.f32 0.5, %v4159
        %v4161 = vsub.f32 1.5, %v4160
        %v4162 = vmul.f32 %v4157, %v4161
        %vm4163 = vweird.f32 %v4020
        %vm4164 = vweird.f32 %v4157
        %vm4165 = vmor %vm4163, %vm4164
        %v4166 = vsel %vm4165, %v4157, %v4162
        %v4167 = vrsqrt.pop %v4023
        %v4168 = vmul.f32 %v4167, %v4023
        %v4169 = vmul.f32 %v4168, %v4167
        %v4170 = vmul.f32 0.5, %v4169
        %v4171 = vsub.f32 1.5, %v4170
        %v4172 = vmul.f32 %v4167, %v4171
        %vm4173 = vweird.f32 %v4023
        %vm4174 = vweird.f32 %v4167
        %vm4175 = vmor %vm4173, %vm4174
        %v4176 = vsel %vm4175, %v4167, %v4172
        %v4177 = vrsqrt.pop %v4026
        %v4178 = vmul.f32 %v4177, %v4026
        %v4179 = vmul.f32 %v4178, %v4177
        %v4180 = vmul.f32 0.5, %v4179
        %v4181 = vsub.f32 1.5, %v4180
        %v4182 = vmul.f32 %v4177, %v4181
        %vm4183 = vweird.f32 %v4026
        %vm4184 = vweird.f32 %v4177
        %vm4185 = vmor %vm4183, %vm4184
        %v4186 = vsel %vm4185, %v4177, %v4182
        %v4187 = vmul.f32 %v1913, %v4036
        %v4188 = vmul.f32 %v1915, %v4046
        %v4189 = vmul.f32 %v1917, %v4056
        %v4190 = vmul.f32 %v1919, %v4066
        %v4191 = vmul.f32 %v1921, %v4076
        %v4192 = vmul.f32 %v1923, %v4086
        %v4193 = vmul.f32 %v1925, %v4096
        %v4194 = vmul.f32 %v1927, %v4106
        %v4195 = vmul.f32 %v1929, %v4116
        %v4196 = vmul.f32 %v1931, %v4126
        %v4197 = vmul.f32 %v1933, %v4136
        %v4198 = vmul.f32 %v1935, %v4146
        %v4199 = vmul.f32 %v1937, %v4156
        %v4200 = vmul.f32 %v1939, %v4166
        %v4201 = vmul.f32 %v1941, %v4176
        %v4202 = vmul.f32 %v1943, %v4186
        %4203 = vst.msk [vmem:[%s207 + $0x8] sm:$0xff] %vm3066, %v4187
        %4204 = vst.msk [vmem:[%s207 + $0x18] sm:$0xff] %vm3066, %v4188
        %4205 = vst.msk [vmem:[%s207 + $0x28] sm:$0xff] %vm3066, %v4189
        %4206 = vst.msk [vmem:[%s207 + $0x38] sm:$0xff] %vm3066, %v4190
        %4207 = vst.msk [vmem:[%s207 + $0x48] sm:$0xff] %vm3066, %v4191
        %4208 = vst.msk [vmem:[%s207 + $0x58] sm:$0xff] %vm3066, %v4192
        %4209 = vst.msk [vmem:[%s207 + $0x68] sm:$0xff] %vm3066, %v4193
        %4210 = vst.msk [vmem:[%s207 + $0x78] sm:$0xff] %vm3066, %v4194
        %4211 = vst.msk [vmem:[%s207 + $0x88] sm:$0xff] %vm3066, %v4195
        %4212 = vst.msk [vmem:[%s207 + $0x98] sm:$0xff] %vm3066, %v4196
        %4213 = vst.msk [vmem:[%s207 + $0xa8] sm:$0xff] %vm3066, %v4197
        %4214 = vst.msk [vmem:[%s207 + $0xb8] sm:$0xff] %vm3066, %v4198
        %4215 = vst.msk [vmem:[%s207 + $0xc8] sm:$0xff] %vm3066, %v4199
        %4216 = vst.msk [vmem:[%s207 + $0xd8] sm:$0xff] %vm3066, %v4200
        %4217 = vst.msk [vmem:[%s207 + $0xe8] sm:$0xff] %vm3066, %v4201
        %4218 = vst.msk [vmem:[%s207 + $0xf8] sm:$0xff] %vm3066, %v4202
        %s4219 = sand.u32 %s120, 1
        %s4220 = scalar_lea.sflag [#allocation3], %s4219
        %s4221 = sand.u32 %s120, 1
        %s4222 = smul.addr %s4221, 256
        %s4223 = scalar_lea.vmem [#allocation2], %s4222
        // Predicated region
        $region37: #{tpu_custom_call.1} parent=35 // pred_check
          %p4224 = pneg %p130
        $region38: #{tpu_custom_call.1} parent=35 // pred_check_branch
          %4226 = sbr.rel (%p4224) target = $region40
        $region39: #{tpu_custom_call.1} parent=35 // pred_region
          %s4227 = smul.u32 16, %s18
          %4229 = vsyncadd %s4220, 0
          %s4230 = smul.addr %s4227, 2
          %s4231 = smul.addr %s4230, 8
          %s4232 = scalar_lea.hbm %s4, %s4231
          %s4233 = sshll.u32 %s4223, 4
          %s4234 = int_to_ptr.vmem [resolvable:$true] %s4233
          %s4235 = sshll.u32 %s4232, 4
          %s4236 = int_to_ptr.hbm [resolvable:$true] %s4235
          %4241 = dma.vmem_to_hbm [thread:$0]  %s4234, 4096, %s4236, %s4220, 256, 256, 16
        $region40: #{tpu_custom_call.1} parent=35 // pred_fallthru
          _
      $region36: #{tpu_custom_call.1} parent=5 // pred_fallthru
        _
      %p4242 = scmp.le.s32.totalorder 2, %s13
      // Predicated region
      $region41: #{tpu_custom_call.1} parent=5 // pred_check
        %p4243 = pneg %p4242
      $region42: #{tpu_custom_call.1} parent=5 // pred_check_branch
        %4245 = sbr.rel (%p4243) target = $region44
      $region43: #{tpu_custom_call.1} parent=5 // pred_region
        %s4246 = ssub.s32 %s13, 2
        // Predicated region
        $region45: #{tpu_custom_call.1} parent=43 // pred_check
          %p4247 = pneg %p136
        $region46: #{tpu_custom_call.1} parent=43 // pred_check_branch
          %4249 = sbr.rel (%p4247) target = $region48
        $region47: #{tpu_custom_call.1} parent=43 // pred_region
          %s4250 = sand.u32 %s121, 1
          %s4251 = scalar_lea.sflag [#allocation3], %s4250
          %s4252 = sand.u32 %s121, 1
          %s4253 = smul.addr %s4252, 256
          %s4254 = scalar_lea.vmem [#allocation2], %s4253
          %4256 = dma.done %s4251, 4096
        $region48: #{tpu_custom_call.1} parent=43 // pred_fallthru
          _
      $region44: #{tpu_custom_call.1} parent=5 // pred_fallthru
        _
    $region6: #{tpu_custom_call.1} parent=1 // loop_footer
      %s17 = sadd.s32 1, %s13
    $region7: #{tpu_custom_call.1} parent=1 // loop_footer_branch
      %12 = sbr.rel target = $region3
    $region8: #{tpu_custom_call.1} parent=1 // loop_exit
      _
    %4257 = vsyncpa [#allocation3], 1
    %s4258 = scalar_lea.sflag [#allocation3], 1
    %4259 = vsyncpa %s4258, 1

</llo_original>
